<compile_context>
chip_gen: v5e
topology: v5e:2x2
jax: 0.10.0
libtpu: 0.0.40
codegen_flags: <defaults>
</compile_context>

<pallas_src>
import jax
import jax.numpy as jnp
import numpy as np
from jax.experimental import pallas as pl
from jax.experimental.pallas import tpu as pltpu


# Tap packing: each group's patches are concatenated along the channel axis so
# one MXU matmul contracts K = len(group)*C real values (no zero-padded K/N).
# v5e (128-wide MXU): 5 K-passes per band/conv; v6e/v7x (256-wide): 3 — vs 9
# for per-tap dots.  Set to nine singleton groups to disable packing.
_TAP_GROUPS = ((0, 1, 2, 3), (4, 5, 6, 7), (8,))
_STATIC_BAND_UNROLL = 16        # static Python unroll up to this many row bands


def _round_up(n, m):
    return ((n + m - 1) // m) * m


# ---------------------------------------------------------------------------
# In-kernel helpers
# ---------------------------------------------------------------------------
def _zero_border(p_ref):
    """Zero only the 1-pixel halo border of a (H+2, W+2, C) scratch."""
    hp, wp, c = p_ref.shape
    z_row = jnp.zeros((1, wp, c), jnp.float32)
    z_col = jnp.zeros((hp, 1, c), jnp.float32)
    p_ref[0:1, :, :] = z_row
    p_ref[hp - 1:hp, :, :] = z_row
    p_ref[:, 0:1, :] = z_col
    p_ref[:, wp - 1:wp, :] = z_col


def _conv3x3_band(src_ref, w_ref, bias, r0, th, w, c, relu):
    """One row band of a 3x3 SAME conv with taps packed along the matmul K dim.

    src_ref: (H+2, W+2, C) f32 halo scratch (border already zero)
    w_ref  : (9*C, Cout)   tap-stacked weights (row t*C + i = W[ky, kx, i, :])
    bias   : (1, 1, Cout)
    r0     : first output row of the band
    Returns the (th, w, Cout) f32 band output (bias added, optional ReLU).
    """
    m = th * w
    c_out = w_ref.shape[1]
    acc = jnp.zeros((m, c_out), jnp.float32)
    for group in _TAP_GROUPS:
        pieces = [src_ref[pl.ds(r0 + t // 3, th), pl.ds(t % 3, w), :]
                  for t in group]
        lhs = pieces[0] if len(pieces) == 1 else jnp.concatenate(pieces, axis=-1)
        acc = acc + jnp.dot(
            lhs.reshape(m, len(group) * c),
            w_ref[pl.ds(group[0] * c, len(group) * c), :],
            preferred_element_type=jnp.float32)
    out = acc.reshape(th, w, c_out) + bias
    if relu:
        out = jnp.maximum(out, 0.0)
    return out


def _rcab_kernel(x_ref, w1_ref, b1_ref, w2_ref, b2_ref,
                 wd_ref, bd_ref, wu_ref, bu_ref,
                 o_ref, a_ref, f_ref):
    """Fused RCAB for one batch element.

    x_ref      : (1, H, W, C) input block (also the residual branch)
    w1/w2      : (9*C, C) tap-stacked 3x3 weights;  b1/b2: (1, C)
    wd/bd      : (C, Cr), (1, Cr)  channel-attention squeeze
    wu/bu      : (Cr, C), (1, C)   channel-attention excite
    o_ref      : (1, H, W, C) output block
    a_ref/f_ref: (H+2, W+2, C) f32 halo scratches
    """
    _, H, W, C = o_ref.shape
    # Row-band tile: bounds the f32 accumulator + packed-LHS live range
    # (M = TH*W rows per MXU stream) inside the 64-vreg register file.
    TH = 8 if H % 8 == 0 else H
    # TODO(synk): tail row band for H % 8 != 0, and a row-band grid axis with
    # an HBM intermediate (two-pass channel attention) for images too large
    # for whole-image-in-VMEM.
    nbands = H // TH

    _zero_border(a_ref)
    _zero_border(f_ref)

    b1 = b1_ref[...].reshape(1, 1, C)
    b2 = b2_ref[...].reshape(1, 1, C)

    # conv1 input (and residual source) -> interior of A.
    a_ref[1:H + 1, 1:W + 1, :] = x_ref[0].astype(jnp.float32)

    # conv1 + ReLU : A -> interior of F (stays in VMEM, never re-padded).
    def conv1_band(r0):
        f_ref[pl.ds(r0 + 1, TH), pl.ds(1, W), :] = _conv3x3_band(
            a_ref, w1_ref, b1, r0, TH, W, C, relu=True)

    # conv2 : F -> interior of A (x copy no longer needed there), fused with
    # the global-average-pool partial sum.
    def conv2_band(r0, psum):
        val = _conv3x3_band(f_ref, w2_ref, b2, r0, TH, W, C, relu=False)
        a_ref[pl.ds(r0 + 1, TH), pl.ds(1, W), :] = val
        return psum + jnp.sum(val, axis=(0, 1), keepdims=True).reshape(1, C)

    psum0 = jnp.zeros((1, C), jnp.float32)
    if nbands <= _STATIC_BAND_UNROLL:
        for i in range(nbands):
            conv1_band(i * TH)
        psum = psum0
        for i in range(nbands):
            psum = conv2_band(i * TH, psum)
    else:
        def _c1(i, carry):
            conv1_band(pl.multiple_of(i * TH, TH))
            return carry
        jax.lax.fori_loop(0, nbands, _c1, 0)
        psum = jax.lax.fori_loop(
            0, nbands,
            lambda i, p: conv2_band(pl.multiple_of(i * TH, TH), p), psum0)

    # Channel attention: GAP -> 1x1 -> ReLU -> 1x1 -> sigmoid.
    pooled = psum * (1.0 / (H * W))                                    # (1, C)
    z = jnp.dot(pooled, wd_ref[...],
                preferred_element_type=jnp.float32) + bd_ref[...]
    z = jnp.maximum(z, 0.0)                                            # (1, Cr)
    s = jnp.dot(z, wu_ref[...],
                preferred_element_type=jnp.float32) + bu_ref[...]
    s = jax.nn.sigmoid(s).reshape(1, 1, C)

    # Scale + residual, band-wise (bounded live range).
    def out_band(r0):
        res = (a_ref[pl.ds(r0 + 1, TH), pl.ds(1, W), :] * s
               + x_ref[0, pl.ds(r0, TH), :, :].astype(jnp.float32))
        o_ref[0, pl.ds(r0, TH), :, :] = res.astype(o_ref.dtype)

    if nbands <= _STATIC_BAND_UNROLL:
        for i in range(nbands):
            out_band(i * TH)
    else:
        def _ob(i, carry):
            out_band(pl.multiple_of(i * TH, TH))
            return carry
        jax.lax.fori_loop(0, nbands, _ob, 0)


# ---------------------------------------------------------------------------
# Wrapper (pallas_call glue)
# ---------------------------------------------------------------------------
def _vmem_limit_bytes(H, W, C, Cr):
    """Scoped-VMEM request: usage estimate + headroom, capped at 64 MiB
    (the smallest physical VMEM across v5e/v6e/v7x)."""
    lane = lambda n: _round_up(n, 128)
    sub = lambda n: _round_up(n, 8)
    f32 = 4
    scratch = 2 * (H + 2) * sub(W + 2) * lane(C) * f32
    io = 2 * 2 * H * sub(W) * lane(C) * f32            # in+out blocks, dbl-buffered
    wts = 2 * f32 * (2 * 9 * C * lane(C)
                     + sub(C) * lane(Cr) + sub(Cr) * lane(C)
                     + sub(1) * (3 * lane(C) + lane(Cr)))
    est = scratch + io + wts
    return int(min(max(est + (8 << 20), 32 << 20), 64 << 20))


def prepare_rcab_params(params):
    """One-time weight re-layout (call at module init, NOT per forward call).

    Conv weights (3, 3, Cin, Cout) HWIO -> (9*Cin, Cout) with the 9 taps
    stacked tap-major along the matmul K dimension (tap index = ky*3 + kx),
    matching the in-kernel tap packing.
    """
    f32 = jnp.float32
    c_in = params["w1"].shape[2]
    return {
        "w1g": jnp.asarray(params["w1"], f32).reshape(9 * c_in, -1),
        "b1": jnp.asarray(params["b1"], f32),
        "w2g": jnp.asarray(params["w2"], f32).reshape(9 * c_in, -1),
        "b2": jnp.asarray(params["b2"], f32),
        "wd": jnp.asarray(params["wd"], f32),
        "bd": jnp.asarray(params["bd"], f32),
        "wu": jnp.asarray(params["wu"], f32),
        "bu": jnp.asarray(params["bu"], f32),
        # TODO(synk): optional bf16 weight cast (halves weight DMA, runs at the
        # bf16 MXU peak) — changes numerics vs. the f32 PyTorch reference.
    }


def rcab_forward_nhwc(x, p):
    """Fused RCAB forward on NHWC activations (channels unpadded)."""
    B, H, W, C = x.shape
    Cr = p["wd"].shape[1]

    cost = pl.CostEstimate(
        flops=2 * (2 * B * H * W * 9 * C * C) + 2 * (2 * B * C * Cr),
        transcendentals=B * C,
        bytes_accessed=4 * (2 * B * H * W * C + 2 * 9 * C * C + 2 * C * Cr
                            + 3 * C + Cr))

    def full(shape):
        return pl.BlockSpec(shape, lambda b, _s=shape: (0,) * len(_s))

    return pl.pallas_call(
        _rcab_kernel,
        out_shape=jax.ShapeDtypeStruct((B, H, W, C), x.dtype),
        grid=(B,),
        in_specs=[
            pl.BlockSpec((1, H, W, C), lambda b: (b, 0, 0, 0)),
            full((9 * C, C)), full((1, C)),
            full((9 * C, C)), full((1, C)),
            full((C, Cr)), full((1, Cr)),
            full((Cr, C)), full((1, C)),
        ],
        out_specs=pl.BlockSpec((1, H, W, C), lambda b: (b, 0, 0, 0)),
        scratch_shapes=[
            pltpu.VMEM((H + 2, W + 2, C), jnp.float32),  # conv input / conv2 out
            pltpu.VMEM((H + 2, W + 2, C), jnp.float32),  # conv1 output (halo)
        ],
        compiler_params=pltpu.CompilerParams(
            dimension_semantics=("parallel",),           # v7x: batch across TCs
            vmem_limit_bytes=_vmem_limit_bytes(H, W, C, Cr)),
        cost_estimate=cost,
    )(x, p["w1g"], p["b1"], p["w2g"], p["b2"],
      p["wd"], p["bd"], p["wu"], p["bu"])


def rcab_forward(x_nchw, prepared):
    """NCHW wrapper for the PyTorch-style interface.  In a stacked RCAN, keep
    activations NHWC across blocks and transpose only at network entry/exit."""
    x = jnp.transpose(x_nchw, (0, 2, 3, 1))
    out = rcab_forward_nhwc(x, prepared)
    return jnp.transpose(out, (0, 3, 1, 2))


# ---------------------------------------------------------------------------
# Pure-JAX reference (for correctness check)
# ---------------------------------------------------------------------------
def rcab_reference(x_nchw, params):
    x = jnp.transpose(x_nchw, (0, 2, 3, 1))
    dn = ("NHWC", "HWIO", "NHWC")
    h = jax.lax.conv_general_dilated(x, params["w1"], (1, 1), "SAME",
                                     dimension_numbers=dn) + params["b1"].reshape(1, 1, 1, -1)
    h = jnp.maximum(h, 0.0)
    h = jax.lax.conv_general_dilated(h, params["w2"], (1, 1), "SAME",
                                     dimension_numbers=dn) + params["b2"].reshape(1, 1, 1, -1)
    pooled = jnp.mean(h, axis=(1, 2))                            # (B, C)
    z = jnp.maximum(pooled @ params["wd"] + params["bd"], 0.0)   # (B, Cr)
    s = jax.nn.sigmoid(z @ params["wu"] + params["bu"])          # (B, C)
    out = h * s[:, None, None, :] + x
    return jnp.transpose(out, (0, 3, 1, 2))


# ---------------------------------------------------------------------------
# Main
# ---------------------------------------------------------------------------
if __name__ == "__main__":
    B, C, H, W = 2, 64, 16, 16       # RCAB defaults: n_feat=64, reduction=8
    reduction = 8
    Cr = C // reduction

    key = jax.random.PRNGKey(0)
    ks = jax.random.split(key, 9)
    params = {
        "w1": jax.random.normal(ks[0], (3, 3, C, C), jnp.float32) * 0.05,
        "b1": jax.random.normal(ks[1], (1, C), jnp.float32) * 0.01,
        "w2": jax.random.normal(ks[2], (3, 3, C, C), jnp.float32) * 0.05,
        "b2": jax.random.normal(ks[3], (1, C), jnp.float32) * 0.01,
        "wd": jax.random.normal(ks[4], (C, Cr), jnp.float32) * 0.05,
        "bd": jax.random.normal(ks[5], (1, Cr), jnp.float32) * 0.01,
        "wu": jax.random.normal(ks[6], (Cr, C), jnp.float32) * 0.05,
        "bu": jax.random.normal(ks[7], (1, C), jnp.float32) * 0.01,
    }
    x = jax.random.normal(ks[8], (B, C, H, W), jnp.float32)

    prepared = prepare_rcab_params(params)     # one-time weight layout prep
    fwd = jax.jit(rcab_forward)
    out = jax.block_until_ready(fwd(x, prepared))
    ref = jax.block_until_ready(jax.jit(rcab_reference)(x, params))

    assert out.shape == (B, C, H, W), out.shape
    np.testing.assert_allclose(np.asarray(out), np.asarray(ref), atol=2e-4, rtol=2e-4)

    print("KERNEL_OK")
</pallas_src>

<mosaic_0001>
module attributes {stable_mosaic.version = 11 : i64} {
  func.func @_rcab_kernel(%arg0: i32, %arg1: memref<1x16x16x64xf32, #tpu.memory_space<vmem>>, %arg2: memref<576x64xf32, #tpu.memory_space<vmem>>, %arg3: memref<1x64xf32, #tpu.memory_space<vmem>>, %arg4: memref<576x64xf32, #tpu.memory_space<vmem>>, %arg5: memref<1x64xf32, #tpu.memory_space<vmem>>, %arg6: memref<64x8xf32, #tpu.memory_space<vmem>>, %arg7: memref<1x8xf32, #tpu.memory_space<vmem>>, %arg8: memref<8x64xf32, #tpu.memory_space<vmem>>, %arg9: memref<1x64xf32, #tpu.memory_space<vmem>>, %arg10: memref<1x16x16x64xf32, #tpu.memory_space<vmem>>, %arg11: memref<18x18x64xf32, #tpu.memory_space<vmem>>, %arg12: memref<18x18x64xf32, #tpu.memory_space<vmem>>) attributes {dimension_semantics = [#tpu.dimension_semantics<parallel>], iteration_bounds = array<i64: 2>, scalar_prefetch = 0 : i64, scratch_operands = 2 : i64, tpu.core_type = #tpu.core_type<tc>, window_params = [{transform_indices = @transform_0, window_bounds = array<i64: 1, 16, 16, 64>}, {pipeline_mode = #tpu.pipeline_mode<synchronous>, transform_indices = @transform_1, window_bounds = array<i64: 576, 64>}, {pipeline_mode = #tpu.pipeline_mode<synchronous>, transform_indices = @transform_2, window_bounds = array<i64: 1, 64>}, {pipeline_mode = #tpu.pipeline_mode<synchronous>, transform_indices = @transform_3, window_bounds = array<i64: 576, 64>}, {pipeline_mode = #tpu.pipeline_mode<synchronous>, transform_indices = @transform_4, window_bounds = array<i64: 1, 64>}, {pipeline_mode = #tpu.pipeline_mode<synchronous>, transform_indices = @transform_5, window_bounds = array<i64: 64, 8>}, {pipeline_mode = #tpu.pipeline_mode<synchronous>, transform_indices = @transform_6, window_bounds = array<i64: 1, 8>}, {pipeline_mode = #tpu.pipeline_mode<synchronous>, transform_indices = @transform_7, window_bounds = array<i64: 8, 64>}, {pipeline_mode = #tpu.pipeline_mode<synchronous>, transform_indices = @transform_8, window_bounds = array<i64: 1, 64>}, {transform_indices = @transform_9, window_bounds = array<i64: 1, 16, 16, 64>}]} {
    %cst = arith.constant 0.000000e+00 : f32
    %0 = vector.broadcast %cst : f32 to vector<1x18x64xf32>
    %cst_0 = arith.constant 0.000000e+00 : f32
    %1 = vector.broadcast %cst_0 : f32 to vector<18x1x64xf32>
    %c0 = arith.constant 0 : index
    %c0_1 = arith.constant 0 : index
    %c0_2 = arith.constant 0 : index
    %2 = vector.load %arg11[%c0, %c0_1, %c0_2] : memref<18x18x64xf32, #tpu.memory_space<vmem>>, vector<1x18x64xf32>
    tpu.vector_store %arg11[%c0, %c0_1, %c0_2], %0 {strides = array<i32>} : memref<18x18x64xf32, #tpu.memory_space<vmem>>, vector<1x18x64xf32>,
    %c17 = arith.constant 17 : index
    %c0_3 = arith.constant 0 : index
    %c0_4 = arith.constant 0 : index
    %3 = vector.load %arg11[%c17, %c0_3, %c0_4] : memref<18x18x64xf32, #tpu.memory_space<vmem>>, vector<1x18x64xf32>
    tpu.vector_store %arg11[%c17, %c0_3, %c0_4], %0 {strides = array<i32>} : memref<18x18x64xf32, #tpu.memory_space<vmem>>, vector<1x18x64xf32>,
    %c0_5 = arith.constant 0 : index
    %c0_6 = arith.constant 0 : index
    %c0_7 = arith.constant 0 : index
    %4 = vector.load %arg11[%c0_5, %c0_6, %c0_7] : memref<18x18x64xf32, #tpu.memory_space<vmem>>, vector<18x1x64xf32>
    tpu.vector_store %arg11[%c0_5, %c0_6, %c0_7], %1 {strides = array<i32>} : memref<18x18x64xf32, #tpu.memory_space<vmem>>, vector<18x1x64xf32>,
    %c0_8 = arith.constant 0 : index
    %c17_9 = arith.constant 17 : index
    %c0_10 = arith.constant 0 : index
    %5 = vector.load %arg11[%c0_8, %c17_9, %c0_10] : memref<18x18x64xf32, #tpu.memory_space<vmem>>, vector<18x1x64xf32>
    tpu.vector_store %arg11[%c0_8, %c17_9, %c0_10], %1 {strides = array<i32>} : memref<18x18x64xf32, #tpu.memory_space<vmem>>, vector<18x1x64xf32>,
    %cst_11 = arith.constant 0.000000e+00 : f32
    %6 = vector.broadcast %cst_11 : f32 to vector<1x18x64xf32>
    %cst_12 = arith.constant 0.000000e+00 : f32
    %7 = vector.broadcast %cst_12 : f32 to vector<18x1x64xf32>
    %c0_13 = arith.constant 0 : index
    %c0_14 = arith.constant 0 : index
    %c0_15 = arith.constant 0 : index
    %8 = vector.load %arg12[%c0_13, %c0_14, %c0_15] : memref<18x18x64xf32, #tpu.memory_space<vmem>>, vector<1x18x64xf32>
    tpu.vector_store %arg12[%c0_13, %c0_14, %c0_15], %6 {strides = array<i32>} : memref<18x18x64xf32, #tpu.memory_space<vmem>>, vector<1x18x64xf32>,
    %c17_16 = arith.constant 17 : index
    %c0_17 = arith.constant 0 : index
    %c0_18 = arith.constant 0 : index
    %9 = vector.load %arg12[%c17_16, %c0_17, %c0_18] : memref<18x18x64xf32, #tpu.memory_space<vmem>>, vector<1x18x64xf32>
    tpu.vector_store %arg12[%c17_16, %c0_17, %c0_18], %6 {strides = array<i32>} : memref<18x18x64xf32, #tpu.memory_space<vmem>>, vector<1x18x64xf32>,
    %c0_19 = arith.constant 0 : index
    %c0_20 = arith.constant 0 : index
    %c0_21 = arith.constant 0 : index
    %10 = vector.load %arg12[%c0_19, %c0_20, %c0_21] : memref<18x18x64xf32, #tpu.memory_space<vmem>>, vector<18x1x64xf32>
    tpu.vector_store %arg12[%c0_19, %c0_20, %c0_21], %7 {strides = array<i32>} : memref<18x18x64xf32, #tpu.memory_space<vmem>>, vector<18x1x64xf32>,
    %c0_22 = arith.constant 0 : index
    %c17_23 = arith.constant 17 : index
    %c0_24 = arith.constant 0 : index
    %11 = vector.load %arg12[%c0_22, %c17_23, %c0_24] : memref<18x18x64xf32, #tpu.memory_space<vmem>>, vector<18x1x64xf32>
    tpu.vector_store %arg12[%c0_22, %c17_23, %c0_24], %7 {strides = array<i32>} : memref<18x18x64xf32, #tpu.memory_space<vmem>>, vector<18x1x64xf32>,
    %c0_25 = arith.constant 0 : index
    %c0_26 = arith.constant 0 : index
    %12 = vector.load %arg3[%c0_25, %c0_26] : memref<1x64xf32, #tpu.memory_space<vmem>>, vector<1x64xf32>
    %13 = vector.shape_cast %12 : vector<1x64xf32> to vector<1x1x64xf32>
    %c0_27 = arith.constant 0 : index
    %c0_28 = arith.constant 0 : index
    %14 = vector.load %arg5[%c0_27, %c0_28] : memref<1x64xf32, #tpu.memory_space<vmem>>, vector<1x64xf32>
    %15 = vector.shape_cast %14 : vector<1x64xf32> to vector<1x1x64xf32>
    %c0_29 = arith.constant 0 : index
    %c0_30 = arith.constant 0 : index
    %c0_31 = arith.constant 0 : index
    %c0_32 = arith.constant 0 : index
    %16 = vector.load %arg1[%c0_29, %c0_30, %c0_31, %c0_32] : memref<1x16x16x64xf32, #tpu.memory_space<vmem>>, vector<1x16x16x64xf32>
    %17 = vector.shape_cast %16 : vector<1x16x16x64xf32> to vector<16x16x64xf32>
    %c1 = arith.constant 1 : index
    %c1_33 = arith.constant 1 : index
    %c0_34 = arith.constant 0 : index
    %18 = vector.load %arg11[%c1, %c1_33, %c0_34] : memref<18x18x64xf32, #tpu.memory_space<vmem>>, vector<16x16x64xf32>
    tpu.vector_store %arg11[%c1, %c1_33, %c0_34], %17 {strides = array<i32>} : memref<18x18x64xf32, #tpu.memory_space<vmem>>, vector<16x16x64xf32>,
    %cst_35 = arith.constant 0.000000e+00 : f32
    %19 = vector.broadcast %cst_35 : f32 to vector<1x64xf32>
    %cst_36 = arith.constant 0.000000e+00 : f32
    %20 = vector.broadcast %cst_36 : f32 to vector<128x64xf32>
    %c0_37 = arith.constant 0 : index
    %c0_38 = arith.constant 0 : index
    %c0_39 = arith.constant 0 : index
    %21 = vector.load %arg11[%c0_37, %c0_38, %c0_39] : memref<18x18x64xf32, #tpu.memory_space<vmem>>, vector<8x16x64xf32>
    %c0_40 = arith.constant 0 : index
    %c1_41 = arith.constant 1 : index
    %c0_42 = arith.constant 0 : index
    %22 = vector.load %arg11[%c0_40, %c1_41, %c0_42] : memref<18x18x64xf32, #tpu.memory_space<vmem>>, vector<8x16x64xf32>
    %c0_43 = arith.constant 0 : index
    %c2 = arith.constant 2 : index
    %c0_44 = arith.constant 0 : index
    %23 = vector.load %arg11[%c0_43, %c2, %c0_44] : memref<18x18x64xf32, #tpu.memory_space<vmem>>, vector<8x16x64xf32>
    %c1_45 = arith.constant 1 : index
    %c0_46 = arith.constant 0 : index
    %c0_47 = arith.constant 0 : index
    %24 = vector.load %arg11[%c1_45, %c0_46, %c0_47] : memref<18x18x64xf32, #tpu.memory_space<vmem>>, vector<8x16x64xf32>
    %25 = tpu.concatenate %21, %22, %23, %24 in 2 : vector<8x16x64xf32>, vector<8x16x64xf32>, vector<8x16x64xf32>, vector<8x16x64xf32> -> vector<8x16x256xf32>
    %26 = vector.shape_cast %25 : vector<8x16x256xf32> to vector<128x256xf32>
    %c0_48 = arith.constant 0 : index
    %c0_49 = arith.constant 0 : index
    %27 = vector.load %arg2[%c0_48, %c0_49] : memref<576x64xf32, #tpu.memory_space<vmem>>, vector<256x64xf32>
    %cst_50 = arith.constant dense<0.000000e+00> : vector<128x64xf32>
    %28 = tpu.matmul %26, %27, %cst_50 {dimension_numbers = #tpu.dot_dimension_numbers<[1], [0], [0], [1], [0, 0, 1, 1], [], []>} : vector<128x256xf32>, vector<256x64xf32>, vector<128x64xf32> -> vector<128x64xf32>
    %29 = arith.addf %20, %28 : vector<128x64xf32>
    %c1_51 = arith.constant 1 : index
    %c1_52 = arith.constant 1 : index
    %c0_53 = arith.constant 0 : index
    %30 = vector.load %arg11[%c1_51, %c1_52, %c0_53] : memref<18x18x64xf32, #tpu.memory_space<vmem>>, vector<8x16x64xf32>
    %c1_54 = arith.constant 1 : index
    %c2_55 = arith.constant 2 : index
    %c0_56 = arith.constant 0 : index
    %31 = vector.load %arg11[%c1_54, %c2_55, %c0_56] : memref<18x18x64xf32, #tpu.memory_space<vmem>>, vector<8x16x64xf32>
    %c2_57 = arith.constant 2 : index
    %c0_58 = arith.constant 0 : index
    %c0_59 = arith.constant 0 : index
    %32 = vector.load %arg11[%c2_57, %c0_58, %c0_59] : memref<18x18x64xf32, #tpu.memory_space<vmem>>, vector<8x16x64xf32>
    %c2_60 = arith.constant 2 : index
    %c1_61 = arith.constant 1 : index
    %c0_62 = arith.constant 0 : index
    %33 = vector.load %arg11[%c2_60, %c1_61, %c0_62] : memref<18x18x64xf32, #tpu.memory_space<vmem>>, vector<8x16x64xf32>
    %34 = tpu.concatenate %30, %31, %32, %33 in 2 : vector<8x16x64xf32>, vector<8x16x64xf32>, vector<8x16x64xf32>, vector<8x16x64xf32> -> vector<8x16x256xf32>
    %35 = vector.shape_cast %34 : vector<8x16x256xf32> to vector<128x256xf32>
    %c256 = arith.constant 256 : index
    %c0_63 = arith.constant 0 : index
    %36 = vector.load %arg2[%c256, %c0_63] : memref<576x64xf32, #tpu.memory_space<vmem>>, vector<256x64xf32>
    %cst_64 = arith.constant dense<0.000000e+00> : vector<128x64xf32>
    %37 = tpu.matmul %35, %36, %cst_64 {dimension_numbers = #tpu.dot_dimension_numbers<[1], [0], [0], [1], [0, 0, 1, 1], [], []>} : vector<128x256xf32>, vector<256x64xf32>, vector<128x64xf32> -> vector<128x64xf32>
    %38 = arith.addf %29, %37 : vector<128x64xf32>
    %c2_65 = arith.constant 2 : index
    %c2_66 = arith.constant 2 : index
    %c0_67 = arith.constant 0 : index
    %39 = vector.load %arg11[%c2_65, %c2_66, %c0_67] : memref<18x18x64xf32, #tpu.memory_space<vmem>>, vector<8x16x64xf32>
    %40 = vector.shape_cast %39 : vector<8x16x64xf32> to vector<128x64xf32>
    %c512 = arith.constant 512 : index
    %c0_68 = arith.constant 0 : index
    %41 = vector.load %arg2[%c512, %c0_68] : memref<576x64xf32, #tpu.memory_space<vmem>>, vector<64x64xf32>
    %cst_69 = arith.constant dense<0.000000e+00> : vector<128x64xf32>
    %42 = tpu.matmul %40, %41, %cst_69 {dimension_numbers = #tpu.dot_dimension_numbers<[1], [0], [0], [1], [0, 0, 1, 1], [], []>} : vector<128x64xf32>, vector<64x64xf32>, vector<128x64xf32> -> vector<128x64xf32>
    %43 = arith.addf %38, %42 : vector<128x64xf32>
    %44 = vector.shape_cast %43 : vector<128x64xf32> to vector<8x16x64xf32>
    %45 = vector.broadcast %13 : vector<1x1x64xf32> to vector<8x16x64xf32>
    %46 = arith.addf %44, %45 : vector<8x16x64xf32>
    %cst_70 = arith.constant 0.000000e+00 : f32
    %47 = vector.broadcast %cst_70 : f32 to vector<8x16x64xf32>
    %48 = arith.maximumf %46, %47 : vector<8x16x64xf32>
    %c1_71 = arith.constant 1 : index
    %c1_72 = arith.constant 1 : index
    %c0_73 = arith.constant 0 : index
    %49 = vector.load %arg12[%c1_71, %c1_72, %c0_73] : memref<18x18x64xf32, #tpu.memory_space<vmem>>, vector<8x16x64xf32>
    tpu.vector_store %arg12[%c1_71, %c1_72, %c0_73], %48 {strides = array<i32>} : memref<18x18x64xf32, #tpu.memory_space<vmem>>, vector<8x16x64xf32>,
    %cst_74 = arith.constant 0.000000e+00 : f32
    %50 = vector.broadcast %cst_74 : f32 to vector<128x64xf32>
    %c8 = arith.constant 8 : index
    %c0_75 = arith.constant 0 : index
    %c0_76 = arith.constant 0 : index
    %51 = vector.load %arg11[%c8, %c0_75, %c0_76] : memref<18x18x64xf32, #tpu.memory_space<vmem>>, vector<8x16x64xf32>
    %c8_77 = arith.constant 8 : index
    %c1_78 = arith.constant 1 : index
    %c0_79 = arith.constant 0 : index
    %52 = vector.load %arg11[%c8_77, %c1_78, %c0_79] : memref<18x18x64xf32, #tpu.memory_space<vmem>>, vector<8x16x64xf32>
    %c8_80 = arith.constant 8 : index
    %c2_81 = arith.constant 2 : index
    %c0_82 = arith.constant 0 : index
    %53 = vector.load %arg11[%c8_80, %c2_81, %c0_82] : memref<18x18x64xf32, #tpu.memory_space<vmem>>, vector<8x16x64xf32>
    %c9 = arith.constant 9 : index
    %c0_83 = arith.constant 0 : index
    %c0_84 = arith.constant 0 : index
    %54 = vector.load %arg11[%c9, %c0_83, %c0_84] : memref<18x18x64xf32, #tpu.memory_space<vmem>>, vector<8x16x64xf32>
    %55 = tpu.concatenate %51, %52, %53, %54 in 2 : vector<8x16x64xf32>, vector<8x16x64xf32>, vector<8x16x64xf32>, vector<8x16x64xf32> -> vector<8x16x256xf32>
    %56 = vector.shape_cast %55 : vector<8x16x256xf32> to vector<128x256xf32>
    %c0_85 = arith.constant 0 : index
    %c0_86 = arith.constant 0 : index
    %57 = vector.load %arg2[%c0_85, %c0_86] : memref<576x64xf32, #tpu.memory_space<vmem>>, vector<256x64xf32>
    %cst_87 = arith.constant dense<0.000000e+00> : vector<128x64xf32>
    %58 = tpu.matmul %56, %57, %cst_87 {dimension_numbers = #tpu.dot_dimension_numbers<[1], [0], [0], [1], [0, 0, 1, 1], [], []>} : vector<128x256xf32>, vector<256x64xf32>, vector<128x64xf32> -> vector<128x64xf32>
    %59 = arith.addf %50, %58 : vector<128x64xf32>
    %c9_88 = arith.constant 9 : index
    %c1_89 = arith.constant 1 : index
    %c0_90 = arith.constant 0 : index
    %60 = vector.load %arg11[%c9_88, %c1_89, %c0_90] : memref<18x18x64xf32, #tpu.memory_space<vmem>>, vector<8x16x64xf32>
    %c9_91 = arith.constant 9 : index
    %c2_92 = arith.constant 2 : index
    %c0_93 = arith.constant 0 : index
    %61 = vector.load %arg11[%c9_91, %c2_92, %c0_93] : memref<18x18x64xf32, #tpu.memory_space<vmem>>, vector<8x16x64xf32>
    %c10 = arith.constant 10 : index
    %c0_94 = arith.constant 0 : index
    %c0_95 = arith.constant 0 : index
    %62 = vector.load %arg11[%c10, %c0_94, %c0_95] : memref<18x18x64xf32, #tpu.memory_space<vmem>>, vector<8x16x64xf32>
    %c10_96 = arith.constant 10 : index
    %c1_97 = arith.constant 1 : index
    %c0_98 = arith.constant 0 : index
    %63 = vector.load %arg11[%c10_96, %c1_97, %c0_98] : memref<18x18x64xf32, #tpu.memory_space<vmem>>, vector<8x16x64xf32>
    %64 = tpu.concatenate %60, %61, %62, %63 in 2 : vector<8x16x64xf32>, vector<8x16x64xf32>, vector<8x16x64xf32>, vector<8x16x64xf32> -> vector<8x16x256xf32>
    %65 = vector.shape_cast %64 : vector<8x16x256xf32> to vector<128x256xf32>
    %c256_99 = arith.constant 256 : index
    %c0_100 = arith.constant 0 : index
    %66 = vector.load %arg2[%c256_99, %c0_100] : memref<576x64xf32, #tpu.memory_space<vmem>>, vector<256x64xf32>
    %cst_101 = arith.constant dense<0.000000e+00> : vector<128x64xf32>
    %67 = tpu.matmul %65, %66, %cst_101 {dimension_numbers = #tpu.dot_dimension_numbers<[1], [0], [0], [1], [0, 0, 1, 1], [], []>} : vector<128x256xf32>, vector<256x64xf32>, vector<128x64xf32> -> vector<128x64xf32>
    %68 = arith.addf %59, %67 : vector<128x64xf32>
    %c10_102 = arith.constant 10 : index
    %c2_103 = arith.constant 2 : index
    %c0_104 = arith.constant 0 : index
    %69 = vector.load %arg11[%c10_102, %c2_103, %c0_104] : memref<18x18x64xf32, #tpu.memory_space<vmem>>, vector<8x16x64xf32>
    %70 = vector.shape_cast %69 : vector<8x16x64xf32> to vector<128x64xf32>
    %c512_105 = arith.constant 512 : index
    %c0_106 = arith.constant 0 : index
    %71 = vector.load %arg2[%c512_105, %c0_106] : memref<576x64xf32, #tpu.memory_space<vmem>>, vector<64x64xf32>
    %cst_107 = arith.constant dense<0.000000e+00> : vector<128x64xf32>
    %72 = tpu.matmul %70, %71, %cst_107 {dimension_numbers = #tpu.dot_dimension_numbers<[1], [0], [0], [1], [0, 0, 1, 1], [], []>} : vector<128x64xf32>, vector<64x64xf32>, vector<128x64xf32> -> vector<128x64xf32>
    %73 = arith.addf %68, %72 : vector<128x64xf32>
    %74 = vector.shape_cast %73 : vector<128x64xf32> to vector<8x16x64xf32>
    %75 = vector.broadcast %13 : vector<1x1x64xf32> to vector<8x16x64xf32>
    %76 = arith.addf %74, %75 : vector<8x16x64xf32>
    %cst_108 = arith.constant 0.000000e+00 : f32
    %77 = vector.broadcast %cst_108 : f32 to vector<8x16x64xf32>
    %78 = arith.maximumf %76, %77 : vector<8x16x64xf32>
    %c9_109 = arith.constant 9 : index
    %c1_110 = arith.constant 1 : index
    %c0_111 = arith.constant 0 : index
    %79 = vector.load %arg12[%c9_109, %c1_110, %c0_111] : memref<18x18x64xf32, #tpu.memory_space<vmem>>, vector<8x16x64xf32>
    tpu.vector_store %arg12[%c9_109, %c1_110, %c0_111], %78 {strides = array<i32>} : memref<18x18x64xf32, #tpu.memory_space<vmem>>, vector<8x16x64xf32>,
    %cst_112 = arith.constant 0.000000e+00 : f32
    %80 = vector.broadcast %cst_112 : f32 to vector<128x64xf32>
    %c0_113 = arith.constant 0 : index
    %c0_114 = arith.constant 0 : index
    %c0_115 = arith.constant 0 : index
    %81 = vector.load %arg12[%c0_113, %c0_114, %c0_115] : memref<18x18x64xf32, #tpu.memory_space<vmem>>, vector<8x16x64xf32>
    %c0_116 = arith.constant 0 : index
    %c1_117 = arith.constant 1 : index
    %c0_118 = arith.constant 0 : index
    %82 = vector.load %arg12[%c0_116, %c1_117, %c0_118] : memref<18x18x64xf32, #tpu.memory_space<vmem>>, vector<8x16x64xf32>
    %c0_119 = arith.constant 0 : index
    %c2_120 = arith.constant 2 : index
    %c0_121 = arith.constant 0 : index
    %83 = vector.load %arg12[%c0_119, %c2_120, %c0_121] : memref<18x18x64xf32, #tpu.memory_space<vmem>>, vector<8x16x64xf32>
    %c1_122 = arith.constant 1 : index
    %c0_123 = arith.constant 0 : index
    %c0_124 = arith.constant 0 : index
    %84 = vector.load %arg12[%c1_122, %c0_123, %c0_124] : memref<18x18x64xf32, #tpu.memory_space<vmem>>, vector<8x16x64xf32>
    %85 = tpu.concatenate %81, %82, %83, %84 in 2 : vector<8x16x64xf32>, vector<8x16x64xf32>, vector<8x16x64xf32>, vector<8x16x64xf32> -> vector<8x16x256xf32>
    %86 = vector.shape_cast %85 : vector<8x16x256xf32> to vector<128x256xf32>
    %c0_125 = arith.constant 0 : index
    %c0_126 = arith.constant 0 : index
    %87 = vector.load %arg4[%c0_125, %c0_126] : memref<576x64xf32, #tpu.memory_space<vmem>>, vector<256x64xf32>
    %cst_127 = arith.constant dense<0.000000e+00> : vector<128x64xf32>
    %88 = tpu.matmul %86, %87, %cst_127 {dimension_numbers = #tpu.dot_dimension_numbers<[1], [0], [0], [1], [0, 0, 1, 1], [], []>} : vector<128x256xf32>, vector<256x64xf32>, vector<128x64xf32> -> vector<128x64xf32>
    %89 = arith.addf %80, %88 : vector<128x64xf32>
    %c1_128 = arith.constant 1 : index
    %c1_129 = arith.constant 1 : index
    %c0_130 = arith.constant 0 : index
    %90 = vector.load %arg12[%c1_128, %c1_129, %c0_130] : memref<18x18x64xf32, #tpu.memory_space<vmem>>, vector<8x16x64xf32>
    %c1_131 = arith.constant 1 : index
    %c2_132 = arith.constant 2 : index
    %c0_133 = arith.constant 0 : index
    %91 = vector.load %arg12[%c1_131, %c2_132, %c0_133] : memref<18x18x64xf32, #tpu.memory_space<vmem>>, vector<8x16x64xf32>
    %c2_134 = arith.constant 2 : index
    %c0_135 = arith.constant 0 : index
    %c0_136 = arith.constant 0 : index
    %92 = vector.load %arg12[%c2_134, %c0_135, %c0_136] : memref<18x18x64xf32, #tpu.memory_space<vmem>>, vector<8x16x64xf32>
    %c2_137 = arith.constant 2 : index
    %c1_138 = arith.constant 1 : index
    %c0_139 = arith.constant 0 : index
    %93 = vector.load %arg12[%c2_137, %c1_138, %c0_139] : memref<18x18x64xf32, #tpu.memory_space<vmem>>, vector<8x16x64xf32>
    %94 = tpu.concatenate %90, %91, %92, %93 in 2 : vector<8x16x64xf32>, vector<8x16x64xf32>, vector<8x16x64xf32>, vector<8x16x64xf32> -> vector<8x16x256xf32>
    %95 = vector.shape_cast %94 : vector<8x16x256xf32> to vector<128x256xf32>
    %c256_140 = arith.constant 256 : index
    %c0_141 = arith.constant 0 : index
    %96 = vector.load %arg4[%c256_140, %c0_141] : memref<576x64xf32, #tpu.memory_space<vmem>>, vector<256x64xf32>
    %cst_142 = arith.constant dense<0.000000e+00> : vector<128x64xf32>
    %97 = tpu.matmul %95, %96, %cst_142 {dimension_numbers = #tpu.dot_dimension_numbers<[1], [0], [0], [1], [0, 0, 1, 1], [], []>} : vector<128x256xf32>, vector<256x64xf32>, vector<128x64xf32> -> vector<128x64xf32>
    %98 = arith.addf %89, %97 : vector<128x64xf32>
    %c2_143 = arith.constant 2 : index
    %c2_144 = arith.constant 2 : index
    %c0_145 = arith.constant 0 : index
    %99 = vector.load %arg12[%c2_143, %c2_144, %c0_145] : memref<18x18x64xf32, #tpu.memory_space<vmem>>, vector<8x16x64xf32>
    %100 = vector.shape_cast %99 : vector<8x16x64xf32> to vector<128x64xf32>
    %c512_146 = arith.constant 512 : index
    %c0_147 = arith.constant 0 : index
    %101 = vector.load %arg4[%c512_146, %c0_147] : memref<576x64xf32, #tpu.memory_space<vmem>>, vector<64x64xf32>
    %cst_148 = arith.constant dense<0.000000e+00> : vector<128x64xf32>
    %102 = tpu.matmul %100, %101, %cst_148 {dimension_numbers = #tpu.dot_dimension_numbers<[1], [0], [0], [1], [0, 0, 1, 1], [], []>} : vector<128x64xf32>, vector<64x64xf32>, vector<128x64xf32> -> vector<128x64xf32>
    %103 = arith.addf %98, %102 : vector<128x64xf32>
    %104 = vector.shape_cast %103 : vector<128x64xf32> to vector<8x16x64xf32>
    %105 = vector.broadcast %15 : vector<1x1x64xf32> to vector<8x16x64xf32>
    %106 = arith.addf %104, %105 : vector<8x16x64xf32>
    %c1_149 = arith.constant 1 : index
    %c1_150 = arith.constant 1 : index
    %c0_151 = arith.constant 0 : index
    %107 = vector.load %arg11[%c1_149, %c1_150, %c0_151] : memref<18x18x64xf32, #tpu.memory_space<vmem>>, vector<8x16x64xf32>
    tpu.vector_store %arg11[%c1_149, %c1_150, %c0_151], %106 {strides = array<i32>} : memref<18x18x64xf32, #tpu.memory_space<vmem>>, vector<8x16x64xf32>,
    %cst_152 = arith.constant dense<0.000000e+00> : vector<64xf32>
    %108 = vector.multi_reduction <add>, %106, %cst_152 [0, 1] : vector<8x16x64xf32> to vector<64xf32>
    %109 = vector.shape_cast %108 : vector<64xf32> to vector<1x1x64xf32>
    %110 = vector.shape_cast %109 : vector<1x1x64xf32> to vector<1x64xf32>
    %111 = arith.addf %19, %110 : vector<1x64xf32>
    %cst_153 = arith.constant 0.000000e+00 : f32
    %112 = vector.broadcast %cst_153 : f32 to vector<128x64xf32>
    %c8_154 = arith.constant 8 : index
    %c0_155 = arith.constant 0 : index
    %c0_156 = arith.constant 0 : index
    %113 = vector.load %arg12[%c8_154, %c0_155, %c0_156] : memref<18x18x64xf32, #tpu.memory_space<vmem>>, vector<8x16x64xf32>
    %c8_157 = arith.constant 8 : index
    %c1_158 = arith.constant 1 : index
    %c0_159 = arith.constant 0 : index
    %114 = vector.load %arg12[%c8_157, %c1_158, %c0_159] : memref<18x18x64xf32, #tpu.memory_space<vmem>>, vector<8x16x64xf32>
    %c8_160 = arith.constant 8 : index
    %c2_161 = arith.constant 2 : index
    %c0_162 = arith.constant 0 : index
    %115 = vector.load %arg12[%c8_160, %c2_161, %c0_162] : memref<18x18x64xf32, #tpu.memory_space<vmem>>, vector<8x16x64xf32>
    %c9_163 = arith.constant 9 : index
    %c0_164 = arith.constant 0 : index
    %c0_165 = arith.constant 0 : index
    %116 = vector.load %arg12[%c9_163, %c0_164, %c0_165] : memref<18x18x64xf32, #tpu.memory_space<vmem>>, vector<8x16x64xf32>
    %117 = tpu.concatenate %113, %114, %115, %116 in 2 : vector<8x16x64xf32>, vector<8x16x64xf32>, vector<8x16x64xf32>, vector<8x16x64xf32> -> vector<8x16x256xf32>
    %118 = vector.shape_cast %117 : vector<8x16x256xf32> to vector<128x256xf32>
    %c0_166 = arith.constant 0 : index
    %c0_167 = arith.constant 0 : index
    %119 = vector.load %arg4[%c0_166, %c0_167] : memref<576x64xf32, #tpu.memory_space<vmem>>, vector<256x64xf32>
    %cst_168 = arith.constant dense<0.000000e+00> : vector<128x64xf32>
    %120 = tpu.matmul %118, %119, %cst_168 {dimension_numbers = #tpu.dot_dimension_numbers<[1], [0], [0], [1], [0, 0, 1, 1], [], []>} : vector<128x256xf32>, vector<256x64xf32>, vector<128x64xf32> -> vector<128x64xf32>
    %121 = arith.addf %112, %120 : vector<128x64xf32>
    %c9_169 = arith.constant 9 : index
    %c1_170 = arith.constant 1 : index
    %c0_171 = arith.constant 0 : index
    %122 = vector.load %arg12[%c9_169, %c1_170, %c0_171] : memref<18x18x64xf32, #tpu.memory_space<vmem>>, vector<8x16x64xf32>
    %c9_172 = arith.constant 9 : index
    %c2_173 = arith.constant 2 : index
    %c0_174 = arith.constant 0 : index
    %123 = vector.load %arg12[%c9_172, %c2_173, %c0_174] : memref<18x18x64xf32, #tpu.memory_space<vmem>>, vector<8x16x64xf32>
    %c10_175 = arith.constant 10 : index
    %c0_176 = arith.constant 0 : index
    %c0_177 = arith.constant 0 : index
    %124 = vector.load %arg12[%c10_175, %c0_176, %c0_177] : memref<18x18x64xf32, #tpu.memory_space<vmem>>, vector<8x16x64xf32>
    %c10_178 = arith.constant 10 : index
    %c1_179 = arith.constant 1 : index
    %c0_180 = arith.constant 0 : index
    %125 = vector.load %arg12[%c10_178, %c1_179, %c0_180] : memref<18x18x64xf32, #tpu.memory_space<vmem>>, vector<8x16x64xf32>
    %126 = tpu.concatenate %122, %123, %124, %125 in 2 : vector<8x16x64xf32>, vector<8x16x64xf32>, vector<8x16x64xf32>, vector<8x16x64xf32> -> vector<8x16x256xf32>
    %127 = vector.shape_cast %126 : vector<8x16x256xf32> to vector<128x256xf32>
    %c256_181 = arith.constant 256 : index
    %c0_182 = arith.constant 0 : index
    %128 = vector.load %arg4[%c256_181, %c0_182] : memref<576x64xf32, #tpu.memory_space<vmem>>, vector<256x64xf32>
    %cst_183 = arith.constant dense<0.000000e+00> : vector<128x64xf32>
    %129 = tpu.matmul %127, %128, %cst_183 {dimension_numbers = #tpu.dot_dimension_numbers<[1], [0], [0], [1], [0, 0, 1, 1], [], []>} : vector<128x256xf32>, vector<256x64xf32>, vector<128x64xf32> -> vector<128x64xf32>
    %130 = arith.addf %121, %129 : vector<128x64xf32>
    %c10_184 = arith.constant 10 : index
    %c2_185 = arith.constant 2 : index
    %c0_186 = arith.constant 0 : index
    %131 = vector.load %arg12[%c10_184, %c2_185, %c0_186] : memref<18x18x64xf32, #tpu.memory_space<vmem>>, vector<8x16x64xf32>
    %132 = vector.shape_cast %131 : vector<8x16x64xf32> to vector<128x64xf32>
    %c512_187 = arith.constant 512 : index
    %c0_188 = arith.constant 0 : index
    %133 = vector.load %arg4[%c512_187, %c0_188] : memref<576x64xf32, #tpu.memory_space<vmem>>, vector<64x64xf32>
    %cst_189 = arith.constant dense<0.000000e+00> : vector<128x64xf32>
    %134 = tpu.matmul %132, %133, %cst_189 {dimension_numbers = #tpu.dot_dimension_numbers<[1], [0], [0], [1], [0, 0, 1, 1], [], []>} : vector<128x64xf32>, vector<64x64xf32>, vector<128x64xf32> -> vector<128x64xf32>
    %135 = arith.addf %130, %134 : vector<128x64xf32>
    %136 = vector.shape_cast %135 : vector<128x64xf32> to vector<8x16x64xf32>
    %137 = vector.broadcast %15 : vector<1x1x64xf32> to vector<8x16x64xf32>
    %138 = arith.addf %136, %137 : vector<8x16x64xf32>
    %c9_190 = arith.constant 9 : index
    %c1_191 = arith.constant 1 : index
    %c0_192 = arith.constant 0 : index
    %139 = vector.load %arg11[%c9_190, %c1_191, %c0_192] : memref<18x18x64xf32, #tpu.memory_space<vmem>>, vector<8x16x64xf32>
    tpu.vector_store %arg11[%c9_190, %c1_191, %c0_192], %138 {strides = array<i32>} : memref<18x18x64xf32, #tpu.memory_space<vmem>>, vector<8x16x64xf32>,
    %cst_193 = arith.constant dense<0.000000e+00> : vector<64xf32>
    %140 = vector.multi_reduction <add>, %138, %cst_193 [0, 1] : vector<8x16x64xf32> to vector<64xf32>
    %141 = vector.shape_cast %140 : vector<64xf32> to vector<1x1x64xf32>
    %142 = vector.shape_cast %141 : vector<1x1x64xf32> to vector<1x64xf32>
    %143 = arith.addf %111, %142 : vector<1x64xf32>
    %cst_194 = arith.constant 3.906250e-03 : f32
    %144 = vector.broadcast %cst_194 : f32 to vector<1x64xf32>
    %145 = arith.mulf %143, %144 : vector<1x64xf32>
    %c0_195 = arith.constant 0 : index
    %c0_196 = arith.constant 0 : index
    %146 = vector.load %arg6[%c0_195, %c0_196] : memref<64x8xf32, #tpu.memory_space<vmem>>, vector<64x8xf32>
    %cst_197 = arith.constant dense<0.000000e+00> : vector<1x8xf32>
    %147 = tpu.matmul %145, %146, %cst_197 {dimension_numbers = #tpu.dot_dimension_numbers<[1], [0], [0], [1], [0, 0, 1, 1], [], []>} : vector<1x64xf32>, vector<64x8xf32>, vector<1x8xf32> -> vector<1x8xf32>
    %c0_198 = arith.constant 0 : index
    %c0_199 = arith.constant 0 : index
    %148 = vector.load %arg7[%c0_198, %c0_199] : memref<1x8xf32, #tpu.memory_space<vmem>>, vector<1x8xf32>
    %149 = arith.addf %147, %148 : vector<1x8xf32>
    %cst_200 = arith.constant 0.000000e+00 : f32
    %150 = vector.broadcast %cst_200 : f32 to vector<1x8xf32>
    %151 = arith.maximumf %149, %150 : vector<1x8xf32>
    %c0_201 = arith.constant 0 : index
    %c0_202 = arith.constant 0 : index
    %152 = vector.load %arg8[%c0_201, %c0_202] : memref<8x64xf32, #tpu.memory_space<vmem>>, vector<8x64xf32>
    %cst_203 = arith.constant dense<0.000000e+00> : vector<1x64xf32>
    %153 = tpu.matmul %151, %152, %cst_203 {dimension_numbers = #tpu.dot_dimension_numbers<[1], [0], [0], [1], [0, 0, 1, 1], [], []>} : vector<1x8xf32>, vector<8x64xf32>, vector<1x64xf32> -> vector<1x64xf32>
    %c0_204 = arith.constant 0 : index
    %c0_205 = arith.constant 0 : index
    %154 = vector.load %arg9[%c0_204, %c0_205] : memref<1x64xf32, #tpu.memory_space<vmem>>, vector<1x64xf32>
    %155 = arith.addf %153, %154 : vector<1x64xf32>
    %156 = arith.negf %155 : vector<1x64xf32>
    %157 = math.exp %156 : vector<1x64xf32>
    %cst_206 = arith.constant 1.000000e+00 : f32
    %158 = vector.broadcast %cst_206 : f32 to vector<1x64xf32>
    %159 = arith.addf %158, %157 : vector<1x64xf32>
    %160 = arith.divf %158, %159 : vector<1x64xf32>
    %161 = vector.shape_cast %160 : vector<1x64xf32> to vector<1x1x64xf32>
    %c1_207 = arith.constant 1 : index
    %c1_208 = arith.constant 1 : index
    %c0_209 = arith.constant 0 : index
    %162 = vector.load %arg11[%c1_207, %c1_208, %c0_209] : memref<18x18x64xf32, #tpu.memory_space<vmem>>, vector<8x16x64xf32>
    %163 = vector.broadcast %161 : vector<1x1x64xf32> to vector<8x16x64xf32>
    %164 = arith.mulf %162, %163 : vector<8x16x64xf32>
    %c0_210 = arith.constant 0 : index
    %c0_211 = arith.constant 0 : index
    %c0_212 = arith.constant 0 : index
    %c0_213 = arith.constant 0 : index
    %165 = vector.load %arg1[%c0_210, %c0_211, %c0_212, %c0_213] : memref<1x16x16x64xf32, #tpu.memory_space<vmem>>, vector<1x8x16x64xf32>
    %166 = vector.shape_cast %165 : vector<1x8x16x64xf32> to vector<8x16x64xf32>
    %167 = arith.addf %164, %166 : vector<8x16x64xf32>
    %c0_214 = arith.constant 0 : index
    %c0_215 = arith.constant 0 : index
    %c0_216 = arith.constant 0 : index
    %c0_217 = arith.constant 0 : index
    %168 = vector.load %arg10[%c0_214, %c0_215, %c0_216, %c0_217] : memref<1x16x16x64xf32, #tpu.memory_space<vmem>>, vector<1x8x16x64xf32>
    %169 = vector.shape_cast %168 : vector<1x8x16x64xf32> to vector<8x16x64xf32>
    %170 = vector.shape_cast %167 : vector<8x16x64xf32> to vector<1x8x16x64xf32>
    tpu.vector_store %arg10[%c0_214, %c0_215, %c0_216, %c0_217], %170 {strides = array<i32>} : memref<1x16x16x64xf32, #tpu.memory_space<vmem>>, vector<1x8x16x64xf32>,
    %c9_218 = arith.constant 9 : index
    %c1_219 = arith.constant 1 : index
    %c0_220 = arith.constant 0 : index
    %171 = vector.load %arg11[%c9_218, %c1_219, %c0_220] : memref<18x18x64xf32, #tpu.memory_space<vmem>>, vector<8x16x64xf32>
    %172 = vector.broadcast %161 : vector<1x1x64xf32> to vector<8x16x64xf32>
    %173 = arith.mulf %171, %172 : vector<8x16x64xf32>
    %c0_221 = arith.constant 0 : index
    %c8_222 = arith.constant 8 : index
    %c0_223 = arith.constant 0 : index
    %c0_224 = arith.constant 0 : index
    %174 = vector.load %arg1[%c0_221, %c8_222, %c0_223, %c0_224] : memref<1x16x16x64xf32, #tpu.memory_space<vmem>>, vector<1x8x16x64xf32>
    %175 = vector.shape_cast %174 : vector<1x8x16x64xf32> to vector<8x16x64xf32>
    %176 = arith.addf %173, %175 : vector<8x16x64xf32>
    %c0_225 = arith.constant 0 : index
    %c8_226 = arith.constant 8 : index
    %c0_227 = arith.constant 0 : index
    %c0_228 = arith.constant 0 : index
    %177 = vector.load %arg10[%c0_225, %c8_226, %c0_227, %c0_228] : memref<1x16x16x64xf32, #tpu.memory_space<vmem>>, vector<1x8x16x64xf32>
    %178 = vector.shape_cast %177 : vector<1x8x16x64xf32> to vector<8x16x64xf32>
    %179 = vector.shape_cast %176 : vector<8x16x64xf32> to vector<1x8x16x64xf32>
    tpu.vector_store %arg10[%c0_225, %c8_226, %c0_227, %c0_228], %179 {strides = array<i32>} : memref<1x16x16x64xf32, #tpu.memory_space<vmem>>, vector<1x8x16x64xf32>,
    return
  }
  func.func @transform_0(%arg0: i32) -> (i32, i32, i32, i32) {
    %c0_i32 = arith.constant 0 : i32
    %c0_i32_0 = arith.constant 0 : i32
    %c0_i32_1 = arith.constant 0 : i32
    %c0_i32_2 = arith.constant 0 : i32
    return %arg0, %c0_i32, %c0_i32_0, %c0_i32_1 : i32, i32, i32, i32
  }
  func.func @transform_1(%arg0: i32) -> (i32, i32) {
    %c0_i32 = arith.constant 0 : i32
    %c0_i32_0 = arith.constant 0 : i32
    %c0_i32_1 = arith.constant 0 : i32
    return %c0_i32, %c0_i32_0 : i32, i32
  }
  func.func @transform_2(%arg0: i32) -> (i32, i32) {
    %c0_i32 = arith.constant 0 : i32
    %c0_i32_0 = arith.constant 0 : i32
    %c0_i32_1 = arith.constant 0 : i32
    return %c0_i32, %c0_i32_0 : i32, i32
  }
  func.func @transform_3(%arg0: i32) -> (i32, i32) {
    %c0_i32 = arith.constant 0 : i32
    %c0_i32_0 = arith.constant 0 : i32
    %c0_i32_1 = arith.constant 0 : i32
    return %c0_i32, %c0_i32_0 : i32, i32
  }
  func.func @transform_4(%arg0: i32) -> (i32, i32) {
    %c0_i32 = arith.constant 0 : i32
    %c0_i32_0 = arith.constant 0 : i32
    %c0_i32_1 = arith.constant 0 : i32
    return %c0_i32, %c0_i32_0 : i32, i32
  }
  func.func @transform_5(%arg0: i32) -> (i32, i32) {
    %c0_i32 = arith.constant 0 : i32
    %c0_i32_0 = arith.constant 0 : i32
    %c0_i32_1 = arith.constant 0 : i32
    return %c0_i32, %c0_i32_0 : i32, i32
  }
  func.func @transform_6(%arg0: i32) -> (i32, i32) {
    %c0_i32 = arith.constant 0 : i32
    %c0_i32_0 = arith.constant 0 : i32
    %c0_i32_1 = arith.constant 0 : i32
    return %c0_i32, %c0_i32_0 : i32, i32
  }
  func.func @transform_7(%arg0: i32) -> (i32, i32) {
    %c0_i32 = arith.constant 0 : i32
    %c0_i32_0 = arith.constant 0 : i32
    %c0_i32_1 = arith.constant 0 : i32
    return %c0_i32, %c0_i32_0 : i32, i32
  }
  func.func @transform_8(%arg0: i32) -> (i32, i32) {
    %c0_i32 = arith.constant 0 : i32
    %c0_i32_0 = arith.constant 0 : i32
    %c0_i32_1 = arith.constant 0 : i32
    return %c0_i32, %c0_i32_0 : i32, i32
  }
  func.func @transform_9(%arg0: i32) -> (i32, i32, i32, i32) {
    %c0_i32 = arith.constant 0 : i32
    %c0_i32_0 = arith.constant 0 : i32
    %c0_i32_1 = arith.constant 0 : i32
    %c0_i32_2 = arith.constant 0 : i32
    return %arg0, %c0_i32, %c0_i32_0, %c0_i32_1 : i32, i32, i32, i32
  }
}

</mosaic_0001>

<llo_original>
// kernel: rcab_forward.1
$region0: #{rcab_forward.1}
  #allocation0 [shape = 'u32[]', space=smem, size = 0x4, offset = 0x4, fixed_abs, tag = 'smem constant byte address 0x4 - core index']
  #allocation1 [shape = 'u32[72,128]{1,0:T(1,128)}', space=vmem, size = 0x9000, scoped, tag = 'internal scratch']
  #allocation2 [shape = 'f32[18,18,64]{2,1,0:T(8,128)}', space=vmem, size = 0x36000, scoped, tag = 'scratch operand']
  #allocation3 [shape = 'f32[18,18,64]{2,1,0:T(8,128)}', space=vmem, size = 0x36000, scoped, tag = 'scratch operand']
  %s0 = inlined_call_operand.vmem [shape: f32[2,16,16,64], index: 0, kind: input, shape index: {}]
  %s1 = inlined_call_operand.vmem [shape: f32[576,64], index: 1, kind: input, shape index: {}]
  %s2 = inlined_call_operand.vmem [shape: f32[1,64], index: 2, kind: input, shape index: {}]
  %s3 = inlined_call_operand.vmem [shape: f32[576,64], index: 3, kind: input, shape index: {}]
  %s4 = inlined_call_operand.vmem [shape: f32[1,64], index: 4, kind: input, shape index: {}]
  %s5 = inlined_call_operand.vmem [shape: f32[64,8], index: 5, kind: input, shape index: {}]
  %s6 = inlined_call_operand.vmem [shape: f32[1,8], index: 6, kind: input, shape index: {}]
  %s7 = inlined_call_operand.vmem [shape: f32[8,64], index: 7, kind: input, shape index: {}]
  %s8 = inlined_call_operand.vmem [shape: f32[1,64], index: 8, kind: input, shape index: {}]
  %s9 = inlined_call_operand.hbm [shape: f32[2,16,16,64], index: 9, kind: output, shape index: {}]
  %s10 = sld [smem:[#allocation0]]
  $region69: #{rcab_forward.1} parent=0
    _
  %s12 = ssub.s32 1, %s10
  %s13 = scalar_select 0, %s12, %s10
  $region1: #{rcab_forward.1} parent=0
    #allocation4 [shape = 'u8[262144]{0}', space=vmem, size = 0x40000, scoped, tag = 'output window, operand 0']
    #allocation5 [shape = 's32[2]{0}', space=sflag, size = 0x8, scoped, tag = 'scoped memory for rcab_forward.1']
    %14 = vsyncpa [#allocation5], 0
    %s15 = scalar_lea.sflag [#allocation5], 1
    %16 = vsyncpa %s15, 0
    loop: start=0, step=1, limit=4
    $region2: #{rcab_forward.1} parent=1 // loop_pre_header
      _
    $region3: #{rcab_forward.1} parent=1 // loop_header
      %s18 = sphi 0, %s22
      %p19 = scmp.ge.s32.totalorder %s18, 4
      %s28 = sphi 0, %s30
      %s31 = sphi 0, %s28
      %s32 = sphi 0, %s31
      %s48 = sphi 0, %s32
      %s52 = sphi 0, %s52
      %s54 = sphi 0, %s52
      %s55 = sphi 0, %s54
      %s69 = sphi 0, %s55
      %s73 = sphi 0, %s73
      %s75 = sphi 0, %s73
      %s76 = sphi 0, %s75
      %s90 = sphi 0, %s76
      %s94 = sphi 0, %s94
      %s96 = sphi 0, %s94
      %s97 = sphi 0, %s96
      %s111 = sphi 0, %s97
      %s115 = sphi 0, %s115
      %s117 = sphi 0, %s115
      %s118 = sphi 0, %s117
      %s132 = sphi 0, %s118
      %s136 = sphi 0, %s136
      %s138 = sphi 0, %s136
      %s139 = sphi 0, %s138
      %s153 = sphi 0, %s139
      %s157 = sphi 0, %s157
      %s159 = sphi 0, %s157
      %s160 = sphi 0, %s159
      %s174 = sphi 0, %s160
      %s178 = sphi 0, %s178
      %s180 = sphi 0, %s178
      %s181 = sphi 0, %s180
      %s195 = sphi 0, %s181
      %s199 = sphi 0, %s199
      %s201 = sphi 0, %s199
      %s202 = sphi 0, %s201
      %s216 = sphi 0, %s202
      %s222 = sphi 0, %s224
      %s225 = sphi 0, %s222
      %s226 = sphi 0, %s225
      %s242 = sphi 0, %s226
    $region4: #{rcab_forward.1} parent=1 // loop_header_branch
      %21 = sbr.rel (%p19) target = $region8
    $region5: #{rcab_forward.1} parent=1 // loop_body
      %s23 = ssub.s32 %s18, 1
      %s24 = ssub.s32 %s18, 2
      %s25 = sadd.s32 %s18, 1
      %s26 = ssub.s32 %s18, %s25
      %p27 = scmp.eq.s32.totalorder %s26, 0
      %s29 = sadd.s32 %s28, 1
      %s30 = scalar_select %p27, %s28, %s29
      %p33 = pneg %p27
      %p34 = scmp.eq.s32.totalorder %s18, 1
      %p35 = por %p33, %p34
      %p36 = scmp.ne.s32.totalorder %s28, %s31
      %p37 = scmp.eq.s32.totalorder %s18, 0
      %p38 = por %p36, %p37
      %p39 = scmp.ne.s32.totalorder %s28, %s31
      %p40 = scmp.eq.s32.totalorder %s23, 1
      %p41 = por %p39, %p40
      %p42 = scmp.ne.s32.totalorder %s31, %s32
      %p43 = scmp.eq.s32.totalorder %s23, 0
      %p44 = por %p42, %p43
      %p45 = scmp.ne.s32.totalorder %s31, %s32
      %p46 = scmp.eq.s32.totalorder %s24, 1
      %p47 = por %p45, %p46
      %p49 = scmp.ne.s32.totalorder %s32, %s48
      %p50 = scmp.eq.s32.totalorder %s24, 0
      %p51 = por %p49, %p50
      %s53 = sadd.s32 %s52, 1
      %p56 = scmp.eq.s32.totalorder %s18, 1
      %p57 = scmp.ne.s32.totalorder %s52, %s54
      %p58 = scmp.eq.s32.totalorder %s18, 0
      %p59 = por %p57, %p58
      %p60 = scmp.ne.s32.totalorder %s52, %s54
      %p61 = scmp.eq.s32.totalorder %s23, 1
      %p62 = por %p60, %p61
      %p63 = scmp.ne.s32.totalorder %s54, %s55
      %p64 = scmp.eq.s32.totalorder %s23, 0
      %p65 = por %p63, %p64
      %p66 = scmp.ne.s32.totalorder %s54, %s55
      %p67 = scmp.eq.s32.totalorder %s24, 1
      %p68 = por %p66, %p67
      %p70 = scmp.ne.s32.totalorder %s55, %s69
      %p71 = scmp.eq.s32.totalorder %s24, 0
      %p72 = por %p70, %p71
      %s74 = sadd.s32 %s73, 1
      %p77 = scmp.eq.s32.totalorder %s18, 1
      %p78 = scmp.ne.s32.totalorder %s73, %s75
      %p79 = scmp.eq.s32.totalorder %s18, 0
      %p80 = por %p78, %p79
      %p81 = scmp.ne.s32.totalorder %s73, %s75
      %p82 = scmp.eq.s32.totalorder %s23, 1
      %p83 = por %p81, %p82
      %p84 = scmp.ne.s32.totalorder %s75, %s76
      %p85 = scmp.eq.s32.totalorder %s23, 0
      %p86 = por %p84, %p85
      %p87 = scmp.ne.s32.totalorder %s75, %s76
      %p88 = scmp.eq.s32.totalorder %s24, 1
      %p89 = por %p87, %p88
      %p91 = scmp.ne.s32.totalorder %s76, %s90
      %p92 = scmp.eq.s32.totalorder %s24, 0
      %p93 = por %p91, %p92
      %s95 = sadd.s32 %s94, 1
      %p98 = scmp.eq.s32.totalorder %s18, 1
      %p99 = scmp.ne.s32.totalorder %s94, %s96
      %p100 = scmp.eq.s32.totalorder %s18, 0
      %p101 = por %p99, %p100
      %p102 = scmp.ne.s32.totalorder %s94, %s96
      %p103 = scmp.eq.s32.totalorder %s23, 1
      %p104 = por %p102, %p103
      %p105 = scmp.ne.s32.totalorder %s96, %s97
      %p106 = scmp.eq.s32.totalorder %s23, 0
      %p107 = por %p105, %p106
      %p108 = scmp.ne.s32.totalorder %s96, %s97
      %p109 = scmp.eq.s32.totalorder %s24, 1
      %p110 = por %p108, %p109
      %p112 = scmp.ne.s32.totalorder %s97, %s111
      %p113 = scmp.eq.s32.totalorder %s24, 0
      %p114 = por %p112, %p113
      %s116 = sadd.s32 %s115, 1
      %p119 = scmp.eq.s32.totalorder %s18, 1
      %p120 = scmp.ne.s32.totalorder %s115, %s117
      %p121 = scmp.eq.s32.totalorder %s18, 0
      %p122 = por %p120, %p121
      %p123 = scmp.ne.s32.totalorder %s115, %s117
      %p124 = scmp.eq.s32.totalorder %s23, 1
      %p125 = por %p123, %p124
      %p126 = scmp.ne.s32.totalorder %s117, %s118
      %p127 = scmp.eq.s32.totalorder %s23, 0
      %p128 = por %p126, %p127
      %p129 = scmp.ne.s32.totalorder %s117, %s118
      %p130 = scmp.eq.s32.totalorder %s24, 1
      %p131 = por %p129, %p130
      %p133 = scmp.ne.s32.totalorder %s118, %s132
      %p134 = scmp.eq.s32.totalorder %s24, 0
      %p135 = por %p133, %p134
      %s137 = sadd.s32 %s136, 1
      %p140 = scmp.eq.s32.totalorder %s18, 1
      %p141 = scmp.ne.s32.totalorder %s136, %s138
      %p142 = scmp.eq.s32.totalorder %s18, 0
      %p143 = por %p141, %p142
      %p144 = scmp.ne.s32.totalorder %s136, %s138
      %p145 = scmp.eq.s32.totalorder %s23, 1
      %p146 = por %p144, %p145
      %p147 = scmp.ne.s32.totalorder %s138, %s139
      %p148 = scmp.eq.s32.totalorder %s23, 0
      %p149 = por %p147, %p148
      %p150 = scmp.ne.s32.totalorder %s138, %s139
      %p151 = scmp.eq.s32.totalorder %s24, 1
      %p152 = por %p150, %p151
      %p154 = scmp.ne.s32.totalorder %s139, %s153
      %p155 = scmp.eq.s32.totalorder %s24, 0
      %p156 = por %p154, %p155
      %s158 = sadd.s32 %s157, 1
      %p161 = scmp.eq.s32.totalorder %s18, 1
      %p162 = scmp.ne.s32.totalorder %s157, %s159
      %p163 = scmp.eq.s32.totalorder %s18, 0
      %p164 = por %p162, %p163
      %p165 = scmp.ne.s32.totalorder %s157, %s159
      %p166 = scmp.eq.s32.totalorder %s23, 1
      %p167 = por %p165, %p166
      %p168 = scmp.ne.s32.totalorder %s159, %s160
      %p169 = scmp.eq.s32.totalorder %s23, 0
      %p170 = por %p168, %p169
      %p171 = scmp.ne.s32.totalorder %s159, %s160
      %p172 = scmp.eq.s32.totalorder %s24, 1
      %p173 = por %p171, %p172
      %p175 = scmp.ne.s32.totalorder %s160, %s174
      %p176 = scmp.eq.s32.totalorder %s24, 0
      %p177 = por %p175, %p176
      %s179 = sadd.s32 %s178, 1
      %p182 = scmp.eq.s32.totalorder %s18, 1
      %p183 = scmp.ne.s32.totalorder %s178, %s180
      %p184 = scmp.eq.s32.totalorder %s18, 0
      %p185 = por %p183, %p184
      %p186 = scmp.ne.s32.totalorder %s178, %s180
      %p187 = scmp.eq.s32.totalorder %s23, 1
      %p188 = por %p186, %p187
      %p189 = scmp.ne.s32.totalorder %s180, %s181
      %p190 = scmp.eq.s32.totalorder %s23, 0
      %p191 = por %p189, %p190
      %p192 = scmp.ne.s32.totalorder %s180, %s181
      %p193 = scmp.eq.s32.totalorder %s24, 1
      %p194 = por %p192, %p193
      %p196 = scmp.ne.s32.totalorder %s181, %s195
      %p197 = scmp.eq.s32.totalorder %s24, 0
      %p198 = por %p196, %p197
      %s200 = sadd.s32 %s199, 1
      %p203 = scmp.eq.s32.totalorder %s18, 1
      %p204 = scmp.ne.s32.totalorder %s199, %s201
      %p205 = scmp.eq.s32.totalorder %s18, 0
      %p206 = por %p204, %p205
      %p207 = scmp.ne.s32.totalorder %s199, %s201
      %p208 = scmp.eq.s32.totalorder %s23, 1
      %p209 = por %p207, %p208
      %p210 = scmp.ne.s32.totalorder %s201, %s202
      %p211 = scmp.eq.s32.totalorder %s23, 0
      %p212 = por %p210, %p211
      %p213 = scmp.ne.s32.totalorder %s201, %s202
      %p214 = scmp.eq.s32.totalorder %s24, 1
      %p215 = por %p213, %p214
      %p217 = scmp.ne.s32.totalorder %s202, %s216
      %p218 = scmp.eq.s32.totalorder %s24, 0
      %p219 = por %p217, %p218
      %s220 = ssub.s32 %s18, %s25
      %p221 = scmp.eq.s32.totalorder %s220, 0
      %s223 = sadd.s32 %s222, 1
      %s224 = scalar_select %p221, %s222, %s223
      %p227 = pneg %p221
      %p228 = scmp.eq.s32.totalorder %s18, 1
      %p229 = por %p227, %p228
      %p230 = scmp.ne.s32.totalorder %s222, %s225
      %p231 = scmp.eq.s32.totalorder %s18, 0
      %p232 = por %p230, %p231
      %p233 = scmp.ne.s32.totalorder %s222, %s225
      %p234 = scmp.eq.s32.totalorder %s23, 1
      %p235 = por %p233, %p234
      %p236 = scmp.ne.s32.totalorder %s225, %s226
      %p237 = scmp.eq.s32.totalorder %s23, 0
      %p238 = por %p236, %p237
      %p239 = scmp.ne.s32.totalorder %s225, %s226
      %p240 = scmp.eq.s32.totalorder %s24, 1
      %p241 = por %p239, %p240
      %p243 = scmp.ne.s32.totalorder %s226, %s242
      %p244 = scmp.eq.s32.totalorder %s24, 0
      %p245 = por %p243, %p244
      %p246 = scmp.le.s32.totalorder 1, %s18
      %p247 = scmp.lt.s32.totalorder %s18, 3
      %p248 = pnand %p246, %p247
      %p249 = pneg %p248
      // Predicated region
      $region9: #{rcab_forward.1} parent=5 // pred_check
        _
      $region10: #{rcab_forward.1} parent=5 // pred_check_branch
        %251 = sbr.rel (%p248) target = $region12
      $region11: #{rcab_forward.1} parent=5 // pred_region
        %s252 = ssub.s32 %s18, 1
        // Predicated region
        $region13: #{rcab_forward.1} parent=11 // pred_check
          %p253 = pneg %p65
        $region14: #{rcab_forward.1} parent=11 // pred_check_branch
          %255 = sbr.rel (%p253) target = $region16
        $region15: #{rcab_forward.1} parent=11 // pred_region
          _
        $region16: #{rcab_forward.1} parent=11 // pred_fallthru
          _
        // Predicated region
        $region17: #{rcab_forward.1} parent=11 // pred_check
          %p256 = pneg %p86
        $region18: #{rcab_forward.1} parent=11 // pred_check_branch
          %258 = sbr.rel (%p256) target = $region20
        $region19: #{rcab_forward.1} parent=11 // pred_region
          _
        $region20: #{rcab_forward.1} parent=11 // pred_fallthru
          _
        // Predicated region
        $region21: #{rcab_forward.1} parent=11 // pred_check
          %p259 = pneg %p107
        $region22: #{rcab_forward.1} parent=11 // pred_check_branch
          %261 = sbr.rel (%p259) target = $region24
        $region23: #{rcab_forward.1} parent=11 // pred_region
          _
        $region24: #{rcab_forward.1} parent=11 // pred_fallthru
          _
        // Predicated region
        $region25: #{rcab_forward.1} parent=11 // pred_check
          %p262 = pneg %p128
        $region26: #{rcab_forward.1} parent=11 // pred_check_branch
          %264 = sbr.rel (%p262) target = $region28
        $region27: #{rcab_forward.1} parent=11 // pred_region
          _
        $region28: #{rcab_forward.1} parent=11 // pred_fallthru
          _
        // Predicated region
        $region29: #{rcab_forward.1} parent=11 // pred_check
          %p265 = pneg %p149
        $region30: #{rcab_forward.1} parent=11 // pred_check_branch
          %267 = sbr.rel (%p265) target = $region32
        $region31: #{rcab_forward.1} parent=11 // pred_region
          _
        $region32: #{rcab_forward.1} parent=11 // pred_fallthru
          _
        // Predicated region
        $region33: #{rcab_forward.1} parent=11 // pred_check
          %p268 = pneg %p170
        $region34: #{rcab_forward.1} parent=11 // pred_check_branch
          %270 = sbr.rel (%p268) target = $region36
        $region35: #{rcab_forward.1} parent=11 // pred_region
          _
        $region36: #{rcab_forward.1} parent=11 // pred_fallthru
          _
        // Predicated region
        $region37: #{rcab_forward.1} parent=11 // pred_check
          %p271 = pneg %p191
        $region38: #{rcab_forward.1} parent=11 // pred_check_branch
          %273 = sbr.rel (%p271) target = $region40
        $region39: #{rcab_forward.1} parent=11 // pred_region
          _
        $region40: #{rcab_forward.1} parent=11 // pred_fallthru
          _
        // Predicated region
        $region41: #{rcab_forward.1} parent=11 // pred_check
          %p274 = pneg %p212
        $region42: #{rcab_forward.1} parent=11 // pred_check_branch
          %276 = sbr.rel (%p274) target = $region44
        $region43: #{rcab_forward.1} parent=11 // pred_region
          _
        $region44: #{rcab_forward.1} parent=11 // pred_fallthru
          _
      $region12: #{rcab_forward.1} parent=5 // pred_fallthru
        _
      %p277 = scmp.lt.s32.totalorder %s18, 2
      // Predicated region
      $region45: #{rcab_forward.1} parent=5 // pred_check
        %p278 = pneg %p277
      $region46: #{rcab_forward.1} parent=5 // pred_check_branch
        %280 = sbr.rel (%p278) target = $region48
      $region47: #{rcab_forward.1} parent=5 // pred_region
        // Predicated region
        $region49: #{rcab_forward.1} parent=47 // pred_check
          %p281 = pneg %p38
        $region50: #{rcab_forward.1} parent=47 // pred_check_branch
          %283 = sbr.rel (%p281) target = $region52
        $region51: #{rcab_forward.1} parent=47 // pred_region
          %p284 = scmp.lt.s32.totalorder %s18, 1
          %s285 = scalar_select %p284, %s18, 1
          %s286 = smul.addr %s285, 32
          %s287 = smul.addr %s286, 8
          %s288 = scalar_lea.vmem %s0, %s287
        $region52: #{rcab_forward.1} parent=47 // pred_fallthru
          _
      $region48: #{rcab_forward.1} parent=5 // pred_fallthru
        _
      %p289 = scmp.le.s32.totalorder 1, %s18
      %p290 = scmp.lt.s32.totalorder %s18, 3
      %p291 = pnand %p289, %p290
      %p292 = pneg %p291
      // Predicated region
      $region53: #{rcab_forward.1} parent=5 // pred_check
        _
      $region54: #{rcab_forward.1} parent=5 // pred_check_branch
        %294 = sbr.rel (%p291) target = $region56
      $region55: #{rcab_forward.1} parent=5 // pred_region
        %s295 = ssub.s32 %s18, 1
        %p296 = scmp.lt.s32.totalorder %s23, 1
        %s297 = scalar_select %p296, %s23, 1
        %s298 = smul.addr %s297, 32
        %s299 = smul.addr %s298, 8
        %s300 = scalar_lea.vmem %s0, %s299
        %p301 = pneg %p44
        %p302 = pneg %p41
        %p303 = pneg %p65
        %p304 = pneg %p62
        %p305 = pneg %p86
        %p306 = pneg %p83
        %p307 = pneg %p107
        %p308 = pneg %p104
        %p309 = pneg %p128
        %p310 = pneg %p125
        %p311 = pneg %p149
        %p312 = pneg %p146
        %p313 = pneg %p170
        %p314 = pneg %p167
        %p315 = pneg %p191
        %p316 = pneg %p188
        %p317 = pneg %p212
        %p318 = pneg %p209
        %p319 = pneg %p238
        %p320 = pneg %p235
        %s321 = sand.u32 %s225, 1
        %s322 = scalar_lea.sflag [#allocation5], %s321
        %s323 = sand.u32 %s225, 1
        %s324 = smul.addr %s323, 256
        %s325 = scalar_lea.vmem [#allocation4], %s324
        %p326 = scmp.lt.s32.totalorder %s23, 1
        %s327 = scalar_select %p326, %s23, 1
        %s328 = smul.addr %s327, 32
        %s329 = smul.addr %s328, 8
        %s330 = scalar_lea.vmem %s0, %s329
        %vm331 = vcmask 523264
        %332 = vst.msk [vmem:[#allocation2] sm:$0xff] %vm331, 0.0
        %333 = vst.msk [vmem:[#allocation2 + $0x8] sm:$0xff] %vm331, 0.0
        %vm334 = vcmask 517120
        %335 = vst.msk [vmem:[#allocation2 + $0x10] sm:$0x3] %vm334, 0.0
        %s336 = scalar_lea.vmem [#allocation2], 408
        %337 = vst.msk [vmem:[%s336] sm:$0xff] %vm331, 0.0
        %338 = vst.msk [vmem:[%s336 + $0x8] sm:$0xff] %vm331, 0.0
        %339 = vst.msk [vmem:[%s336 + $0x10] sm:$0x3] %vm334, 0.0
        %vm340 = vcmask 516096
        %341 = vst.msk [vmem:[#allocation2] sm:$0x1] %vm340, 0.0
        %342 = vst.msk [vmem:[#allocation2 + $0x18] sm:$0x1] %vm340, 0.0
        %343 = vst.msk [vmem:[#allocation2 + $0x30] sm:$0x1] %vm340, 0.0
        %344 = vst.msk [vmem:[#allocation2 + $0x48] sm:$0x1] %vm340, 0.0
        %345 = vst.msk [vmem:[#allocation2 + $0x60] sm:$0x1] %vm340, 0.0
        %346 = vst.msk [vmem:[#allocation2 + $0x78] sm:$0x1] %vm340, 0.0
        %347 = vst.msk [vmem:[#allocation2 + $0x90] sm:$0x1] %vm340, 0.0
        %348 = vst.msk [vmem:[#allocation2 + $0xa8] sm:$0x1] %vm340, 0.0
        %349 = vst.msk [vmem:[#allocation2 + $0xc0] sm:$0x1] %vm340, 0.0
        %350 = vst.msk [vmem:[#allocation2 + $0xd8] sm:$0x1] %vm340, 0.0
        %351 = vst.msk [vmem:[#allocation2 + $0xf0] sm:$0x1] %vm340, 0.0
        %352 = vst.msk [vmem:[#allocation2 + $0x108] sm:$0x1] %vm340, 0.0
        %353 = vst.msk [vmem:[#allocation2 + $0x120] sm:$0x1] %vm340, 0.0
        %354 = vst.msk [vmem:[#allocation2 + $0x138] sm:$0x1] %vm340, 0.0
        %355 = vst.msk [vmem:[#allocation2 + $0x150] sm:$0x1] %vm340, 0.0
        %356 = vst.msk [vmem:[#allocation2 + $0x168] sm:$0x1] %vm340, 0.0
        %357 = vst.msk [vmem:[#allocation2 + $0x180] sm:$0x1] %vm340, 0.0
        %358 = vst.msk [vmem:[#allocation2 + $0x198] sm:$0x1] %vm340, 0.0
        %359 = vst.msk [vmem:[#allocation2 + $0x11] sm:$0x1] %vm340, 0.0
        %360 = vst.msk [vmem:[#allocation2 + $0x29] sm:$0x1] %vm340, 0.0
        %361 = vst.msk [vmem:[#allocation2 + $0x41] sm:$0x1] %vm340, 0.0
        %362 = vst.msk [vmem:[#allocation2 + $0x59] sm:$0x1] %vm340, 0.0
        %363 = vst.msk [vmem:[#allocation2 + $0x71] sm:$0x1] %vm340, 0.0
        %364 = vst.msk [vmem:[#allocation2 + $0x89] sm:$0x1] %vm340, 0.0
        %365 = vst.msk [vmem:[#allocation2 + $0xa1] sm:$0x1] %vm340, 0.0
        %366 = vst.msk [vmem:[#allocation2 + $0xb9] sm:$0x1] %vm340, 0.0
        %367 = vst.msk [vmem:[#allocation2 + $0xd1] sm:$0x1] %vm340, 0.0
        %368 = vst.msk [vmem:[#allocation2 + $0xe9] sm:$0x1] %vm340, 0.0
        %369 = vst.msk [vmem:[#allocation2 + $0x101] sm:$0x1] %vm340, 0.0
        %370 = vst.msk [vmem:[#allocation2 + $0x119] sm:$0x1] %vm340, 0.0
        %371 = vst.msk [vmem:[#allocation2 + $0x131] sm:$0x1] %vm340, 0.0
        %372 = vst.msk [vmem:[#allocation2 + $0x149] sm:$0x1] %vm340, 0.0
        %373 = vst.msk [vmem:[#allocation2 + $0x161] sm:$0x1] %vm340, 0.0
        %374 = vst.msk [vmem:[#allocation2 + $0x179] sm:$0x1] %vm340, 0.0
        %375 = vst.msk [vmem:[#allocation2 + $0x191] sm:$0x1] %vm340, 0.0
        %376 = vst.msk [vmem:[#allocation2 + $0x1a9] sm:$0x1] %vm340, 0.0
        %377 = vst.msk [vmem:[#allocation3] sm:$0xff] %vm331, 0.0
        %378 = vst.msk [vmem:[#allocation3 + $0x8] sm:$0xff] %vm331, 0.0
        %379 = vst.msk [vmem:[#allocation3 + $0x10] sm:$0x3] %vm334, 0.0
        %s380 = scalar_lea.vmem [#allocation3], 408
        %381 = vst.msk [vmem:[%s380] sm:$0xff] %vm331, 0.0
        %382 = vst.msk [vmem:[%s380 + $0x8] sm:$0xff] %vm331, 0.0
        %383 = vst.msk [vmem:[%s380 + $0x10] sm:$0x3] %vm334, 0.0
        %384 = vst.msk [vmem:[#allocation3] sm:$0x1] %vm340, 0.0
        %385 = vst.msk [vmem:[#allocation3 + $0x18] sm:$0x1] %vm340, 0.0
        %386 = vst.msk [vmem:[#allocation3 + $0x30] sm:$0x1] %vm340, 0.0
        %387 = vst.msk [vmem:[#allocation3 + $0x48] sm:$0x1] %vm340, 0.0
        %388 = vst.msk [vmem:[#allocation3 + $0x60] sm:$0x1] %vm340, 0.0
        %389 = vst.msk [vmem:[#allocation3 + $0x78] sm:$0x1] %vm340, 0.0
        %390 = vst.msk [vmem:[#allocation3 + $0x90] sm:$0x1] %vm340, 0.0
        %391 = vst.msk [vmem:[#allocation3 + $0xa8] sm:$0x1] %vm340, 0.0
        %392 = vst.msk [vmem:[#allocation3 + $0xc0] sm:$0x1] %vm340, 0.0
        %393 = vst.msk [vmem:[#allocation3 + $0xd8] sm:$0x1] %vm340, 0.0
        %394 = vst.msk [vmem:[#allocation3 + $0xf0] sm:$0x1] %vm340, 0.0
        %395 = vst.msk [vmem:[#allocation3 + $0x108] sm:$0x1] %vm340, 0.0
        %396 = vst.msk [vmem:[#allocation3 + $0x120] sm:$0x1] %vm340, 0.0
        %397 = vst.msk [vmem:[#allocation3 + $0x138] sm:$0x1] %vm340, 0.0
        %398 = vst.msk [vmem:[#allocation3 + $0x150] sm:$0x1] %vm340, 0.0
        %399 = vst.msk [vmem:[#allocation3 + $0x168] sm:$0x1] %vm340, 0.0
        %400 = vst.msk [vmem:[#allocation3 + $0x180] sm:$0x1] %vm340, 0.0
        %401 = vst.msk [vmem:[#allocation3 + $0x198] sm:$0x1] %vm340, 0.0
        %402 = vst.msk [vmem:[#allocation3 + $0x11] sm:$0x1] %vm340, 0.0
        %403 = vst.msk [vmem:[#allocation3 + $0x29] sm:$0x1] %vm340, 0.0
        %404 = vst.msk [vmem:[#allocation3 + $0x41] sm:$0x1] %vm340, 0.0
        %405 = vst.msk [vmem:[#allocation3 + $0x59] sm:$0x1] %vm340, 0.0
        %406 = vst.msk [vmem:[#allocation3 + $0x71] sm:$0x1] %vm340, 0.0
        %407 = vst.msk [vmem:[#allocation3 + $0x89] sm:$0x1] %vm340, 0.0
        %408 = vst.msk [vmem:[#allocation3 + $0xa1] sm:$0x1] %vm340, 0.0
        %409 = vst.msk [vmem:[#allocation3 + $0xb9] sm:$0x1] %vm340, 0.0
        %410 = vst.msk [vmem:[#allocation3 + $0xd1] sm:$0x1] %vm340, 0.0
        %411 = vst.msk [vmem:[#allocation3 + $0xe9] sm:$0x1] %vm340, 0.0
        %412 = vst.msk [vmem:[#allocation3 + $0x101] sm:$0x1] %vm340, 0.0
        %413 = vst.msk [vmem:[#allocation3 + $0x119] sm:$0x1] %vm340, 0.0
        %414 = vst.msk [vmem:[#allocation3 + $0x131] sm:$0x1] %vm340, 0.0
        %415 = vst.msk [vmem:[#allocation3 + $0x149] sm:$0x1] %vm340, 0.0
        %416 = vst.msk [vmem:[#allocation3 + $0x161] sm:$0x1] %vm340, 0.0
        %417 = vst.msk [vmem:[#allocation3 + $0x179] sm:$0x1] %vm340, 0.0
        %418 = vst.msk [vmem:[#allocation3 + $0x191] sm:$0x1] %vm340, 0.0
        %419 = vst.msk [vmem:[#allocation3 + $0x1a9] sm:$0x1] %vm340, 0.0
        %v420 = vld [vmem:[%s2] sm:$0x1]
        %v421 = vld [vmem:[%s4] sm:$0x1]
        %v422 = vld [vmem:[%s330] sm:$0xff]
        %v423 = vld [vmem:[%s330 + $0x8] sm:$0xff]
        %v424 = vld [vmem:[%s330 + $0x10] sm:$0xff]
        %v425 = vld [vmem:[%s330 + $0x18] sm:$0xff]
        %v426 = vld [vmem:[%s330 + $0x20] sm:$0xff]
        %v427 = vld [vmem:[%s330 + $0x28] sm:$0xff]
        %v428 = vld [vmem:[%s330 + $0x30] sm:$0xff]
        %v429 = vld [vmem:[%s330 + $0x38] sm:$0xff]
        %v430 = vld [vmem:[%s330 + $0x40] sm:$0xff]
        %v431 = vld [vmem:[%s330 + $0x48] sm:$0xff]
        %v432 = vld [vmem:[%s330 + $0x50] sm:$0xff]
        %v433 = vld [vmem:[%s330 + $0x58] sm:$0xff]
        %v434 = vld [vmem:[%s330 + $0x60] sm:$0xff]
        %v435 = vld [vmem:[%s330 + $0x68] sm:$0xff]
        %v436 = vld [vmem:[%s330 + $0x70] sm:$0xff]
        %v437 = vld [vmem:[%s330 + $0x78] sm:$0xff]
        %v438 = vld [vmem:[%s330 + $0x80] sm:$0xff]
        %v439 = vld [vmem:[%s330 + $0x88] sm:$0xff]
        %v440 = vld [vmem:[%s330 + $0x90] sm:$0xff]
        %v441 = vld [vmem:[%s330 + $0x98] sm:$0xff]
        %v442 = vld [vmem:[%s330 + $0xa0] sm:$0xff]
        %v443 = vld [vmem:[%s330 + $0xa8] sm:$0xff]
        %v444 = vld [vmem:[%s330 + $0xb0] sm:$0xff]
        %v445 = vld [vmem:[%s330 + $0xb8] sm:$0xff]
        %v446 = vld [vmem:[%s330 + $0xc0] sm:$0xff]
        %v447 = vld [vmem:[%s330 + $0xc8] sm:$0xff]
        %v448 = vld [vmem:[%s330 + $0xd0] sm:$0xff]
        %v449 = vld [vmem:[%s330 + $0xd8] sm:$0xff]
        %v450 = vld [vmem:[%s330 + $0xe0] sm:$0xff]
        %v451 = vld [vmem:[%s330 + $0xe8] sm:$0xff]
        %v452 = vld [vmem:[%s330 + $0xf0] sm:$0xff]
        %v453 = vld [vmem:[%s330 + $0xf8] sm:$0xff]
        %s454 = scalar_lea.vmem [#allocation2], 24
        %455 = vst.msk [vmem:[%s454 + $0x1] sm:$0xff] %vm331, %v422
        %456 = vst.msk [vmem:[%s454 + $0x9] sm:$0xff] %vm331, %v423
        %457 = vst.msk [vmem:[%s454 + $0x19] sm:$0xff] %vm331, %v424
        %458 = vst.msk [vmem:[%s454 + $0x21] sm:$0xff] %vm331, %v425
        %459 = vst.msk [vmem:[%s454 + $0x31] sm:$0xff] %vm331, %v426
        %460 = vst.msk [vmem:[%s454 + $0x39] sm:$0xff] %vm331, %v427
        %461 = vst.msk [vmem:[%s454 + $0x49] sm:$0xff] %vm331, %v428
        %462 = vst.msk [vmem:[%s454 + $0x51] sm:$0xff] %vm331, %v429
        %463 = vst.msk [vmem:[%s454 + $0x61] sm:$0xff] %vm331, %v430
        %464 = vst.msk [vmem:[%s454 + $0x69] sm:$0xff] %vm331, %v431
        %465 = vst.msk [vmem:[%s454 + $0x79] sm:$0xff] %vm331, %v432
        %466 = vst.msk [vmem:[%s454 + $0x81] sm:$0xff] %vm331, %v433
        %467 = vst.msk [vmem:[%s454 + $0x91] sm:$0xff] %vm331, %v434
        %468 = vst.msk [vmem:[%s454 + $0x99] sm:$0xff] %vm331, %v435
        %469 = vst.msk [vmem:[%s454 + $0xa9] sm:$0xff] %vm331, %v436
        %470 = vst.msk [vmem:[%s454 + $0xb1] sm:$0xff] %vm331, %v437
        %471 = vst.msk [vmem:[%s454 + $0xc1] sm:$0xff] %vm331, %v438
        %472 = vst.msk [vmem:[%s454 + $0xc9] sm:$0xff] %vm331, %v439
        %473 = vst.msk [vmem:[%s454 + $0xd9] sm:$0xff] %vm331, %v440
        %474 = vst.msk [vmem:[%s454 + $0xe1] sm:$0xff] %vm331, %v441
        %475 = vst.msk [vmem:[%s454 + $0xf1] sm:$0xff] %vm331, %v442
        %476 = vst.msk [vmem:[%s454 + $0xf9] sm:$0xff] %vm331, %v443
        %477 = vst.msk [vmem:[%s454 + $0x109] sm:$0xff] %vm331, %v444
        %478 = vst.msk [vmem:[%s454 + $0x111] sm:$0xff] %vm331, %v445
        %479 = vst.msk [vmem:[%s454 + $0x121] sm:$0xff] %vm331, %v446
        %480 = vst.msk [vmem:[%s454 + $0x129] sm:$0xff] %vm331, %v447
        %481 = vst.msk [vmem:[%s454 + $0x139] sm:$0xff] %vm331, %v448
        %482 = vst.msk [vmem:[%s454 + $0x141] sm:$0xff] %vm331, %v449
        %483 = vst.msk [vmem:[%s454 + $0x151] sm:$0xff] %vm331, %v450
        %484 = vst.msk [vmem:[%s454 + $0x159] sm:$0xff] %vm331, %v451
        %485 = vst.msk [vmem:[%s454 + $0x169] sm:$0xff] %vm331, %v452
        %486 = vst.msk [vmem:[%s454 + $0x171] sm:$0xff] %vm331, %v453
        %v487 = vld [vmem:[#allocation2] sm:$0xff]
        %v488 = vld [vmem:[#allocation2 + $0x8] sm:$0xff]
        %v489 = vld [vmem:[#allocation2 + $0x18] sm:$0xff]
        %v490 = vld [vmem:[#allocation2 + $0x20] sm:$0xff]
        %v491 = vld [vmem:[#allocation2 + $0x30] sm:$0xff]
        %v492 = vld [vmem:[#allocation2 + $0x38] sm:$0xff]
        %v493 = vld [vmem:[#allocation2 + $0x48] sm:$0xff]
        %v494 = vld [vmem:[#allocation2 + $0x50] sm:$0xff]
        %v495 = vld [vmem:[#allocation2 + $0x60] sm:$0xff]
        %v496 = vld [vmem:[#allocation2 + $0x68] sm:$0xff]
        %v497 = vld [vmem:[#allocation2 + $0x78] sm:$0xff]
        %v498 = vld [vmem:[#allocation2 + $0x80] sm:$0xff]
        %v499 = vld [vmem:[#allocation2 + $0x90] sm:$0xff]
        %v500 = vld [vmem:[#allocation2 + $0x98] sm:$0xff]
        %v501 = vld [vmem:[#allocation2 + $0xa8] sm:$0xff]
        %v502 = vld [vmem:[#allocation2 + $0xb0] sm:$0xff]
        %v503 = vld [vmem:[#allocation2 + $0x1] sm:$0xff]
        %v504 = vld [vmem:[#allocation2 + $0x9] sm:$0xff]
        %v505 = vld [vmem:[#allocation2 + $0x19] sm:$0xff]
        %v506 = vld [vmem:[#allocation2 + $0x21] sm:$0xff]
        %v507 = vld [vmem:[#allocation2 + $0x31] sm:$0xff]
        %v508 = vld [vmem:[#allocation2 + $0x39] sm:$0xff]
        %v509 = vld [vmem:[#allocation2 + $0x49] sm:$0xff]
        %v510 = vld [vmem:[#allocation2 + $0x51] sm:$0xff]
        %v511 = vld [vmem:[#allocation2 + $0x61] sm:$0xff]
        %v512 = vld [vmem:[#allocation2 + $0x69] sm:$0xff]
        %v513 = vld [vmem:[#allocation2 + $0x79] sm:$0xff]
        %v514 = vld [vmem:[#allocation2 + $0x81] sm:$0xff]
        %v515 = vld [vmem:[#allocation2 + $0x91] sm:$0xff]
        %v516 = vld [vmem:[#allocation2 + $0x99] sm:$0xff]
        %v517 = vld [vmem:[#allocation2 + $0xa9] sm:$0xff]
        %v518 = vld [vmem:[#allocation2 + $0xb1] sm:$0xff]
        %v519 = vld [vmem:[#allocation2 + $0x2] sm:$0xff]
        %v520 = vld [vmem:[#allocation2 + $0xa] sm:$0xff]
        %v521 = vld [vmem:[#allocation2 + $0x1a] sm:$0xff]
        %v522 = vld [vmem:[#allocation2 + $0x22] sm:$0xff]
        %v523 = vld [vmem:[#allocation2 + $0x32] sm:$0xff]
        %v524 = vld [vmem:[#allocation2 + $0x3a] sm:$0xff]
        %v525 = vld [vmem:[#allocation2 + $0x4a] sm:$0xff]
        %v526 = vld [vmem:[#allocation2 + $0x52] sm:$0xff]
        %v527 = vld [vmem:[#allocation2 + $0x62] sm:$0xff]
        %v528 = vld [vmem:[#allocation2 + $0x6a] sm:$0xff]
        %v529 = vld [vmem:[#allocation2 + $0x7a] sm:$0xff]
        %v530 = vld [vmem:[#allocation2 + $0x82] sm:$0xff]
        %v531 = vld [vmem:[#allocation2 + $0x92] sm:$0xff]
        %v532 = vld [vmem:[#allocation2 + $0x9a] sm:$0xff]
        %v533 = vld [vmem:[#allocation2 + $0xaa] sm:$0xff]
        %v534 = vld [vmem:[#allocation2 + $0xb2] sm:$0xff]
        %v535 = vld [vmem:[%s454] sm:$0xff]
        %v536 = vld [vmem:[%s454 + $0x8] sm:$0xff]
        %v537 = vld [vmem:[%s454 + $0x18] sm:$0xff]
        %v538 = vld [vmem:[%s454 + $0x20] sm:$0xff]
        %v539 = vld [vmem:[%s454 + $0x30] sm:$0xff]
        %v540 = vld [vmem:[%s454 + $0x38] sm:$0xff]
        %v541 = vld [vmem:[%s454 + $0x48] sm:$0xff]
        %v542 = vld [vmem:[%s454 + $0x50] sm:$0xff]
        %v543 = vld [vmem:[%s454 + $0x60] sm:$0xff]
        %v544 = vld [vmem:[%s454 + $0x68] sm:$0xff]
        %v545 = vld [vmem:[%s454 + $0x78] sm:$0xff]
        %v546 = vld [vmem:[%s454 + $0x80] sm:$0xff]
        %v547 = vld [vmem:[%s454 + $0x90] sm:$0xff]
        %v548 = vld [vmem:[%s454 + $0x98] sm:$0xff]
        %v549 = vld [vmem:[%s454 + $0xa8] sm:$0xff]
        %v550 = vld [vmem:[%s454 + $0xb0] sm:$0xff]
        %567 = vrot.lane.b32.xlu0 %v503, 64
        %v568 = vpop.permute.xlu0 %567
        %569 = vrot.lane.b32.xlu0 %v504, 64
        %v570 = vpop.permute.xlu0 %569
        %571 = vrot.lane.b32.xlu0 %v505, 64
        %v572 = vpop.permute.xlu0 %571
        %573 = vrot.lane.b32.xlu0 %v506, 64
        %v574 = vpop.permute.xlu0 %573
        %575 = vrot.lane.b32.xlu0 %v507, 64
        %v576 = vpop.permute.xlu0 %575
        %577 = vrot.lane.b32.xlu0 %v508, 64
        %v578 = vpop.permute.xlu0 %577
        %579 = vrot.lane.b32.xlu0 %v509, 64
        %v580 = vpop.permute.xlu0 %579
        %581 = vrot.lane.b32.xlu0 %v510, 64
        %v582 = vpop.permute.xlu0 %581
        %583 = vrot.lane.b32.xlu0 %v511, 64
        %v584 = vpop.permute.xlu0 %583
        %585 = vrot.lane.b32.xlu0 %v512, 64
        %v586 = vpop.permute.xlu0 %585
        %587 = vrot.lane.b32.xlu0 %v513, 64
        %v588 = vpop.permute.xlu0 %587
        %589 = vrot.lane.b32.xlu0 %v514, 64
        %v590 = vpop.permute.xlu0 %589
        %591 = vrot.lane.b32.xlu0 %v515, 64
        %v592 = vpop.permute.xlu0 %591
        %593 = vrot.lane.b32.xlu0 %v516, 64
        %v594 = vpop.permute.xlu0 %593
        %595 = vrot.lane.b32.xlu0 %v517, 64
        %v596 = vpop.permute.xlu0 %595
        %597 = vrot.lane.b32.xlu0 %v518, 64
        %v598 = vpop.permute.xlu0 %597
        %631 = vrot.lane.b32.xlu0 %v535, 64
        %v632 = vpop.permute.xlu0 %631
        %633 = vrot.lane.b32.xlu0 %v536, 64
        %v634 = vpop.permute.xlu0 %633
        %635 = vrot.lane.b32.xlu0 %v537, 64
        %v636 = vpop.permute.xlu0 %635
        %637 = vrot.lane.b32.xlu0 %v538, 64
        %v638 = vpop.permute.xlu0 %637
        %639 = vrot.lane.b32.xlu0 %v539, 64
        %v640 = vpop.permute.xlu0 %639
        %641 = vrot.lane.b32.xlu0 %v540, 64
        %v642 = vpop.permute.xlu0 %641
        %643 = vrot.lane.b32.xlu0 %v541, 64
        %v644 = vpop.permute.xlu0 %643
        %645 = vrot.lane.b32.xlu0 %v542, 64
        %v646 = vpop.permute.xlu0 %645
        %647 = vrot.lane.b32.xlu0 %v543, 64
        %v648 = vpop.permute.xlu0 %647
        %649 = vrot.lane.b32.xlu0 %v544, 64
        %v650 = vpop.permute.xlu0 %649
        %651 = vrot.lane.b32.xlu0 %v545, 64
        %v652 = vpop.permute.xlu0 %651
        %653 = vrot.lane.b32.xlu0 %v546, 64
        %v654 = vpop.permute.xlu0 %653
        %655 = vrot.lane.b32.xlu0 %v547, 64
        %v656 = vpop.permute.xlu0 %655
        %657 = vrot.lane.b32.xlu0 %v548, 64
        %v658 = vpop.permute.xlu0 %657
        %659 = vrot.lane.b32.xlu0 %v549, 64
        %v660 = vpop.permute.xlu0 %659
        %661 = vrot.lane.b32.xlu0 %v550, 64
        %v662 = vpop.permute.xlu0 %661
        %v679 = vsel %vm331, %v487, %v568
        %v680 = vsel %vm331, %v488, %v570
        %v681 = vsel %vm331, %v489, %v572
        %v682 = vsel %vm331, %v490, %v574
        %v683 = vsel %vm331, %v491, %v576
        %v684 = vsel %vm331, %v492, %v578
        %v685 = vsel %vm331, %v493, %v580
        %v686 = vsel %vm331, %v494, %v582
        %v687 = vsel %vm331, %v495, %v584
        %v688 = vsel %vm331, %v496, %v586
        %v689 = vsel %vm331, %v497, %v588
        %v690 = vsel %vm331, %v498, %v590
        %v691 = vsel %vm331, %v499, %v592
        %v692 = vsel %vm331, %v500, %v594
        %v693 = vsel %vm331, %v501, %v596
        %v694 = vsel %vm331, %v502, %v598
        %v695 = vsel %vm331, %v519, %v632
        %v696 = vsel %vm331, %v520, %v634
        %v697 = vsel %vm331, %v521, %v636
        %v698 = vsel %vm331, %v522, %v638
        %v699 = vsel %vm331, %v523, %v640
        %v700 = vsel %vm331, %v524, %v642
        %v701 = vsel %vm331, %v525, %v644
        %v702 = vsel %vm331, %v526, %v646
        %v703 = vsel %vm331, %v527, %v648
        %v704 = vsel %vm331, %v528, %v650
        %v705 = vsel %vm331, %v529, %v652
        %v706 = vsel %vm331, %v530, %v654
        %v707 = vsel %vm331, %v531, %v656
        %v708 = vsel %vm331, %v532, %v658
        %v709 = vsel %vm331, %v533, %v660
        %v710 = vsel %vm331, %v534, %v662
        %v711 = vld [vmem:[%s1] sm:$0xff]
        %v712 = vld [vmem:[%s1 + $0x8] sm:$0xff]
        %v713 = vld [vmem:[%s1 + $0x10] sm:$0xff]
        %v714 = vld [vmem:[%s1 + $0x18] sm:$0xff]
        %v715 = vld [vmem:[%s1 + $0x20] sm:$0xff]
        %v716 = vld [vmem:[%s1 + $0x28] sm:$0xff]
        %v717 = vld [vmem:[%s1 + $0x30] sm:$0xff]
        %v718 = vld [vmem:[%s1 + $0x38] sm:$0xff]
        %v719 = vld [vmem:[%s1 + $0x40] sm:$0xff]
        %v720 = vld [vmem:[%s1 + $0x48] sm:$0xff]
        %v721 = vld [vmem:[%s1 + $0x50] sm:$0xff]
        %v722 = vld [vmem:[%s1 + $0x58] sm:$0xff]
        %v723 = vld [vmem:[%s1 + $0x60] sm:$0xff]
        %v724 = vld [vmem:[%s1 + $0x68] sm:$0xff]
        %v725 = vld [vmem:[%s1 + $0x70] sm:$0xff]
        %v726 = vld [vmem:[%s1 + $0x78] sm:$0xff]
        %v727 = vld [vmem:[%s1 + $0x80] sm:$0xff]
        %v728 = vld [vmem:[%s1 + $0x88] sm:$0xff]
        %v729 = vld [vmem:[%s1 + $0x90] sm:$0xff]
        %v730 = vld [vmem:[%s1 + $0x98] sm:$0xff]
        %v731 = vld [vmem:[%s1 + $0xa0] sm:$0xff]
        %v732 = vld [vmem:[%s1 + $0xa8] sm:$0xff]
        %v733 = vld [vmem:[%s1 + $0xb0] sm:$0xff]
        %v734 = vld [vmem:[%s1 + $0xb8] sm:$0xff]
        %v735 = vld [vmem:[%s1 + $0xc0] sm:$0xff]
        %v736 = vld [vmem:[%s1 + $0xc8] sm:$0xff]
        %v737 = vld [vmem:[%s1 + $0xd0] sm:$0xff]
        %v738 = vld [vmem:[%s1 + $0xd8] sm:$0xff]
        %v739 = vld [vmem:[%s1 + $0xe0] sm:$0xff]
        %v740 = vld [vmem:[%s1 + $0xe8] sm:$0xff]
        %v741 = vld [vmem:[%s1 + $0xf0] sm:$0xff]
        %v742 = vld [vmem:[%s1 + $0xf8] sm:$0xff]
        %v743 = vld [vmem:[%s454 + $0x1] sm:$0xff]
        %v744 = vld [vmem:[%s454 + $0x9] sm:$0xff]
        %v745 = vld [vmem:[%s454 + $0x19] sm:$0xff]
        %v746 = vld [vmem:[%s454 + $0x21] sm:$0xff]
        %v747 = vld [vmem:[%s454 + $0x31] sm:$0xff]
        %v748 = vld [vmem:[%s454 + $0x39] sm:$0xff]
        %v749 = vld [vmem:[%s454 + $0x49] sm:$0xff]
        %v750 = vld [vmem:[%s454 + $0x51] sm:$0xff]
        %v751 = vld [vmem:[%s454 + $0x61] sm:$0xff]
        %v752 = vld [vmem:[%s454 + $0x69] sm:$0xff]
        %v753 = vld [vmem:[%s454 + $0x79] sm:$0xff]
        %v754 = vld [vmem:[%s454 + $0x81] sm:$0xff]
        %v755 = vld [vmem:[%s454 + $0x91] sm:$0xff]
        %v756 = vld [vmem:[%s454 + $0x99] sm:$0xff]
        %v757 = vld [vmem:[%s454 + $0xa9] sm:$0xff]
        %v758 = vld [vmem:[%s454 + $0xb1] sm:$0xff]
        %v759 = vld [vmem:[%s454 + $0x2] sm:$0xff]
        %v760 = vld [vmem:[%s454 + $0xa] sm:$0xff]
        %v761 = vld [vmem:[%s454 + $0x1a] sm:$0xff]
        %v762 = vld [vmem:[%s454 + $0x22] sm:$0xff]
        %v763 = vld [vmem:[%s454 + $0x32] sm:$0xff]
        %v764 = vld [vmem:[%s454 + $0x3a] sm:$0xff]
        %v765 = vld [vmem:[%s454 + $0x4a] sm:$0xff]
        %v766 = vld [vmem:[%s454 + $0x52] sm:$0xff]
        %v767 = vld [vmem:[%s454 + $0x62] sm:$0xff]
        %v768 = vld [vmem:[%s454 + $0x6a] sm:$0xff]
        %v769 = vld [vmem:[%s454 + $0x7a] sm:$0xff]
        %v770 = vld [vmem:[%s454 + $0x82] sm:$0xff]
        %v771 = vld [vmem:[%s454 + $0x92] sm:$0xff]
        %v772 = vld [vmem:[%s454 + $0x9a] sm:$0xff]
        %v773 = vld [vmem:[%s454 + $0xaa] sm:$0xff]
        %v774 = vld [vmem:[%s454 + $0xb2] sm:$0xff]
        %s775 = scalar_lea.vmem [#allocation2], 48
        %v776 = vld [vmem:[%s775] sm:$0xff]
        %v777 = vld [vmem:[%s775 + $0x8] sm:$0xff]
        %v778 = vld [vmem:[%s775 + $0x18] sm:$0xff]
        %v779 = vld [vmem:[%s775 + $0x20] sm:$0xff]
        %v780 = vld [vmem:[%s775 + $0x30] sm:$0xff]
        %v781 = vld [vmem:[%s775 + $0x38] sm:$0xff]
        %v782 = vld [vmem:[%s775 + $0x48] sm:$0xff]
        %v783 = vld [vmem:[%s775 + $0x50] sm:$0xff]
        %v784 = vld [vmem:[%s775 + $0x60] sm:$0xff]
        %v785 = vld [vmem:[%s775 + $0x68] sm:$0xff]
        %v786 = vld [vmem:[%s775 + $0x78] sm:$0xff]
        %v787 = vld [vmem:[%s775 + $0x80] sm:$0xff]
        %v788 = vld [vmem:[%s775 + $0x90] sm:$0xff]
        %v789 = vld [vmem:[%s775 + $0x98] sm:$0xff]
        %v790 = vld [vmem:[%s775 + $0xa8] sm:$0xff]
        %v791 = vld [vmem:[%s775 + $0xb0] sm:$0xff]
        %v792 = vld [vmem:[%s775 + $0x1] sm:$0xff]
        %v793 = vld [vmem:[%s775 + $0x9] sm:$0xff]
        %v794 = vld [vmem:[%s775 + $0x19] sm:$0xff]
        %v795 = vld [vmem:[%s775 + $0x21] sm:$0xff]
        %v796 = vld [vmem:[%s775 + $0x31] sm:$0xff]
        %v797 = vld [vmem:[%s775 + $0x39] sm:$0xff]
        %v798 = vld [vmem:[%s775 + $0x49] sm:$0xff]
        %v799 = vld [vmem:[%s775 + $0x51] sm:$0xff]
        %v800 = vld [vmem:[%s775 + $0x61] sm:$0xff]
        %v801 = vld [vmem:[%s775 + $0x69] sm:$0xff]
        %v802 = vld [vmem:[%s775 + $0x79] sm:$0xff]
        %v803 = vld [vmem:[%s775 + $0x81] sm:$0xff]
        %v804 = vld [vmem:[%s775 + $0x91] sm:$0xff]
        %v805 = vld [vmem:[%s775 + $0x99] sm:$0xff]
        %v806 = vld [vmem:[%s775 + $0xa9] sm:$0xff]
        %v807 = vld [vmem:[%s775 + $0xb1] sm:$0xff]
        %824 = vrot.lane.b32.xlu0 %v759, 64
        %v825 = vpop.permute.xlu0 %824
        %826 = vrot.lane.b32.xlu0 %v760, 64
        %v827 = vpop.permute.xlu0 %826
        %828 = vrot.lane.b32.xlu0 %v761, 64
        %v829 = vpop.permute.xlu0 %828
        %830 = vrot.lane.b32.xlu0 %v762, 64
        %v831 = vpop.permute.xlu0 %830
        %832 = vrot.lane.b32.xlu0 %v763, 64
        %v833 = vpop.permute.xlu0 %832
        %834 = vrot.lane.b32.xlu0 %v764, 64
        %v835 = vpop.permute.xlu0 %834
        %836 = vrot.lane.b32.xlu0 %v765, 64
        %v837 = vpop.permute.xlu0 %836
        %838 = vrot.lane.b32.xlu0 %v766, 64
        %v839 = vpop.permute.xlu0 %838
        %840 = vrot.lane.b32.xlu0 %v767, 64
        %v841 = vpop.permute.xlu0 %840
        %842 = vrot.lane.b32.xlu0 %v768, 64
        %v843 = vpop.permute.xlu0 %842
        %844 = vrot.lane.b32.xlu0 %v769, 64
        %v845 = vpop.permute.xlu0 %844
        %846 = vrot.lane.b32.xlu0 %v770, 64
        %v847 = vpop.permute.xlu0 %846
        %848 = vrot.lane.b32.xlu0 %v771, 64
        %v849 = vpop.permute.xlu0 %848
        %850 = vrot.lane.b32.xlu0 %v772, 64
        %v851 = vpop.permute.xlu0 %850
        %852 = vrot.lane.b32.xlu0 %v773, 64
        %v853 = vpop.permute.xlu0 %852
        %854 = vrot.lane.b32.xlu0 %v774, 64
        %v855 = vpop.permute.xlu0 %854
        %888 = vrot.lane.b32.xlu0 %v792, 64
        %v889 = vpop.permute.xlu0 %888
        %890 = vrot.lane.b32.xlu0 %v793, 64
        %v891 = vpop.permute.xlu0 %890
        %892 = vrot.lane.b32.xlu0 %v794, 64
        %v893 = vpop.permute.xlu0 %892
        %894 = vrot.lane.b32.xlu0 %v795, 64
        %v895 = vpop.permute.xlu0 %894
        %896 = vrot.lane.b32.xlu0 %v796, 64
        %v897 = vpop.permute.xlu0 %896
        %898 = vrot.lane.b32.xlu0 %v797, 64
        %v899 = vpop.permute.xlu0 %898
        %900 = vrot.lane.b32.xlu0 %v798, 64
        %v901 = vpop.permute.xlu0 %900
        %902 = vrot.lane.b32.xlu0 %v799, 64
        %v903 = vpop.permute.xlu0 %902
        %904 = vrot.lane.b32.xlu0 %v800, 64
        %v905 = vpop.permute.xlu0 %904
        %906 = vrot.lane.b32.xlu0 %v801, 64
        %v907 = vpop.permute.xlu0 %906
        %908 = vrot.lane.b32.xlu0 %v802, 64
        %v909 = vpop.permute.xlu0 %908
        %910 = vrot.lane.b32.xlu0 %v803, 64
        %v911 = vpop.permute.xlu0 %910
        %912 = vrot.lane.b32.xlu0 %v804, 64
        %v913 = vpop.permute.xlu0 %912
        %914 = vrot.lane.b32.xlu0 %v805, 64
        %v915 = vpop.permute.xlu0 %914
        %916 = vrot.lane.b32.xlu0 %v806, 64
        %v917 = vpop.permute.xlu0 %916
        %918 = vrot.lane.b32.xlu0 %v807, 64
        %v919 = vpop.permute.xlu0 %918
        %v936 = vsel %vm331, %v743, %v825
        %v937 = vsel %vm331, %v744, %v827
        %v938 = vsel %vm331, %v745, %v829
        %v939 = vsel %vm331, %v746, %v831
        %v940 = vsel %vm331, %v747, %v833
        %v941 = vsel %vm331, %v748, %v835
        %v942 = vsel %vm331, %v749, %v837
        %v943 = vsel %vm331, %v750, %v839
        %v944 = vsel %vm331, %v751, %v841
        %v945 = vsel %vm331, %v752, %v843
        %v946 = vsel %vm331, %v753, %v845
        %v947 = vsel %vm331, %v754, %v847
        %v948 = vsel %vm331, %v755, %v849
        %v949 = vsel %vm331, %v756, %v851
        %v950 = vsel %vm331, %v757, %v853
        %v951 = vsel %vm331, %v758, %v855
        %v952 = vsel %vm331, %v776, %v889
        %v953 = vsel %vm331, %v777, %v891
        %v954 = vsel %vm331, %v778, %v893
        %v955 = vsel %vm331, %v779, %v895
        %v956 = vsel %vm331, %v780, %v897
        %v957 = vsel %vm331, %v781, %v899
        %v958 = vsel %vm331, %v782, %v901
        %v959 = vsel %vm331, %v783, %v903
        %v960 = vsel %vm331, %v784, %v905
        %v961 = vsel %vm331, %v785, %v907
        %v962 = vsel %vm331, %v786, %v909
        %v963 = vsel %vm331, %v787, %v911
        %v964 = vsel %vm331, %v788, %v913
        %v965 = vsel %vm331, %v789, %v915
        %v966 = vsel %vm331, %v790, %v917
        %v967 = vsel %vm331, %v791, %v919
        %v968 = vld [vmem:[%s1 + $0x100] sm:$0xff]
        %v969 = vld [vmem:[%s1 + $0x108] sm:$0xff]
        %v970 = vld [vmem:[%s1 + $0x110] sm:$0xff]
        %v971 = vld [vmem:[%s1 + $0x118] sm:$0xff]
        %v972 = vld [vmem:[%s1 + $0x120] sm:$0xff]
        %v973 = vld [vmem:[%s1 + $0x128] sm:$0xff]
        %v974 = vld [vmem:[%s1 + $0x130] sm:$0xff]
        %v975 = vld [vmem:[%s1 + $0x138] sm:$0xff]
        %v976 = vld [vmem:[%s1 + $0x140] sm:$0xff]
        %v977 = vld [vmem:[%s1 + $0x148] sm:$0xff]
        %v978 = vld [vmem:[%s1 + $0x150] sm:$0xff]
        %v979 = vld [vmem:[%s1 + $0x158] sm:$0xff]
        %v980 = vld [vmem:[%s1 + $0x160] sm:$0xff]
        %v981 = vld [vmem:[%s1 + $0x168] sm:$0xff]
        %v982 = vld [vmem:[%s1 + $0x170] sm:$0xff]
        %v983 = vld [vmem:[%s1 + $0x178] sm:$0xff]
        %v984 = vld [vmem:[%s1 + $0x180] sm:$0xff]
        %v985 = vld [vmem:[%s1 + $0x188] sm:$0xff]
        %v986 = vld [vmem:[%s1 + $0x190] sm:$0xff]
        %v987 = vld [vmem:[%s1 + $0x198] sm:$0xff]
        %v988 = vld [vmem:[%s1 + $0x1a0] sm:$0xff]
        %v989 = vld [vmem:[%s1 + $0x1a8] sm:$0xff]
        %v990 = vld [vmem:[%s1 + $0x1b0] sm:$0xff]
        %v991 = vld [vmem:[%s1 + $0x1b8] sm:$0xff]
        %v992 = vld [vmem:[%s1 + $0x1c0] sm:$0xff]
        %v993 = vld [vmem:[%s1 + $0x1c8] sm:$0xff]
        %v994 = vld [vmem:[%s1 + $0x1d0] sm:$0xff]
        %v995 = vld [vmem:[%s1 + $0x1d8] sm:$0xff]
        %v996 = vld [vmem:[%s1 + $0x1e0] sm:$0xff]
        %v997 = vld [vmem:[%s1 + $0x1e8] sm:$0xff]
        %v998 = vld [vmem:[%s1 + $0x1f0] sm:$0xff]
        %v999 = vld [vmem:[%s1 + $0x1f8] sm:$0xff]
        %1000 = vmatpush.msra.mxu0 %v983
        %1001 = vmatpush.msra.mxu0 %v982
        %1002 = vmatpush.msra.mxu0 %v981
        %1003 = vmatpush.msra.mxu0 %v980
        %1004 = vmatpush.msra.mxu0 %v979
        %1005 = vmatpush.msra.mxu0 %v978
        %1006 = vmatpush.msra.mxu0 %v977
        %1007 = vmatpush.msra.mxu0 %v976
        %1008 = vmatpush.msra.mxu0 %v975
        %1009 = vmatpush.msra.mxu0 %v974
        %1010 = vmatpush.msra.mxu0 %v973
        %1011 = vmatpush.msra.mxu0 %v972
        %1012 = vmatpush.msra.mxu0 %v971
        %1013 = vmatpush.msra.mxu0 %v970
        %1014 = vmatpush.msra.mxu0 %v969
        %1015 = vmatpush.msra.mxu0 %v968
        %1016 = vmatmul.f32.gmra.mxu0 %v936
        %v1017 = vpop.f32.mrf.mxu0
        %v1018 = vadd.f32 0.0, %v1017
        %1019 = vmatmul.f32.gmra.mxu0 %v937
        %v1020 = vpop.f32.mrf.mxu0
        %v1021 = vadd.f32 0.0, %v1020
        %1022 = vmatmul.f32.gmra.mxu0 %v938
        %v1023 = vpop.f32.mrf.mxu0
        %v1024 = vadd.f32 0.0, %v1023
        %1025 = vmatmul.f32.gmra.mxu0 %v939
        %v1026 = vpop.f32.mrf.mxu0
        %v1027 = vadd.f32 0.0, %v1026
        %1028 = vmatmul.f32.gmra.mxu0 %v940
        %v1029 = vpop.f32.mrf.mxu0
        %v1030 = vadd.f32 0.0, %v1029
        %1031 = vmatmul.f32.gmra.mxu0 %v941
        %v1032 = vpop.f32.mrf.mxu0
        %v1033 = vadd.f32 0.0, %v1032
        %1034 = vmatmul.f32.gmra.mxu0 %v942
        %v1035 = vpop.f32.mrf.mxu0
        %v1036 = vadd.f32 0.0, %v1035
        %1037 = vmatmul.f32.gmra.mxu0 %v943
        %v1038 = vpop.f32.mrf.mxu0
        %v1039 = vadd.f32 0.0, %v1038
        %1040 = vmatmul.f32.gmra.mxu0 %v944
        %v1041 = vpop.f32.mrf.mxu0
        %v1042 = vadd.f32 0.0, %v1041
        %1043 = vmatmul.f32.gmra.mxu0 %v945
        %v1044 = vpop.f32.mrf.mxu0
        %v1045 = vadd.f32 0.0, %v1044
        %1046 = vmatmul.f32.gmra.mxu0 %v946
        %v1047 = vpop.f32.mrf.mxu0
        %v1048 = vadd.f32 0.0, %v1047
        %1049 = vmatmul.f32.gmra.mxu0 %v947
        %v1050 = vpop.f32.mrf.mxu0
        %v1051 = vadd.f32 0.0, %v1050
        %1052 = vmatmul.f32.gmra.mxu0 %v948
        %v1053 = vpop.f32.mrf.mxu0
        %v1054 = vadd.f32 0.0, %v1053
        %1055 = vmatmul.f32.gmra.mxu0 %v949
        %v1056 = vpop.f32.mrf.mxu0
        %v1057 = vadd.f32 0.0, %v1056
        %1058 = vmatmul.f32.gmra.mxu0 %v950
        %v1059 = vpop.f32.mrf.mxu0
        %v1060 = vadd.f32 0.0, %v1059
        %1061 = vmatmul.f32.gmra.mxu0 %v951
        %v1062 = vpop.f32.mrf.mxu0
        %v1063 = vadd.f32 0.0, %v1062
        %1064 = vdwg.mxu0
        %1065 = vmatpush.msra.mxu0 %v999
        %1066 = vmatpush.msra.mxu0 %v998
        %1067 = vmatpush.msra.mxu0 %v997
        %1068 = vmatpush.msra.mxu0 %v996
        %1069 = vmatpush.msra.mxu0 %v995
        %1070 = vmatpush.msra.mxu0 %v994
        %1071 = vmatpush.msra.mxu0 %v993
        %1072 = vmatpush.msra.mxu0 %v992
        %1073 = vmatpush.msra.mxu0 %v991
        %1074 = vmatpush.msra.mxu0 %v990
        %1075 = vmatpush.msra.mxu0 %v989
        %1076 = vmatpush.msra.mxu0 %v988
        %1077 = vmatpush.msra.mxu0 %v987
        %1078 = vmatpush.msra.mxu0 %v986
        %1079 = vmatpush.msra.mxu0 %v985
        %1080 = vmatpush.msra.mxu0 %v984
        %1081 = vmatmul.f32.gmra.mxu0 %v952
        %v1082 = vpop.f32.mrf.mxu0
        %v1083 = vadd.f32 %v1018, %v1082
        %1084 = vmatmul.f32.gmra.mxu0 %v953
        %v1085 = vpop.f32.mrf.mxu0
        %v1086 = vadd.f32 %v1021, %v1085
        %1087 = vmatmul.f32.gmra.mxu0 %v954
        %v1088 = vpop.f32.mrf.mxu0
        %v1089 = vadd.f32 %v1024, %v1088
        %1090 = vmatmul.f32.gmra.mxu0 %v955
        %v1091 = vpop.f32.mrf.mxu0
        %v1092 = vadd.f32 %v1027, %v1091
        %1093 = vmatmul.f32.gmra.mxu0 %v956
        %v1094 = vpop.f32.mrf.mxu0
        %v1095 = vadd.f32 %v1030, %v1094
        %1096 = vmatmul.f32.gmra.mxu0 %v957
        %v1097 = vpop.f32.mrf.mxu0
        %v1098 = vadd.f32 %v1033, %v1097
        %1099 = vmatmul.f32.gmra.mxu0 %v958
        %v1100 = vpop.f32.mrf.mxu0
        %v1101 = vadd.f32 %v1036, %v1100
        %1102 = vmatmul.f32.gmra.mxu0 %v959
        %v1103 = vpop.f32.mrf.mxu0
        %v1104 = vadd.f32 %v1039, %v1103
        %1105 = vmatmul.f32.gmra.mxu0 %v960
        %v1106 = vpop.f32.mrf.mxu0
        %v1107 = vadd.f32 %v1042, %v1106
        %1108 = vmatmul.f32.gmra.mxu0 %v961
        %v1109 = vpop.f32.mrf.mxu0
        %v1110 = vadd.f32 %v1045, %v1109
        %1111 = vmatmul.f32.gmra.mxu0 %v962
        %v1112 = vpop.f32.mrf.mxu0
        %v1113 = vadd.f32 %v1048, %v1112
        %1114 = vmatmul.f32.gmra.mxu0 %v963
        %v1115 = vpop.f32.mrf.mxu0
        %v1116 = vadd.f32 %v1051, %v1115
        %1117 = vmatmul.f32.gmra.mxu0 %v964
        %v1118 = vpop.f32.mrf.mxu0
        %v1119 = vadd.f32 %v1054, %v1118
        %1120 = vmatmul.f32.gmra.mxu0 %v965
        %v1121 = vpop.f32.mrf.mxu0
        %v1122 = vadd.f32 %v1057, %v1121
        %1123 = vmatmul.f32.gmra.mxu0 %v966
        %v1124 = vpop.f32.mrf.mxu0
        %v1125 = vadd.f32 %v1060, %v1124
        %1126 = vmatmul.f32.gmra.mxu0 %v967
        %v1127 = vpop.f32.mrf.mxu0
        %v1128 = vadd.f32 %v1063, %v1127
        %1129 = vdwg.mxu0
        %1130 = vmatpush.msra.mxu0 %v726
        %1131 = vmatpush.msra.mxu0 %v725
        %1132 = vmatpush.msra.mxu0 %v724
        %1133 = vmatpush.msra.mxu0 %v723
        %1134 = vmatpush.msra.mxu0 %v722
        %1135 = vmatpush.msra.mxu0 %v721
        %1136 = vmatpush.msra.mxu0 %v720
        %1137 = vmatpush.msra.mxu0 %v719
        %1138 = vmatpush.msra.mxu0 %v718
        %1139 = vmatpush.msra.mxu0 %v717
        %1140 = vmatpush.msra.mxu0 %v716
        %1141 = vmatpush.msra.mxu0 %v715
        %1142 = vmatpush.msra.mxu0 %v714
        %1143 = vmatpush.msra.mxu0 %v713
        %1144 = vmatpush.msra.mxu0 %v712
        %1145 = vmatpush.msra.mxu0 %v711
        %1146 = vmatmul.f32.gmra.mxu0 %v679
        %v1147 = vpop.f32.mrf.mxu0
        %v1148 = vadd.f32 %v1083, %v1147
        %1149 = vmatmul.f32.gmra.mxu0 %v680
        %v1150 = vpop.f32.mrf.mxu0
        %v1151 = vadd.f32 %v1086, %v1150
        %1152 = vmatmul.f32.gmra.mxu0 %v681
        %v1153 = vpop.f32.mrf.mxu0
        %v1154 = vadd.f32 %v1089, %v1153
        %1155 = vmatmul.f32.gmra.mxu0 %v682
        %v1156 = vpop.f32.mrf.mxu0
        %v1157 = vadd.f32 %v1092, %v1156
        %1158 = vmatmul.f32.gmra.mxu0 %v683
        %v1159 = vpop.f32.mrf.mxu0
        %v1160 = vadd.f32 %v1095, %v1159
        %1161 = vmatmul.f32.gmra.mxu0 %v684
        %v1162 = vpop.f32.mrf.mxu0
        %v1163 = vadd.f32 %v1098, %v1162
        %1164 = vmatmul.f32.gmra.mxu0 %v685
        %v1165 = vpop.f32.mrf.mxu0
        %v1166 = vadd.f32 %v1101, %v1165
        %1167 = vmatmul.f32.gmra.mxu0 %v686
        %v1168 = vpop.f32.mrf.mxu0
        %v1169 = vadd.f32 %v1104, %v1168
        %1170 = vmatmul.f32.gmra.mxu0 %v687
        %v1171 = vpop.f32.mrf.mxu0
        %v1172 = vadd.f32 %v1107, %v1171
        %1173 = vmatmul.f32.gmra.mxu0 %v688
        %v1174 = vpop.f32.mrf.mxu0
        %v1175 = vadd.f32 %v1110, %v1174
        %1176 = vmatmul.f32.gmra.mxu0 %v689
        %v1177 = vpop.f32.mrf.mxu0
        %v1178 = vadd.f32 %v1113, %v1177
        %1179 = vmatmul.f32.gmra.mxu0 %v690
        %v1180 = vpop.f32.mrf.mxu0
        %v1181 = vadd.f32 %v1116, %v1180
        %1182 = vmatmul.f32.gmra.mxu0 %v691
        %v1183 = vpop.f32.mrf.mxu0
        %v1184 = vadd.f32 %v1119, %v1183
        %1185 = vmatmul.f32.gmra.mxu0 %v692
        %v1186 = vpop.f32.mrf.mxu0
        %v1187 = vadd.f32 %v1122, %v1186
        %1188 = vmatmul.f32.gmra.mxu0 %v693
        %v1189 = vpop.f32.mrf.mxu0
        %v1190 = vadd.f32 %v1125, %v1189
        %1191 = vmatmul.f32.gmra.mxu0 %v694
        %v1192 = vpop.f32.mrf.mxu0
        %v1193 = vadd.f32 %v1128, %v1192
        %1194 = vdwg.mxu0
        %1195 = vmatpush.msra.mxu0 %v742
        %1196 = vmatpush.msra.mxu0 %v741
        %1197 = vmatpush.msra.mxu0 %v740
        %1198 = vmatpush.msra.mxu0 %v739
        %1199 = vmatpush.msra.mxu0 %v738
        %1200 = vmatpush.msra.mxu0 %v737
        %1201 = vmatpush.msra.mxu0 %v736
        %1202 = vmatpush.msra.mxu0 %v735
        %1203 = vmatpush.msra.mxu0 %v734
        %1204 = vmatpush.msra.mxu0 %v733
        %1205 = vmatpush.msra.mxu0 %v732
        %1206 = vmatpush.msra.mxu0 %v731
        %1207 = vmatpush.msra.mxu0 %v730
        %1208 = vmatpush.msra.mxu0 %v729
        %1209 = vmatpush.msra.mxu0 %v728
        %1210 = vmatpush.msra.mxu0 %v727
        %1211 = vmatmul.f32.gmra.mxu0 %v695
        %v1212 = vpop.f32.mrf.mxu0
        %v1213 = vadd.f32 %v1148, %v1212
        %1214 = vmatmul.f32.gmra.mxu0 %v696
        %v1215 = vpop.f32.mrf.mxu0
        %v1216 = vadd.f32 %v1151, %v1215
        %1217 = vmatmul.f32.gmra.mxu0 %v697
        %v1218 = vpop.f32.mrf.mxu0
        %v1219 = vadd.f32 %v1154, %v1218
        %1220 = vmatmul.f32.gmra.mxu0 %v698
        %v1221 = vpop.f32.mrf.mxu0
        %v1222 = vadd.f32 %v1157, %v1221
        %1223 = vmatmul.f32.gmra.mxu0 %v699
        %v1224 = vpop.f32.mrf.mxu0
        %v1225 = vadd.f32 %v1160, %v1224
        %1226 = vmatmul.f32.gmra.mxu0 %v700
        %v1227 = vpop.f32.mrf.mxu0
        %v1228 = vadd.f32 %v1163, %v1227
        %1229 = vmatmul.f32.gmra.mxu0 %v701
        %v1230 = vpop.f32.mrf.mxu0
        %v1231 = vadd.f32 %v1166, %v1230
        %1232 = vmatmul.f32.gmra.mxu0 %v702
        %v1233 = vpop.f32.mrf.mxu0
        %v1234 = vadd.f32 %v1169, %v1233
        %1235 = vmatmul.f32.gmra.mxu0 %v703
        %v1236 = vpop.f32.mrf.mxu0
        %v1237 = vadd.f32 %v1172, %v1236
        %1238 = vmatmul.f32.gmra.mxu0 %v704
        %v1239 = vpop.f32.mrf.mxu0
        %v1240 = vadd.f32 %v1175, %v1239
        %1241 = vmatmul.f32.gmra.mxu0 %v705
        %v1242 = vpop.f32.mrf.mxu0
        %v1243 = vadd.f32 %v1178, %v1242
        %1244 = vmatmul.f32.gmra.mxu0 %v706
        %v1245 = vpop.f32.mrf.mxu0
        %v1246 = vadd.f32 %v1181, %v1245
        %1247 = vmatmul.f32.gmra.mxu0 %v707
        %v1248 = vpop.f32.mrf.mxu0
        %v1249 = vadd.f32 %v1184, %v1248
        %1250 = vmatmul.f32.gmra.mxu0 %v708
        %v1251 = vpop.f32.mrf.mxu0
        %v1252 = vadd.f32 %v1187, %v1251
        %1253 = vmatmul.f32.gmra.mxu0 %v709
        %v1254 = vpop.f32.mrf.mxu0
        %v1255 = vadd.f32 %v1190, %v1254
        %1256 = vmatmul.f32.gmra.mxu0 %v710
        %v1257 = vpop.f32.mrf.mxu0
        %v1258 = vadd.f32 %v1193, %v1257
        %1259 = vdwg.mxu0
        %v1260 = vld [vmem:[%s775 + $0x2] sm:$0xff]
        %v1261 = vld [vmem:[%s775 + $0xa] sm:$0xff]
        %v1262 = vld [vmem:[%s775 + $0x1a] sm:$0xff]
        %v1263 = vld [vmem:[%s775 + $0x22] sm:$0xff]
        %v1264 = vld [vmem:[%s775 + $0x32] sm:$0xff]
        %v1265 = vld [vmem:[%s775 + $0x3a] sm:$0xff]
        %v1266 = vld [vmem:[%s775 + $0x4a] sm:$0xff]
        %v1267 = vld [vmem:[%s775 + $0x52] sm:$0xff]
        %v1268 = vld [vmem:[%s775 + $0x62] sm:$0xff]
        %v1269 = vld [vmem:[%s775 + $0x6a] sm:$0xff]
        %v1270 = vld [vmem:[%s775 + $0x7a] sm:$0xff]
        %v1271 = vld [vmem:[%s775 + $0x82] sm:$0xff]
        %v1272 = vld [vmem:[%s775 + $0x92] sm:$0xff]
        %v1273 = vld [vmem:[%s775 + $0x9a] sm:$0xff]
        %v1274 = vld [vmem:[%s775 + $0xaa] sm:$0xff]
        %v1275 = vld [vmem:[%s775 + $0xb2] sm:$0xff]
        %v1276 = vld [vmem:[%s1 + $0x200] sm:$0xff]
        %v1277 = vld [vmem:[%s1 + $0x208] sm:$0xff]
        %v1278 = vld [vmem:[%s1 + $0x210] sm:$0xff]
        %v1279 = vld [vmem:[%s1 + $0x218] sm:$0xff]
        %v1280 = vld [vmem:[%s1 + $0x220] sm:$0xff]
        %v1281 = vld [vmem:[%s1 + $0x228] sm:$0xff]
        %v1282 = vld [vmem:[%s1 + $0x230] sm:$0xff]
        %v1283 = vld [vmem:[%s1 + $0x238] sm:$0xff]
        %v1285 = vsel %vm331, %v1260, 0
        %v1288 = vsel %vm331, %v1261, 0
        %v1291 = vsel %vm331, %v1262, 0
        %v1294 = vsel %vm331, %v1263, 0
        %v1297 = vsel %vm331, %v1264, 0
        %v1300 = vsel %vm331, %v1265, 0
        %v1303 = vsel %vm331, %v1266, 0
        %v1306 = vsel %vm331, %v1267, 0
        %v1309 = vsel %vm331, %v1268, 0
        %v1312 = vsel %vm331, %v1269, 0
        %v1315 = vsel %vm331, %v1270, 0
        %v1318 = vsel %vm331, %v1271, 0
        %v1321 = vsel %vm331, %v1272, 0
        %v1324 = vsel %vm331, %v1273, 0
        %v1327 = vsel %vm331, %v1274, 0
        %v1330 = vsel %vm331, %v1275, 0
        %1332 = vmatpush.msra.mxu0 0.0
        %1333 = vmatpush.msra.mxu0 0.0
        %1334 = vmatpush.msra.mxu0 0.0
        %1335 = vmatpush.msra.mxu0 0.0
        %1336 = vmatpush.msra.mxu0 0.0
        %1337 = vmatpush.msra.mxu0 0.0
        %1338 = vmatpush.msra.mxu0 0.0
        %1339 = vmatpush.msra.mxu0 0.0
        %1340 = vmatpush.msra.mxu0 %v1283
        %1341 = vmatpush.msra.mxu0 %v1282
        %1342 = vmatpush.msra.mxu0 %v1281
        %1343 = vmatpush.msra.mxu0 %v1280
        %1344 = vmatpush.msra.mxu0 %v1279
        %1345 = vmatpush.msra.mxu0 %v1278
        %1346 = vmatpush.msra.mxu0 %v1277
        %1347 = vmatpush.msra.mxu0 %v1276
        %1348 = vmatmul.f32.gmra.mxu0 %v1285
        %v1349 = vpop.f32.mrf.mxu0
        %v1350 = vadd.f32 0.0, %v1349
        %1351 = vmatmul.f32.gmra.mxu0 %v1288
        %v1352 = vpop.f32.mrf.mxu0
        %v1353 = vadd.f32 0.0, %v1352
        %1354 = vmatmul.f32.gmra.mxu0 %v1291
        %v1355 = vpop.f32.mrf.mxu0
        %v1356 = vadd.f32 0.0, %v1355
        %1357 = vmatmul.f32.gmra.mxu0 %v1294
        %v1358 = vpop.f32.mrf.mxu0
        %v1359 = vadd.f32 0.0, %v1358
        %1360 = vmatmul.f32.gmra.mxu0 %v1297
        %v1361 = vpop.f32.mrf.mxu0
        %v1362 = vadd.f32 0.0, %v1361
        %1363 = vmatmul.f32.gmra.mxu0 %v1300
        %v1364 = vpop.f32.mrf.mxu0
        %v1365 = vadd.f32 0.0, %v1364
        %1366 = vmatmul.f32.gmra.mxu0 %v1303
        %v1367 = vpop.f32.mrf.mxu0
        %v1368 = vadd.f32 0.0, %v1367
        %1369 = vmatmul.f32.gmra.mxu0 %v1306
        %v1370 = vpop.f32.mrf.mxu0
        %v1371 = vadd.f32 0.0, %v1370
        %1372 = vmatmul.f32.gmra.mxu0 %v1309
        %v1373 = vpop.f32.mrf.mxu0
        %v1374 = vadd.f32 0.0, %v1373
        %1375 = vmatmul.f32.gmra.mxu0 %v1312
        %v1376 = vpop.f32.mrf.mxu0
        %v1377 = vadd.f32 0.0, %v1376
        %1378 = vmatmul.f32.gmra.mxu0 %v1315
        %v1379 = vpop.f32.mrf.mxu0
        %v1380 = vadd.f32 0.0, %v1379
        %1381 = vmatmul.f32.gmra.mxu0 %v1318
        %v1382 = vpop.f32.mrf.mxu0
        %v1383 = vadd.f32 0.0, %v1382
        %1384 = vmatmul.f32.gmra.mxu0 %v1321
        %v1385 = vpop.f32.mrf.mxu0
        %v1386 = vadd.f32 0.0, %v1385
        %1387 = vmatmul.f32.gmra.mxu0 %v1324
        %v1388 = vpop.f32.mrf.mxu0
        %v1389 = vadd.f32 0.0, %v1388
        %1390 = vmatmul.f32.gmra.mxu0 %v1327
        %v1391 = vpop.f32.mrf.mxu0
        %v1392 = vadd.f32 0.0, %v1391
        %1393 = vmatmul.f32.gmra.mxu0 %v1330
        %v1394 = vpop.f32.mrf.mxu0
        %v1395 = vadd.f32 0.0, %v1394
        %1396 = vdwg.mxu0
        %v1397 = vadd.f32 %v1213, %v1350
        %v1398 = vadd.f32 %v1216, %v1353
        %v1399 = vadd.f32 %v1219, %v1356
        %v1400 = vadd.f32 %v1222, %v1359
        %v1401 = vadd.f32 %v1225, %v1362
        %v1402 = vadd.f32 %v1228, %v1365
        %v1403 = vadd.f32 %v1231, %v1368
        %v1404 = vadd.f32 %v1234, %v1371
        %v1405 = vadd.f32 %v1237, %v1374
        %v1406 = vadd.f32 %v1240, %v1377
        %v1407 = vadd.f32 %v1243, %v1380
        %v1408 = vadd.f32 %v1246, %v1383
        %v1409 = vadd.f32 %v1249, %v1386
        %v1410 = vadd.f32 %v1252, %v1389
        %v1411 = vadd.f32 %v1255, %v1392
        %v1412 = vadd.f32 %v1258, %v1395
        %v1414 = vperm.slane %v420, 0
        %v1416 = vadd.f32 %v1397, %v1414
        %v1417 = vadd.f32 %v1398, %v1414
        %v1418 = vadd.f32 %v1399, %v1414
        %v1419 = vadd.f32 %v1400, %v1414
        %v1420 = vadd.f32 %v1401, %v1414
        %v1421 = vadd.f32 %v1402, %v1414
        %v1422 = vadd.f32 %v1403, %v1414
        %v1423 = vadd.f32 %v1404, %v1414
        %v1424 = vadd.f32 %v1405, %v1414
        %v1425 = vadd.f32 %v1406, %v1414
        %v1426 = vadd.f32 %v1407, %v1414
        %v1427 = vadd.f32 %v1408, %v1414
        %v1428 = vadd.f32 %v1409, %v1414
        %v1429 = vadd.f32 %v1410, %v1414
        %v1430 = vadd.f32 %v1411, %v1414
        %v1431 = vadd.f32 %v1412, %v1414
        %v1432 = vmax.f32 %v1416, 0.0
        %v1433 = vmax.f32 %v1417, 0.0
        %v1434 = vmax.f32 %v1418, 0.0
        %v1435 = vmax.f32 %v1419, 0.0
        %v1436 = vmax.f32 %v1420, 0.0
        %v1437 = vmax.f32 %v1421, 0.0
        %v1438 = vmax.f32 %v1422, 0.0
        %v1439 = vmax.f32 %v1423, 0.0
        %v1440 = vmax.f32 %v1424, 0.0
        %v1441 = vmax.f32 %v1425, 0.0
        %v1442 = vmax.f32 %v1426, 0.0
        %v1443 = vmax.f32 %v1427, 0.0
        %v1444 = vmax.f32 %v1428, 0.0
        %v1445 = vmax.f32 %v1429, 0.0
        %v1446 = vmax.f32 %v1430, 0.0
        %v1447 = vmax.f32 %v1431, 0.0
        %s1448 = scalar_lea.vmem [#allocation3], 24
        %1449 = vst.msk [vmem:[%s1448 + $0x1] sm:$0xff] %vm331, %v1432
        %1450 = vst.msk [vmem:[%s1448 + $0x9] sm:$0xff] %vm331, %v1433
        %1451 = vst.msk [vmem:[%s1448 + $0x19] sm:$0xff] %vm331, %v1434
        %1452 = vst.msk [vmem:[%s1448 + $0x21] sm:$0xff] %vm331, %v1435
        %1453 = vst.msk [vmem:[%s1448 + $0x31] sm:$0xff] %vm331, %v1436
        %1454 = vst.msk [vmem:[%s1448 + $0x39] sm:$0xff] %vm331, %v1437
        %1455 = vst.msk [vmem:[%s1448 + $0x49] sm:$0xff] %vm331, %v1438
        %1456 = vst.msk [vmem:[%s1448 + $0x51] sm:$0xff] %vm331, %v1439
        %1457 = vst.msk [vmem:[%s1448 + $0x61] sm:$0xff] %vm331, %v1440
        %1458 = vst.msk [vmem:[%s1448 + $0x69] sm:$0xff] %vm331, %v1441
        %1459 = vst.msk [vmem:[%s1448 + $0x79] sm:$0xff] %vm331, %v1442
        %1460 = vst.msk [vmem:[%s1448 + $0x81] sm:$0xff] %vm331, %v1443
        %1461 = vst.msk [vmem:[%s1448 + $0x91] sm:$0xff] %vm331, %v1444
        %1462 = vst.msk [vmem:[%s1448 + $0x99] sm:$0xff] %vm331, %v1445
        %1463 = vst.msk [vmem:[%s1448 + $0xa9] sm:$0xff] %vm331, %v1446
        %1464 = vst.msk [vmem:[%s1448 + $0xb1] sm:$0xff] %vm331, %v1447
        %s1465 = scalar_lea.vmem [#allocation2], 192
        %v1466 = vld [vmem:[%s1465] sm:$0xff]
        %v1467 = vld [vmem:[%s1465 + $0x8] sm:$0xff]
        %v1468 = vld [vmem:[%s1465 + $0x18] sm:$0xff]
        %v1469 = vld [vmem:[%s1465 + $0x20] sm:$0xff]
        %v1470 = vld [vmem:[%s1465 + $0x30] sm:$0xff]
        %v1471 = vld [vmem:[%s1465 + $0x38] sm:$0xff]
        %v1472 = vld [vmem:[%s1465 + $0x48] sm:$0xff]
        %v1473 = vld [vmem:[%s1465 + $0x50] sm:$0xff]
        %v1474 = vld [vmem:[%s1465 + $0x60] sm:$0xff]
        %v1475 = vld [vmem:[%s1465 + $0x68] sm:$0xff]
        %v1476 = vld [vmem:[%s1465 + $0x78] sm:$0xff]
        %v1477 = vld [vmem:[%s1465 + $0x80] sm:$0xff]
        %v1478 = vld [vmem:[%s1465 + $0x90] sm:$0xff]
        %v1479 = vld [vmem:[%s1465 + $0x98] sm:$0xff]
        %v1480 = vld [vmem:[%s1465 + $0xa8] sm:$0xff]
        %v1481 = vld [vmem:[%s1465 + $0xb0] sm:$0xff]
        %v1482 = vld [vmem:[%s1465 + $0x1] sm:$0xff]
        %v1483 = vld [vmem:[%s1465 + $0x9] sm:$0xff]
        %v1484 = vld [vmem:[%s1465 + $0x19] sm:$0xff]
        %v1485 = vld [vmem:[%s1465 + $0x21] sm:$0xff]
        %v1486 = vld [vmem:[%s1465 + $0x31] sm:$0xff]
        %v1487 = vld [vmem:[%s1465 + $0x39] sm:$0xff]
        %v1488 = vld [vmem:[%s1465 + $0x49] sm:$0xff]
        %v1489 = vld [vmem:[%s1465 + $0x51] sm:$0xff]
        %v1490 = vld [vmem:[%s1465 + $0x61] sm:$0xff]
        %v1491 = vld [vmem:[%s1465 + $0x69] sm:$0xff]
        %v1492 = vld [vmem:[%s1465 + $0x79] sm:$0xff]
        %v1493 = vld [vmem:[%s1465 + $0x81] sm:$0xff]
        %v1494 = vld [vmem:[%s1465 + $0x91] sm:$0xff]
        %v1495 = vld [vmem:[%s1465 + $0x99] sm:$0xff]
        %v1496 = vld [vmem:[%s1465 + $0xa9] sm:$0xff]
        %v1497 = vld [vmem:[%s1465 + $0xb1] sm:$0xff]
        %v1498 = vld [vmem:[%s1465 + $0x2] sm:$0xff]
        %v1499 = vld [vmem:[%s1465 + $0xa] sm:$0xff]
        %v1500 = vld [vmem:[%s1465 + $0x1a] sm:$0xff]
        %v1501 = vld [vmem:[%s1465 + $0x22] sm:$0xff]
        %v1502 = vld [vmem:[%s1465 + $0x32] sm:$0xff]
        %v1503 = vld [vmem:[%s1465 + $0x3a] sm:$0xff]
        %v1504 = vld [vmem:[%s1465 + $0x4a] sm:$0xff]
        %v1505 = vld [vmem:[%s1465 + $0x52] sm:$0xff]
        %v1506 = vld [vmem:[%s1465 + $0x62] sm:$0xff]
        %v1507 = vld [vmem:[%s1465 + $0x6a] sm:$0xff]
        %v1508 = vld [vmem:[%s1465 + $0x7a] sm:$0xff]
        %v1509 = vld [vmem:[%s1465 + $0x82] sm:$0xff]
        %v1510 = vld [vmem:[%s1465 + $0x92] sm:$0xff]
        %v1511 = vld [vmem:[%s1465 + $0x9a] sm:$0xff]
        %v1512 = vld [vmem:[%s1465 + $0xaa] sm:$0xff]
        %v1513 = vld [vmem:[%s1465 + $0xb2] sm:$0xff]
        %s1514 = scalar_lea.vmem [#allocation2], 216
        %v1515 = vld [vmem:[%s1514] sm:$0xff]
        %v1516 = vld [vmem:[%s1514 + $0x8] sm:$0xff]
        %v1517 = vld [vmem:[%s1514 + $0x18] sm:$0xff]
        %v1518 = vld [vmem:[%s1514 + $0x20] sm:$0xff]
        %v1519 = vld [vmem:[%s1514 + $0x30] sm:$0xff]
        %v1520 = vld [vmem:[%s1514 + $0x38] sm:$0xff]
        %v1521 = vld [vmem:[%s1514 + $0x48] sm:$0xff]
        %v1522 = vld [vmem:[%s1514 + $0x50] sm:$0xff]
        %v1523 = vld [vmem:[%s1514 + $0x60] sm:$0xff]
        %v1524 = vld [vmem:[%s1514 + $0x68] sm:$0xff]
        %v1525 = vld [vmem:[%s1514 + $0x78] sm:$0xff]
        %v1526 = vld [vmem:[%s1514 + $0x80] sm:$0xff]
        %v1527 = vld [vmem:[%s1514 + $0x90] sm:$0xff]
        %v1528 = vld [vmem:[%s1514 + $0x98] sm:$0xff]
        %v1529 = vld [vmem:[%s1514 + $0xa8] sm:$0xff]
        %v1530 = vld [vmem:[%s1514 + $0xb0] sm:$0xff]
        %1547 = vrot.lane.b32.xlu0 %v1482, 64
        %v1548 = vpop.permute.xlu0 %1547
        %1549 = vrot.lane.b32.xlu0 %v1483, 64
        %v1550 = vpop.permute.xlu0 %1549
        %1551 = vrot.lane.b32.xlu0 %v1484, 64
        %v1552 = vpop.permute.xlu0 %1551
        %1553 = vrot.lane.b32.xlu0 %v1485, 64
        %v1554 = vpop.permute.xlu0 %1553
        %1555 = vrot.lane.b32.xlu0 %v1486, 64
        %v1556 = vpop.permute.xlu0 %1555
        %1557 = vrot.lane.b32.xlu0 %v1487, 64
        %v1558 = vpop.permute.xlu0 %1557
        %1559 = vrot.lane.b32.xlu0 %v1488, 64
        %v1560 = vpop.permute.xlu0 %1559
        %1561 = vrot.lane.b32.xlu0 %v1489, 64
        %v1562 = vpop.permute.xlu0 %1561
        %1563 = vrot.lane.b32.xlu0 %v1490, 64
        %v1564 = vpop.permute.xlu0 %1563
        %1565 = vrot.lane.b32.xlu0 %v1491, 64
        %v1566 = vpop.permute.xlu0 %1565
        %1567 = vrot.lane.b32.xlu0 %v1492, 64
        %v1568 = vpop.permute.xlu0 %1567
        %1569 = vrot.lane.b32.xlu0 %v1493, 64
        %v1570 = vpop.permute.xlu0 %1569
        %1571 = vrot.lane.b32.xlu0 %v1494, 64
        %v1572 = vpop.permute.xlu0 %1571
        %1573 = vrot.lane.b32.xlu0 %v1495, 64
        %v1574 = vpop.permute.xlu0 %1573
        %1575 = vrot.lane.b32.xlu0 %v1496, 64
        %v1576 = vpop.permute.xlu0 %1575
        %1577 = vrot.lane.b32.xlu0 %v1497, 64
        %v1578 = vpop.permute.xlu0 %1577
        %1611 = vrot.lane.b32.xlu0 %v1515, 64
        %v1612 = vpop.permute.xlu0 %1611
        %1613 = vrot.lane.b32.xlu0 %v1516, 64
        %v1614 = vpop.permute.xlu0 %1613
        %1615 = vrot.lane.b32.xlu0 %v1517, 64
        %v1616 = vpop.permute.xlu0 %1615
        %1617 = vrot.lane.b32.xlu0 %v1518, 64
        %v1618 = vpop.permute.xlu0 %1617
        %1619 = vrot.lane.b32.xlu0 %v1519, 64
        %v1620 = vpop.permute.xlu0 %1619
        %1621 = vrot.lane.b32.xlu0 %v1520, 64
        %v1622 = vpop.permute.xlu0 %1621
        %1623 = vrot.lane.b32.xlu0 %v1521, 64
        %v1624 = vpop.permute.xlu0 %1623
        %1625 = vrot.lane.b32.xlu0 %v1522, 64
        %v1626 = vpop.permute.xlu0 %1625
        %1627 = vrot.lane.b32.xlu0 %v1523, 64
        %v1628 = vpop.permute.xlu0 %1627
        %1629 = vrot.lane.b32.xlu0 %v1524, 64
        %v1630 = vpop.permute.xlu0 %1629
        %1631 = vrot.lane.b32.xlu0 %v1525, 64
        %v1632 = vpop.permute.xlu0 %1631
        %1633 = vrot.lane.b32.xlu0 %v1526, 64
        %v1634 = vpop.permute.xlu0 %1633
        %1635 = vrot.lane.b32.xlu0 %v1527, 64
        %v1636 = vpop.permute.xlu0 %1635
        %1637 = vrot.lane.b32.xlu0 %v1528, 64
        %v1638 = vpop.permute.xlu0 %1637
        %1639 = vrot.lane.b32.xlu0 %v1529, 64
        %v1640 = vpop.permute.xlu0 %1639
        %1641 = vrot.lane.b32.xlu0 %v1530, 64
        %v1642 = vpop.permute.xlu0 %1641
        %v1659 = vsel %vm331, %v1466, %v1548
        %v1660 = vsel %vm331, %v1467, %v1550
        %v1661 = vsel %vm331, %v1468, %v1552
        %v1662 = vsel %vm331, %v1469, %v1554
        %v1663 = vsel %vm331, %v1470, %v1556
        %v1664 = vsel %vm331, %v1471, %v1558
        %v1665 = vsel %vm331, %v1472, %v1560
        %v1666 = vsel %vm331, %v1473, %v1562
        %v1667 = vsel %vm331, %v1474, %v1564
        %v1668 = vsel %vm331, %v1475, %v1566
        %v1669 = vsel %vm331, %v1476, %v1568
        %v1670 = vsel %vm331, %v1477, %v1570
        %v1671 = vsel %vm331, %v1478, %v1572
        %v1672 = vsel %vm331, %v1479, %v1574
        %v1673 = vsel %vm331, %v1480, %v1576
        %v1674 = vsel %vm331, %v1481, %v1578
        %v1675 = vsel %vm331, %v1498, %v1612
        %v1676 = vsel %vm331, %v1499, %v1614
        %v1677 = vsel %vm331, %v1500, %v1616
        %v1678 = vsel %vm331, %v1501, %v1618
        %v1679 = vsel %vm331, %v1502, %v1620
        %v1680 = vsel %vm331, %v1503, %v1622
        %v1681 = vsel %vm331, %v1504, %v1624
        %v1682 = vsel %vm331, %v1505, %v1626
        %v1683 = vsel %vm331, %v1506, %v1628
        %v1684 = vsel %vm331, %v1507, %v1630
        %v1685 = vsel %vm331, %v1508, %v1632
        %v1686 = vsel %vm331, %v1509, %v1634
        %v1687 = vsel %vm331, %v1510, %v1636
        %v1688 = vsel %vm331, %v1511, %v1638
        %v1689 = vsel %vm331, %v1512, %v1640
        %v1690 = vsel %vm331, %v1513, %v1642
        %v1691 = vld [vmem:[%s1] sm:$0xff]
        %v1692 = vld [vmem:[%s1 + $0x8] sm:$0xff]
        %v1693 = vld [vmem:[%s1 + $0x10] sm:$0xff]
        %v1694 = vld [vmem:[%s1 + $0x18] sm:$0xff]
        %v1695 = vld [vmem:[%s1 + $0x20] sm:$0xff]
        %v1696 = vld [vmem:[%s1 + $0x28] sm:$0xff]
        %v1697 = vld [vmem:[%s1 + $0x30] sm:$0xff]
        %v1698 = vld [vmem:[%s1 + $0x38] sm:$0xff]
        %v1699 = vld [vmem:[%s1 + $0x40] sm:$0xff]
        %v1700 = vld [vmem:[%s1 + $0x48] sm:$0xff]
        %v1701 = vld [vmem:[%s1 + $0x50] sm:$0xff]
        %v1702 = vld [vmem:[%s1 + $0x58] sm:$0xff]
        %v1703 = vld [vmem:[%s1 + $0x60] sm:$0xff]
        %v1704 = vld [vmem:[%s1 + $0x68] sm:$0xff]
        %v1705 = vld [vmem:[%s1 + $0x70] sm:$0xff]
        %v1706 = vld [vmem:[%s1 + $0x78] sm:$0xff]
        %v1707 = vld [vmem:[%s1 + $0x80] sm:$0xff]
        %v1708 = vld [vmem:[%s1 + $0x88] sm:$0xff]
        %v1709 = vld [vmem:[%s1 + $0x90] sm:$0xff]
        %v1710 = vld [vmem:[%s1 + $0x98] sm:$0xff]
        %v1711 = vld [vmem:[%s1 + $0xa0] sm:$0xff]
        %v1712 = vld [vmem:[%s1 + $0xa8] sm:$0xff]
        %v1713 = vld [vmem:[%s1 + $0xb0] sm:$0xff]
        %v1714 = vld [vmem:[%s1 + $0xb8] sm:$0xff]
        %v1715 = vld [vmem:[%s1 + $0xc0] sm:$0xff]
        %v1716 = vld [vmem:[%s1 + $0xc8] sm:$0xff]
        %v1717 = vld [vmem:[%s1 + $0xd0] sm:$0xff]
        %v1718 = vld [vmem:[%s1 + $0xd8] sm:$0xff]
        %v1719 = vld [vmem:[%s1 + $0xe0] sm:$0xff]
        %v1720 = vld [vmem:[%s1 + $0xe8] sm:$0xff]
        %v1721 = vld [vmem:[%s1 + $0xf0] sm:$0xff]
        %v1722 = vld [vmem:[%s1 + $0xf8] sm:$0xff]
        %v1723 = vld [vmem:[%s1514 + $0x1] sm:$0xff]
        %v1724 = vld [vmem:[%s1514 + $0x9] sm:$0xff]
        %v1725 = vld [vmem:[%s1514 + $0x19] sm:$0xff]
        %v1726 = vld [vmem:[%s1514 + $0x21] sm:$0xff]
        %v1727 = vld [vmem:[%s1514 + $0x31] sm:$0xff]
        %v1728 = vld [vmem:[%s1514 + $0x39] sm:$0xff]
        %v1729 = vld [vmem:[%s1514 + $0x49] sm:$0xff]
        %v1730 = vld [vmem:[%s1514 + $0x51] sm:$0xff]
        %v1731 = vld [vmem:[%s1514 + $0x61] sm:$0xff]
        %v1732 = vld [vmem:[%s1514 + $0x69] sm:$0xff]
        %v1733 = vld [vmem:[%s1514 + $0x79] sm:$0xff]
        %v1734 = vld [vmem:[%s1514 + $0x81] sm:$0xff]
        %v1735 = vld [vmem:[%s1514 + $0x91] sm:$0xff]
        %v1736 = vld [vmem:[%s1514 + $0x99] sm:$0xff]
        %v1737 = vld [vmem:[%s1514 + $0xa9] sm:$0xff]
        %v1738 = vld [vmem:[%s1514 + $0xb1] sm:$0xff]
        %v1739 = vld [vmem:[%s1514 + $0x2] sm:$0xff]
        %v1740 = vld [vmem:[%s1514 + $0xa] sm:$0xff]
        %v1741 = vld [vmem:[%s1514 + $0x1a] sm:$0xff]
        %v1742 = vld [vmem:[%s1514 + $0x22] sm:$0xff]
        %v1743 = vld [vmem:[%s1514 + $0x32] sm:$0xff]
        %v1744 = vld [vmem:[%s1514 + $0x3a] sm:$0xff]
        %v1745 = vld [vmem:[%s1514 + $0x4a] sm:$0xff]
        %v1746 = vld [vmem:[%s1514 + $0x52] sm:$0xff]
        %v1747 = vld [vmem:[%s1514 + $0x62] sm:$0xff]
        %v1748 = vld [vmem:[%s1514 + $0x6a] sm:$0xff]
        %v1749 = vld [vmem:[%s1514 + $0x7a] sm:$0xff]
        %v1750 = vld [vmem:[%s1514 + $0x82] sm:$0xff]
        %v1751 = vld [vmem:[%s1514 + $0x92] sm:$0xff]
        %v1752 = vld [vmem:[%s1514 + $0x9a] sm:$0xff]
        %v1753 = vld [vmem:[%s1514 + $0xaa] sm:$0xff]
        %v1754 = vld [vmem:[%s1514 + $0xb2] sm:$0xff]
        %s1755 = scalar_lea.vmem [#allocation2], 240
        %v1756 = vld [vmem:[%s1755] sm:$0xff]
        %v1757 = vld [vmem:[%s1755 + $0x8] sm:$0xff]
        %v1758 = vld [vmem:[%s1755 + $0x18] sm:$0xff]
        %v1759 = vld [vmem:[%s1755 + $0x20] sm:$0xff]
        %v1760 = vld [vmem:[%s1755 + $0x30] sm:$0xff]
        %v1761 = vld [vmem:[%s1755 + $0x38] sm:$0xff]
        %v1762 = vld [vmem:[%s1755 + $0x48] sm:$0xff]
        %v1763 = vld [vmem:[%s1755 + $0x50] sm:$0xff]
        %v1764 = vld [vmem:[%s1755 + $0x60] sm:$0xff]
        %v1765 = vld [vmem:[%s1755 + $0x68] sm:$0xff]
        %v1766 = vld [vmem:[%s1755 + $0x78] sm:$0xff]
        %v1767 = vld [vmem:[%s1755 + $0x80] sm:$0xff]
        %v1768 = vld [vmem:[%s1755 + $0x90] sm:$0xff]
        %v1769 = vld [vmem:[%s1755 + $0x98] sm:$0xff]
        %v1770 = vld [vmem:[%s1755 + $0xa8] sm:$0xff]
        %v1771 = vld [vmem:[%s1755 + $0xb0] sm:$0xff]
        %v1772 = vld [vmem:[%s1755 + $0x1] sm:$0xff]
        %v1773 = vld [vmem:[%s1755 + $0x9] sm:$0xff]
        %v1774 = vld [vmem:[%s1755 + $0x19] sm:$0xff]
        %v1775 = vld [vmem:[%s1755 + $0x21] sm:$0xff]
        %v1776 = vld [vmem:[%s1755 + $0x31] sm:$0xff]
        %v1777 = vld [vmem:[%s1755 + $0x39] sm:$0xff]
        %v1778 = vld [vmem:[%s1755 + $0x49] sm:$0xff]
        %v1779 = vld [vmem:[%s1755 + $0x51] sm:$0xff]
        %v1780 = vld [vmem:[%s1755 + $0x61] sm:$0xff]
        %v1781 = vld [vmem:[%s1755 + $0x69] sm:$0xff]
        %v1782 = vld [vmem:[%s1755 + $0x79] sm:$0xff]
        %v1783 = vld [vmem:[%s1755 + $0x81] sm:$0xff]
        %v1784 = vld [vmem:[%s1755 + $0x91] sm:$0xff]
        %v1785 = vld [vmem:[%s1755 + $0x99] sm:$0xff]
        %v1786 = vld [vmem:[%s1755 + $0xa9] sm:$0xff]
        %v1787 = vld [vmem:[%s1755 + $0xb1] sm:$0xff]
        %1804 = vrot.lane.b32.xlu0 %v1739, 64
        %v1805 = vpop.permute.xlu0 %1804
        %1806 = vrot.lane.b32.xlu0 %v1740, 64
        %v1807 = vpop.permute.xlu0 %1806
        %1808 = vrot.lane.b32.xlu0 %v1741, 64
        %v1809 = vpop.permute.xlu0 %1808
        %1810 = vrot.lane.b32.xlu0 %v1742, 64
        %v1811 = vpop.permute.xlu0 %1810
        %1812 = vrot.lane.b32.xlu0 %v1743, 64
        %v1813 = vpop.permute.xlu0 %1812
        %1814 = vrot.lane.b32.xlu0 %v1744, 64
        %v1815 = vpop.permute.xlu0 %1814
        %1816 = vrot.lane.b32.xlu0 %v1745, 64
        %v1817 = vpop.permute.xlu0 %1816
        %1818 = vrot.lane.b32.xlu0 %v1746, 64
        %v1819 = vpop.permute.xlu0 %1818
        %1820 = vrot.lane.b32.xlu0 %v1747, 64
        %v1821 = vpop.permute.xlu0 %1820
        %1822 = vrot.lane.b32.xlu0 %v1748, 64
        %v1823 = vpop.permute.xlu0 %1822
        %1824 = vrot.lane.b32.xlu0 %v1749, 64
        %v1825 = vpop.permute.xlu0 %1824
        %1826 = vrot.lane.b32.xlu0 %v1750, 64
        %v1827 = vpop.permute.xlu0 %1826
        %1828 = vrot.lane.b32.xlu0 %v1751, 64
        %v1829 = vpop.permute.xlu0 %1828
        %1830 = vrot.lane.b32.xlu0 %v1752, 64
        %v1831 = vpop.permute.xlu0 %1830
        %1832 = vrot.lane.b32.xlu0 %v1753, 64
        %v1833 = vpop.permute.xlu0 %1832
        %1834 = vrot.lane.b32.xlu0 %v1754, 64
        %v1835 = vpop.permute.xlu0 %1834
        %1868 = vrot.lane.b32.xlu0 %v1772, 64
        %v1869 = vpop.permute.xlu0 %1868
        %1870 = vrot.lane.b32.xlu0 %v1773, 64
        %v1871 = vpop.permute.xlu0 %1870
        %1872 = vrot.lane.b32.xlu0 %v1774, 64
        %v1873 = vpop.permute.xlu0 %1872
        %1874 = vrot.lane.b32.xlu0 %v1775, 64
        %v1875 = vpop.permute.xlu0 %1874
        %1876 = vrot.lane.b32.xlu0 %v1776, 64
        %v1877 = vpop.permute.xlu0 %1876
        %1878 = vrot.lane.b32.xlu0 %v1777, 64
        %v1879 = vpop.permute.xlu0 %1878
        %1880 = vrot.lane.b32.xlu0 %v1778, 64
        %v1881 = vpop.permute.xlu0 %1880
        %1882 = vrot.lane.b32.xlu0 %v1779, 64
        %v1883 = vpop.permute.xlu0 %1882
        %1884 = vrot.lane.b32.xlu0 %v1780, 64
        %v1885 = vpop.permute.xlu0 %1884
        %1886 = vrot.lane.b32.xlu0 %v1781, 64
        %v1887 = vpop.permute.xlu0 %1886
        %1888 = vrot.lane.b32.xlu0 %v1782, 64
        %v1889 = vpop.permute.xlu0 %1888
        %1890 = vrot.lane.b32.xlu0 %v1783, 64
        %v1891 = vpop.permute.xlu0 %1890
        %1892 = vrot.lane.b32.xlu0 %v1784, 64
        %v1893 = vpop.permute.xlu0 %1892
        %1894 = vrot.lane.b32.xlu0 %v1785, 64
        %v1895 = vpop.permute.xlu0 %1894
        %1896 = vrot.lane.b32.xlu0 %v1786, 64
        %v1897 = vpop.permute.xlu0 %1896
        %1898 = vrot.lane.b32.xlu0 %v1787, 64
        %v1899 = vpop.permute.xlu0 %1898
        %v1916 = vsel %vm331, %v1723, %v1805
        %v1917 = vsel %vm331, %v1724, %v1807
        %v1918 = vsel %vm331, %v1725, %v1809
        %v1919 = vsel %vm331, %v1726, %v1811
        %v1920 = vsel %vm331, %v1727, %v1813
        %v1921 = vsel %vm331, %v1728, %v1815
        %v1922 = vsel %vm331, %v1729, %v1817
        %v1923 = vsel %vm331, %v1730, %v1819
        %v1924 = vsel %vm331, %v1731, %v1821
        %v1925 = vsel %vm331, %v1732, %v1823
        %v1926 = vsel %vm331, %v1733, %v1825
        %v1927 = vsel %vm331, %v1734, %v1827
        %v1928 = vsel %vm331, %v1735, %v1829
        %v1929 = vsel %vm331, %v1736, %v1831
        %v1930 = vsel %vm331, %v1737, %v1833
        %v1931 = vsel %vm331, %v1738, %v1835
        %v1932 = vsel %vm331, %v1756, %v1869
        %v1933 = vsel %vm331, %v1757, %v1871
        %v1934 = vsel %vm331, %v1758, %v1873
        %v1935 = vsel %vm331, %v1759, %v1875
        %v1936 = vsel %vm331, %v1760, %v1877
        %v1937 = vsel %vm331, %v1761, %v1879
        %v1938 = vsel %vm331, %v1762, %v1881
        %v1939 = vsel %vm331, %v1763, %v1883
        %v1940 = vsel %vm331, %v1764, %v1885
        %v1941 = vsel %vm331, %v1765, %v1887
        %v1942 = vsel %vm331, %v1766, %v1889
        %v1943 = vsel %vm331, %v1767, %v1891
        %v1944 = vsel %vm331, %v1768, %v1893
        %v1945 = vsel %vm331, %v1769, %v1895
        %v1946 = vsel %vm331, %v1770, %v1897
        %v1947 = vsel %vm331, %v1771, %v1899
        %v1948 = vld [vmem:[%s1 + $0x100] sm:$0xff]
        %v1949 = vld [vmem:[%s1 + $0x108] sm:$0xff]
        %v1950 = vld [vmem:[%s1 + $0x110] sm:$0xff]
        %v1951 = vld [vmem:[%s1 + $0x118] sm:$0xff]
        %v1952 = vld [vmem:[%s1 + $0x120] sm:$0xff]
        %v1953 = vld [vmem:[%s1 + $0x128] sm:$0xff]
        %v1954 = vld [vmem:[%s1 + $0x130] sm:$0xff]
        %v1955 = vld [vmem:[%s1 + $0x138] sm:$0xff]
        %v1956 = vld [vmem:[%s1 + $0x140] sm:$0xff]
        %v1957 = vld [vmem:[%s1 + $0x148] sm:$0xff]
        %v1958 = vld [vmem:[%s1 + $0x150] sm:$0xff]
        %v1959 = vld [vmem:[%s1 + $0x158] sm:$0xff]
        %v1960 = vld [vmem:[%s1 + $0x160] sm:$0xff]
        %v1961 = vld [vmem:[%s1 + $0x168] sm:$0xff]
        %v1962 = vld [vmem:[%s1 + $0x170] sm:$0xff]
        %v1963 = vld [vmem:[%s1 + $0x178] sm:$0xff]
        %v1964 = vld [vmem:[%s1 + $0x180] sm:$0xff]
        %v1965 = vld [vmem:[%s1 + $0x188] sm:$0xff]
        %v1966 = vld [vmem:[%s1 + $0x190] sm:$0xff]
        %v1967 = vld [vmem:[%s1 + $0x198] sm:$0xff]
        %v1968 = vld [vmem:[%s1 + $0x1a0] sm:$0xff]
        %v1969 = vld [vmem:[%s1 + $0x1a8] sm:$0xff]
        %v1970 = vld [vmem:[%s1 + $0x1b0] sm:$0xff]
        %v1971 = vld [vmem:[%s1 + $0x1b8] sm:$0xff]
        %v1972 = vld [vmem:[%s1 + $0x1c0] sm:$0xff]
        %v1973 = vld [vmem:[%s1 + $0x1c8] sm:$0xff]
        %v1974 = vld [vmem:[%s1 + $0x1d0] sm:$0xff]
        %v1975 = vld [vmem:[%s1 + $0x1d8] sm:$0xff]
        %v1976 = vld [vmem:[%s1 + $0x1e0] sm:$0xff]
        %v1977 = vld [vmem:[%s1 + $0x1e8] sm:$0xff]
        %v1978 = vld [vmem:[%s1 + $0x1f0] sm:$0xff]
        %v1979 = vld [vmem:[%s1 + $0x1f8] sm:$0xff]
        %1980 = vmatpush.msra.mxu0 %v1963
        %1981 = vmatpush.msra.mxu0 %v1962
        %1982 = vmatpush.msra.mxu0 %v1961
        %1983 = vmatpush.msra.mxu0 %v1960
        %1984 = vmatpush.msra.mxu0 %v1959
        %1985 = vmatpush.msra.mxu0 %v1958
        %1986 = vmatpush.msra.mxu0 %v1957
        %1987 = vmatpush.msra.mxu0 %v1956
        %1988 = vmatpush.msra.mxu0 %v1955
        %1989 = vmatpush.msra.mxu0 %v1954
        %1990 = vmatpush.msra.mxu0 %v1953
        %1991 = vmatpush.msra.mxu0 %v1952
        %1992 = vmatpush.msra.mxu0 %v1951
        %1993 = vmatpush.msra.mxu0 %v1950
        %1994 = vmatpush.msra.mxu0 %v1949
        %1995 = vmatpush.msra.mxu0 %v1948
        %1996 = vmatmul.f32.gmra.mxu0 %v1916
        %v1997 = vpop.f32.mrf.mxu0
        %v1998 = vadd.f32 0.0, %v1997
        %1999 = vmatmul.f32.gmra.mxu0 %v1917
        %v2000 = vpop.f32.mrf.mxu0
        %v2001 = vadd.f32 0.0, %v2000
        %2002 = vmatmul.f32.gmra.mxu0 %v1918
        %v2003 = vpop.f32.mrf.mxu0
        %v2004 = vadd.f32 0.0, %v2003
        %2005 = vmatmul.f32.gmra.mxu0 %v1919
        %v2006 = vpop.f32.mrf.mxu0
        %v2007 = vadd.f32 0.0, %v2006
        %2008 = vmatmul.f32.gmra.mxu0 %v1920
        %v2009 = vpop.f32.mrf.mxu0
        %v2010 = vadd.f32 0.0, %v2009
        %2011 = vmatmul.f32.gmra.mxu0 %v1921
        %v2012 = vpop.f32.mrf.mxu0
        %v2013 = vadd.f32 0.0, %v2012
        %2014 = vmatmul.f32.gmra.mxu0 %v1922
        %v2015 = vpop.f32.mrf.mxu0
        %v2016 = vadd.f32 0.0, %v2015
        %2017 = vmatmul.f32.gmra.mxu0 %v1923
        %v2018 = vpop.f32.mrf.mxu0
        %v2019 = vadd.f32 0.0, %v2018
        %2020 = vmatmul.f32.gmra.mxu0 %v1924
        %v2021 = vpop.f32.mrf.mxu0
        %v2022 = vadd.f32 0.0, %v2021
        %2023 = vmatmul.f32.gmra.mxu0 %v1925
        %v2024 = vpop.f32.mrf.mxu0
        %v2025 = vadd.f32 0.0, %v2024
        %2026 = vmatmul.f32.gmra.mxu0 %v1926
        %v2027 = vpop.f32.mrf.mxu0
        %v2028 = vadd.f32 0.0, %v2027
        %2029 = vmatmul.f32.gmra.mxu0 %v1927
        %v2030 = vpop.f32.mrf.mxu0
        %v2031 = vadd.f32 0.0, %v2030
        %2032 = vmatmul.f32.gmra.mxu0 %v1928
        %v2033 = vpop.f32.mrf.mxu0
        %v2034 = vadd.f32 0.0, %v2033
        %2035 = vmatmul.f32.gmra.mxu0 %v1929
        %v2036 = vpop.f32.mrf.mxu0
        %v2037 = vadd.f32 0.0, %v2036
        %2038 = vmatmul.f32.gmra.mxu0 %v1930
        %v2039 = vpop.f32.mrf.mxu0
        %v2040 = vadd.f32 0.0, %v2039
        %2041 = vmatmul.f32.gmra.mxu0 %v1931
        %v2042 = vpop.f32.mrf.mxu0
        %v2043 = vadd.f32 0.0, %v2042
        %2044 = vdwg.mxu0
        %2045 = vmatpush.msra.mxu0 %v1979
        %2046 = vmatpush.msra.mxu0 %v1978
        %2047 = vmatpush.msra.mxu0 %v1977
        %2048 = vmatpush.msra.mxu0 %v1976
        %2049 = vmatpush.msra.mxu0 %v1975
        %2050 = vmatpush.msra.mxu0 %v1974
        %2051 = vmatpush.msra.mxu0 %v1973
        %2052 = vmatpush.msra.mxu0 %v1972
        %2053 = vmatpush.msra.mxu0 %v1971
        %2054 = vmatpush.msra.mxu0 %v1970
        %2055 = vmatpush.msra.mxu0 %v1969
        %2056 = vmatpush.msra.mxu0 %v1968
        %2057 = vmatpush.msra.mxu0 %v1967
        %2058 = vmatpush.msra.mxu0 %v1966
        %2059 = vmatpush.msra.mxu0 %v1965
        %2060 = vmatpush.msra.mxu0 %v1964
        %2061 = vmatmul.f32.gmra.mxu0 %v1932
        %v2062 = vpop.f32.mrf.mxu0
        %v2063 = vadd.f32 %v1998, %v2062
        %2064 = vmatmul.f32.gmra.mxu0 %v1933
        %v2065 = vpop.f32.mrf.mxu0
        %v2066 = vadd.f32 %v2001, %v2065
        %2067 = vmatmul.f32.gmra.mxu0 %v1934
        %v2068 = vpop.f32.mrf.mxu0
        %v2069 = vadd.f32 %v2004, %v2068
        %2070 = vmatmul.f32.gmra.mxu0 %v1935
        %v2071 = vpop.f32.mrf.mxu0
        %v2072 = vadd.f32 %v2007, %v2071
        %2073 = vmatmul.f32.gmra.mxu0 %v1936
        %v2074 = vpop.f32.mrf.mxu0
        %v2075 = vadd.f32 %v2010, %v2074
        %2076 = vmatmul.f32.gmra.mxu0 %v1937
        %v2077 = vpop.f32.mrf.mxu0
        %v2078 = vadd.f32 %v2013, %v2077
        %2079 = vmatmul.f32.gmra.mxu0 %v1938
        %v2080 = vpop.f32.mrf.mxu0
        %v2081 = vadd.f32 %v2016, %v2080
        %2082 = vmatmul.f32.gmra.mxu0 %v1939
        %v2083 = vpop.f32.mrf.mxu0
        %v2084 = vadd.f32 %v2019, %v2083
        %2085 = vmatmul.f32.gmra.mxu0 %v1940
        %v2086 = vpop.f32.mrf.mxu0
        %v2087 = vadd.f32 %v2022, %v2086
        %2088 = vmatmul.f32.gmra.mxu0 %v1941
        %v2089 = vpop.f32.mrf.mxu0
        %v2090 = vadd.f32 %v2025, %v2089
        %2091 = vmatmul.f32.gmra.mxu0 %v1942
        %v2092 = vpop.f32.mrf.mxu0
        %v2093 = vadd.f32 %v2028, %v2092
        %2094 = vmatmul.f32.gmra.mxu0 %v1943
        %v2095 = vpop.f32.mrf.mxu0
        %v2096 = vadd.f32 %v2031, %v2095
        %2097 = vmatmul.f32.gmra.mxu0 %v1944
        %v2098 = vpop.f32.mrf.mxu0
        %v2099 = vadd.f32 %v2034, %v2098
        %2100 = vmatmul.f32.gmra.mxu0 %v1945
        %v2101 = vpop.f32.mrf.mxu0
        %v2102 = vadd.f32 %v2037, %v2101
        %2103 = vmatmul.f32.gmra.mxu0 %v1946
        %v2104 = vpop.f32.mrf.mxu0
        %v2105 = vadd.f32 %v2040, %v2104
        %2106 = vmatmul.f32.gmra.mxu0 %v1947
        %v2107 = vpop.f32.mrf.mxu0
        %v2108 = vadd.f32 %v2043, %v2107
        %2109 = vdwg.mxu0
        %2110 = vmatpush.msra.mxu0 %v1706
        %2111 = vmatpush.msra.mxu0 %v1705
        %2112 = vmatpush.msra.mxu0 %v1704
        %2113 = vmatpush.msra.mxu0 %v1703
        %2114 = vmatpush.msra.mxu0 %v1702
        %2115 = vmatpush.msra.mxu0 %v1701
        %2116 = vmatpush.msra.mxu0 %v1700
        %2117 = vmatpush.msra.mxu0 %v1699
        %2118 = vmatpush.msra.mxu0 %v1698
        %2119 = vmatpush.msra.mxu0 %v1697
        %2120 = vmatpush.msra.mxu0 %v1696
        %2121 = vmatpush.msra.mxu0 %v1695
        %2122 = vmatpush.msra.mxu0 %v1694
        %2123 = vmatpush.msra.mxu0 %v1693
        %2124 = vmatpush.msra.mxu0 %v1692
        %2125 = vmatpush.msra.mxu0 %v1691
        %2126 = vmatmul.f32.gmra.mxu0 %v1659
        %v2127 = vpop.f32.mrf.mxu0
        %v2128 = vadd.f32 %v2063, %v2127
        %2129 = vmatmul.f32.gmra.mxu0 %v1660
        %v2130 = vpop.f32.mrf.mxu0
        %v2131 = vadd.f32 %v2066, %v2130
        %2132 = vmatmul.f32.gmra.mxu0 %v1661
        %v2133 = vpop.f32.mrf.mxu0
        %v2134 = vadd.f32 %v2069, %v2133
        %2135 = vmatmul.f32.gmra.mxu0 %v1662
        %v2136 = vpop.f32.mrf.mxu0
        %v2137 = vadd.f32 %v2072, %v2136
        %2138 = vmatmul.f32.gmra.mxu0 %v1663
        %v2139 = vpop.f32.mrf.mxu0
        %v2140 = vadd.f32 %v2075, %v2139
        %2141 = vmatmul.f32.gmra.mxu0 %v1664
        %v2142 = vpop.f32.mrf.mxu0
        %v2143 = vadd.f32 %v2078, %v2142
        %2144 = vmatmul.f32.gmra.mxu0 %v1665
        %v2145 = vpop.f32.mrf.mxu0
        %v2146 = vadd.f32 %v2081, %v2145
        %2147 = vmatmul.f32.gmra.mxu0 %v1666
        %v2148 = vpop.f32.mrf.mxu0
        %v2149 = vadd.f32 %v2084, %v2148
        %2150 = vmatmul.f32.gmra.mxu0 %v1667
        %v2151 = vpop.f32.mrf.mxu0
        %v2152 = vadd.f32 %v2087, %v2151
        %2153 = vmatmul.f32.gmra.mxu0 %v1668
        %v2154 = vpop.f32.mrf.mxu0
        %v2155 = vadd.f32 %v2090, %v2154
        %2156 = vmatmul.f32.gmra.mxu0 %v1669
        %v2157 = vpop.f32.mrf.mxu0
        %v2158 = vadd.f32 %v2093, %v2157
        %2159 = vmatmul.f32.gmra.mxu0 %v1670
        %v2160 = vpop.f32.mrf.mxu0
        %v2161 = vadd.f32 %v2096, %v2160
        %2162 = vmatmul.f32.gmra.mxu0 %v1671
        %v2163 = vpop.f32.mrf.mxu0
        %v2164 = vadd.f32 %v2099, %v2163
        %2165 = vmatmul.f32.gmra.mxu0 %v1672
        %v2166 = vpop.f32.mrf.mxu0
        %v2167 = vadd.f32 %v2102, %v2166
        %2168 = vmatmul.f32.gmra.mxu0 %v1673
        %v2169 = vpop.f32.mrf.mxu0
        %v2170 = vadd.f32 %v2105, %v2169
        %2171 = vmatmul.f32.gmra.mxu0 %v1674
        %v2172 = vpop.f32.mrf.mxu0
        %v2173 = vadd.f32 %v2108, %v2172
        %2174 = vdwg.mxu0
        %2175 = vmatpush.msra.mxu0 %v1722
        %2176 = vmatpush.msra.mxu0 %v1721
        %2177 = vmatpush.msra.mxu0 %v1720
        %2178 = vmatpush.msra.mxu0 %v1719
        %2179 = vmatpush.msra.mxu0 %v1718
        %2180 = vmatpush.msra.mxu0 %v1717
        %2181 = vmatpush.msra.mxu0 %v1716
        %2182 = vmatpush.msra.mxu0 %v1715
        %2183 = vmatpush.msra.mxu0 %v1714
        %2184 = vmatpush.msra.mxu0 %v1713
        %2185 = vmatpush.msra.mxu0 %v1712
        %2186 = vmatpush.msra.mxu0 %v1711
        %2187 = vmatpush.msra.mxu0 %v1710
        %2188 = vmatpush.msra.mxu0 %v1709
        %2189 = vmatpush.msra.mxu0 %v1708
        %2190 = vmatpush.msra.mxu0 %v1707
        %2191 = vmatmul.f32.gmra.mxu0 %v1675
        %v2192 = vpop.f32.mrf.mxu0
        %v2193 = vadd.f32 %v2128, %v2192
        %2194 = vmatmul.f32.gmra.mxu0 %v1676
        %v2195 = vpop.f32.mrf.mxu0
        %v2196 = vadd.f32 %v2131, %v2195
        %2197 = vmatmul.f32.gmra.mxu0 %v1677
        %v2198 = vpop.f32.mrf.mxu0
        %v2199 = vadd.f32 %v2134, %v2198
        %2200 = vmatmul.f32.gmra.mxu0 %v1678
        %v2201 = vpop.f32.mrf.mxu0
        %v2202 = vadd.f32 %v2137, %v2201
        %2203 = vmatmul.f32.gmra.mxu0 %v1679
        %v2204 = vpop.f32.mrf.mxu0
        %v2205 = vadd.f32 %v2140, %v2204
        %2206 = vmatmul.f32.gmra.mxu0 %v1680
        %v2207 = vpop.f32.mrf.mxu0
        %v2208 = vadd.f32 %v2143, %v2207
        %2209 = vmatmul.f32.gmra.mxu0 %v1681
        %v2210 = vpop.f32.mrf.mxu0
        %v2211 = vadd.f32 %v2146, %v2210
        %2212 = vmatmul.f32.gmra.mxu0 %v1682
        %v2213 = vpop.f32.mrf.mxu0
        %v2214 = vadd.f32 %v2149, %v2213
        %2215 = vmatmul.f32.gmra.mxu0 %v1683
        %v2216 = vpop.f32.mrf.mxu0
        %v2217 = vadd.f32 %v2152, %v2216
        %2218 = vmatmul.f32.gmra.mxu0 %v1684
        %v2219 = vpop.f32.mrf.mxu0
        %v2220 = vadd.f32 %v2155, %v2219
        %2221 = vmatmul.f32.gmra.mxu0 %v1685
        %v2222 = vpop.f32.mrf.mxu0
        %v2223 = vadd.f32 %v2158, %v2222
        %2224 = vmatmul.f32.gmra.mxu0 %v1686
        %v2225 = vpop.f32.mrf.mxu0
        %v2226 = vadd.f32 %v2161, %v2225
        %2227 = vmatmul.f32.gmra.mxu0 %v1687
        %v2228 = vpop.f32.mrf.mxu0
        %v2229 = vadd.f32 %v2164, %v2228
        %2230 = vmatmul.f32.gmra.mxu0 %v1688
        %v2231 = vpop.f32.mrf.mxu0
        %v2232 = vadd.f32 %v2167, %v2231
        %2233 = vmatmul.f32.gmra.mxu0 %v1689
        %v2234 = vpop.f32.mrf.mxu0
        %v2235 = vadd.f32 %v2170, %v2234
        %2236 = vmatmul.f32.gmra.mxu0 %v1690
        %v2237 = vpop.f32.mrf.mxu0
        %v2238 = vadd.f32 %v2173, %v2237
        %2239 = vdwg.mxu0
        %v2240 = vld [vmem:[%s1755 + $0x2] sm:$0xff]
        %v2241 = vld [vmem:[%s1755 + $0xa] sm:$0xff]
        %v2242 = vld [vmem:[%s1755 + $0x1a] sm:$0xff]
        %v2243 = vld [vmem:[%s1755 + $0x22] sm:$0xff]
        %v2244 = vld [vmem:[%s1755 + $0x32] sm:$0xff]
        %v2245 = vld [vmem:[%s1755 + $0x3a] sm:$0xff]
        %v2246 = vld [vmem:[%s1755 + $0x4a] sm:$0xff]
        %v2247 = vld [vmem:[%s1755 + $0x52] sm:$0xff]
        %v2248 = vld [vmem:[%s1755 + $0x62] sm:$0xff]
        %v2249 = vld [vmem:[%s1755 + $0x6a] sm:$0xff]
        %v2250 = vld [vmem:[%s1755 + $0x7a] sm:$0xff]
        %v2251 = vld [vmem:[%s1755 + $0x82] sm:$0xff]
        %v2252 = vld [vmem:[%s1755 + $0x92] sm:$0xff]
        %v2253 = vld [vmem:[%s1755 + $0x9a] sm:$0xff]
        %v2254 = vld [vmem:[%s1755 + $0xaa] sm:$0xff]
        %v2255 = vld [vmem:[%s1755 + $0xb2] sm:$0xff]
        %v2256 = vld [vmem:[%s1 + $0x200] sm:$0xff]
        %v2257 = vld [vmem:[%s1 + $0x208] sm:$0xff]
        %v2258 = vld [vmem:[%s1 + $0x210] sm:$0xff]
        %v2259 = vld [vmem:[%s1 + $0x218] sm:$0xff]
        %v2260 = vld [vmem:[%s1 + $0x220] sm:$0xff]
        %v2261 = vld [vmem:[%s1 + $0x228] sm:$0xff]
        %v2262 = vld [vmem:[%s1 + $0x230] sm:$0xff]
        %v2263 = vld [vmem:[%s1 + $0x238] sm:$0xff]
        %v2265 = vsel %vm331, %v2240, 0
        %v2268 = vsel %vm331, %v2241, 0
        %v2271 = vsel %vm331, %v2242, 0
        %v2274 = vsel %vm331, %v2243, 0
        %v2277 = vsel %vm331, %v2244, 0
        %v2280 = vsel %vm331, %v2245, 0
        %v2283 = vsel %vm331, %v2246, 0
        %v2286 = vsel %vm331, %v2247, 0
        %v2289 = vsel %vm331, %v2248, 0
        %v2292 = vsel %vm331, %v2249, 0
        %v2295 = vsel %vm331, %v2250, 0
        %v2298 = vsel %vm331, %v2251, 0
        %v2301 = vsel %vm331, %v2252, 0
        %v2304 = vsel %vm331, %v2253, 0
        %v2307 = vsel %vm331, %v2254, 0
        %v2310 = vsel %vm331, %v2255, 0
        %2312 = vmatpush.msra.mxu0 0.0
        %2313 = vmatpush.msra.mxu0 0.0
        %2314 = vmatpush.msra.mxu0 0.0
        %2315 = vmatpush.msra.mxu0 0.0
        %2316 = vmatpush.msra.mxu0 0.0
        %2317 = vmatpush.msra.mxu0 0.0
        %2318 = vmatpush.msra.mxu0 0.0
        %2319 = vmatpush.msra.mxu0 0.0
        %2320 = vmatpush.msra.mxu0 %v2263
        %2321 = vmatpush.msra.mxu0 %v2262
        %2322 = vmatpush.msra.mxu0 %v2261
        %2323 = vmatpush.msra.mxu0 %v2260
        %2324 = vmatpush.msra.mxu0 %v2259
        %2325 = vmatpush.msra.mxu0 %v2258
        %2326 = vmatpush.msra.mxu0 %v2257
        %2327 = vmatpush.msra.mxu0 %v2256
        %2328 = vmatmul.f32.gmra.mxu0 %v2265
        %v2329 = vpop.f32.mrf.mxu0
        %v2330 = vadd.f32 0.0, %v2329
        %2331 = vmatmul.f32.gmra.mxu0 %v2268
        %v2332 = vpop.f32.mrf.mxu0
        %v2333 = vadd.f32 0.0, %v2332
        %2334 = vmatmul.f32.gmra.mxu0 %v2271
        %v2335 = vpop.f32.mrf.mxu0
        %v2336 = vadd.f32 0.0, %v2335
        %2337 = vmatmul.f32.gmra.mxu0 %v2274
        %v2338 = vpop.f32.mrf.mxu0
        %v2339 = vadd.f32 0.0, %v2338
        %2340 = vmatmul.f32.gmra.mxu0 %v2277
        %v2341 = vpop.f32.mrf.mxu0
        %v2342 = vadd.f32 0.0, %v2341
        %2343 = vmatmul.f32.gmra.mxu0 %v2280
        %v2344 = vpop.f32.mrf.mxu0
        %v2345 = vadd.f32 0.0, %v2344
        %2346 = vmatmul.f32.gmra.mxu0 %v2283
        %v2347 = vpop.f32.mrf.mxu0
        %v2348 = vadd.f32 0.0, %v2347
        %2349 = vmatmul.f32.gmra.mxu0 %v2286
        %v2350 = vpop.f32.mrf.mxu0
        %v2351 = vadd.f32 0.0, %v2350
        %2352 = vmatmul.f32.gmra.mxu0 %v2289
        %v2353 = vpop.f32.mrf.mxu0
        %v2354 = vadd.f32 0.0, %v2353
        %2355 = vmatmul.f32.gmra.mxu0 %v2292
        %v2356 = vpop.f32.mrf.mxu0
        %v2357 = vadd.f32 0.0, %v2356
        %2358 = vmatmul.f32.gmra.mxu0 %v2295
        %v2359 = vpop.f32.mrf.mxu0
        %v2360 = vadd.f32 0.0, %v2359
        %2361 = vmatmul.f32.gmra.mxu0 %v2298
        %v2362 = vpop.f32.mrf.mxu0
        %v2363 = vadd.f32 0.0, %v2362
        %2364 = vmatmul.f32.gmra.mxu0 %v2301
        %v2365 = vpop.f32.mrf.mxu0
        %v2366 = vadd.f32 0.0, %v2365
        %2367 = vmatmul.f32.gmra.mxu0 %v2304
        %v2368 = vpop.f32.mrf.mxu0
        %v2369 = vadd.f32 0.0, %v2368
        %2370 = vmatmul.f32.gmra.mxu0 %v2307
        %v2371 = vpop.f32.mrf.mxu0
        %v2372 = vadd.f32 0.0, %v2371
        %2373 = vmatmul.f32.gmra.mxu0 %v2310
        %v2374 = vpop.f32.mrf.mxu0
        %v2375 = vadd.f32 0.0, %v2374
        %2376 = vdwg.mxu0
        %v2377 = vadd.f32 %v2193, %v2330
        %v2378 = vadd.f32 %v2196, %v2333
        %v2379 = vadd.f32 %v2199, %v2336
        %v2380 = vadd.f32 %v2202, %v2339
        %v2381 = vadd.f32 %v2205, %v2342
        %v2382 = vadd.f32 %v2208, %v2345
        %v2383 = vadd.f32 %v2211, %v2348
        %v2384 = vadd.f32 %v2214, %v2351
        %v2385 = vadd.f32 %v2217, %v2354
        %v2386 = vadd.f32 %v2220, %v2357
        %v2387 = vadd.f32 %v2223, %v2360
        %v2388 = vadd.f32 %v2226, %v2363
        %v2389 = vadd.f32 %v2229, %v2366
        %v2390 = vadd.f32 %v2232, %v2369
        %v2391 = vadd.f32 %v2235, %v2372
        %v2392 = vadd.f32 %v2238, %v2375
        %v2393 = vadd.f32 %v2377, %v1414
        %v2394 = vadd.f32 %v2378, %v1414
        %v2395 = vadd.f32 %v2379, %v1414
        %v2396 = vadd.f32 %v2380, %v1414
        %v2397 = vadd.f32 %v2381, %v1414
        %v2398 = vadd.f32 %v2382, %v1414
        %v2399 = vadd.f32 %v2383, %v1414
        %v2400 = vadd.f32 %v2384, %v1414
        %v2401 = vadd.f32 %v2385, %v1414
        %v2402 = vadd.f32 %v2386, %v1414
        %v2403 = vadd.f32 %v2387, %v1414
        %v2404 = vadd.f32 %v2388, %v1414
        %v2405 = vadd.f32 %v2389, %v1414
        %v2406 = vadd.f32 %v2390, %v1414
        %v2407 = vadd.f32 %v2391, %v1414
        %v2408 = vadd.f32 %v2392, %v1414
        %v2409 = vmax.f32 %v2393, 0.0
        %v2410 = vmax.f32 %v2394, 0.0
        %v2411 = vmax.f32 %v2395, 0.0
        %v2412 = vmax.f32 %v2396, 0.0
        %v2413 = vmax.f32 %v2397, 0.0
        %v2414 = vmax.f32 %v2398, 0.0
        %v2415 = vmax.f32 %v2399, 0.0
        %v2416 = vmax.f32 %v2400, 0.0
        %v2417 = vmax.f32 %v2401, 0.0
        %v2418 = vmax.f32 %v2402, 0.0
        %v2419 = vmax.f32 %v2403, 0.0
        %v2420 = vmax.f32 %v2404, 0.0
        %v2421 = vmax.f32 %v2405, 0.0
        %v2422 = vmax.f32 %v2406, 0.0
        %v2423 = vmax.f32 %v2407, 0.0
        %v2424 = vmax.f32 %v2408, 0.0
        %s2425 = scalar_lea.vmem [#allocation3], 216
        %2426 = vst.msk [vmem:[%s2425 + $0x1] sm:$0xff] %vm331, %v2409
        %2427 = vst.msk [vmem:[%s2425 + $0x9] sm:$0xff] %vm331, %v2410
        %2428 = vst.msk [vmem:[%s2425 + $0x19] sm:$0xff] %vm331, %v2411
        %2429 = vst.msk [vmem:[%s2425 + $0x21] sm:$0xff] %vm331, %v2412
        %2430 = vst.msk [vmem:[%s2425 + $0x31] sm:$0xff] %vm331, %v2413
        %2431 = vst.msk [vmem:[%s2425 + $0x39] sm:$0xff] %vm331, %v2414
        %2432 = vst.msk [vmem:[%s2425 + $0x49] sm:$0xff] %vm331, %v2415
        %2433 = vst.msk [vmem:[%s2425 + $0x51] sm:$0xff] %vm331, %v2416
        %2434 = vst.msk [vmem:[%s2425 + $0x61] sm:$0xff] %vm331, %v2417
        %2435 = vst.msk [vmem:[%s2425 + $0x69] sm:$0xff] %vm331, %v2418
        %2436 = vst.msk [vmem:[%s2425 + $0x79] sm:$0xff] %vm331, %v2419
        %2437 = vst.msk [vmem:[%s2425 + $0x81] sm:$0xff] %vm331, %v2420
        %2438 = vst.msk [vmem:[%s2425 + $0x91] sm:$0xff] %vm331, %v2421
        %2439 = vst.msk [vmem:[%s2425 + $0x99] sm:$0xff] %vm331, %v2422
        %2440 = vst.msk [vmem:[%s2425 + $0xa9] sm:$0xff] %vm331, %v2423
        %2441 = vst.msk [vmem:[%s2425 + $0xb1] sm:$0xff] %vm331, %v2424
        %v2442 = vld [vmem:[#allocation3] sm:$0xff]
        %v2443 = vld [vmem:[#allocation3 + $0x8] sm:$0xff]
        %v2444 = vld [vmem:[#allocation3 + $0x18] sm:$0xff]
        %v2445 = vld [vmem:[#allocation3 + $0x20] sm:$0xff]
        %v2446 = vld [vmem:[#allocation3 + $0x30] sm:$0xff]
        %v2447 = vld [vmem:[#allocation3 + $0x38] sm:$0xff]
        %v2448 = vld [vmem:[#allocation3 + $0x48] sm:$0xff]
        %v2449 = vld [vmem:[#allocation3 + $0x50] sm:$0xff]
        %v2450 = vld [vmem:[#allocation3 + $0x60] sm:$0xff]
        %v2451 = vld [vmem:[#allocation3 + $0x68] sm:$0xff]
        %v2452 = vld [vmem:[#allocation3 + $0x78] sm:$0xff]
        %v2453 = vld [vmem:[#allocation3 + $0x80] sm:$0xff]
        %v2454 = vld [vmem:[#allocation3 + $0x90] sm:$0xff]
        %v2455 = vld [vmem:[#allocation3 + $0x98] sm:$0xff]
        %v2456 = vld [vmem:[#allocation3 + $0xa8] sm:$0xff]
        %v2457 = vld [vmem:[#allocation3 + $0xb0] sm:$0xff]
        %v2458 = vld [vmem:[#allocation3 + $0x1] sm:$0xff]
        %v2459 = vld [vmem:[#allocation3 + $0x9] sm:$0xff]
        %v2460 = vld [vmem:[#allocation3 + $0x19] sm:$0xff]
        %v2461 = vld [vmem:[#allocation3 + $0x21] sm:$0xff]
        %v2462 = vld [vmem:[#allocation3 + $0x31] sm:$0xff]
        %v2463 = vld [vmem:[#allocation3 + $0x39] sm:$0xff]
        %v2464 = vld [vmem:[#allocation3 + $0x49] sm:$0xff]
        %v2465 = vld [vmem:[#allocation3 + $0x51] sm:$0xff]
        %v2466 = vld [vmem:[#allocation3 + $0x61] sm:$0xff]
        %v2467 = vld [vmem:[#allocation3 + $0x69] sm:$0xff]
        %v2468 = vld [vmem:[#allocation3 + $0x79] sm:$0xff]
        %v2469 = vld [vmem:[#allocation3 + $0x81] sm:$0xff]
        %v2470 = vld [vmem:[#allocation3 + $0x91] sm:$0xff]
        %v2471 = vld [vmem:[#allocation3 + $0x99] sm:$0xff]
        %v2472 = vld [vmem:[#allocation3 + $0xa9] sm:$0xff]
        %v2473 = vld [vmem:[#allocation3 + $0xb1] sm:$0xff]
        %v2474 = vld [vmem:[#allocation3 + $0x2] sm:$0xff]
        %v2475 = vld [vmem:[#allocation3 + $0xa] sm:$0xff]
        %v2476 = vld [vmem:[#allocation3 + $0x1a] sm:$0xff]
        %v2477 = vld [vmem:[#allocation3 + $0x22] sm:$0xff]
        %v2478 = vld [vmem:[#allocation3 + $0x32] sm:$0xff]
        %v2479 = vld [vmem:[#allocation3 + $0x3a] sm:$0xff]
        %v2480 = vld [vmem:[#allocation3 + $0x4a] sm:$0xff]
        %v2481 = vld [vmem:[#allocation3 + $0x52] sm:$0xff]
        %v2482 = vld [vmem:[#allocation3 + $0x62] sm:$0xff]
        %v2483 = vld [vmem:[#allocation3 + $0x6a] sm:$0xff]
        %v2484 = vld [vmem:[#allocation3 + $0x7a] sm:$0xff]
        %v2485 = vld [vmem:[#allocation3 + $0x82] sm:$0xff]
        %v2486 = vld [vmem:[#allocation3 + $0x92] sm:$0xff]
        %v2487 = vld [vmem:[#allocation3 + $0x9a] sm:$0xff]
        %v2488 = vld [vmem:[#allocation3 + $0xaa] sm:$0xff]
        %v2489 = vld [vmem:[#allocation3 + $0xb2] sm:$0xff]
        %v2490 = vld [vmem:[%s1448] sm:$0xff]
        %v2491 = vld [vmem:[%s1448 + $0x8] sm:$0xff]
        %v2492 = vld [vmem:[%s1448 + $0x18] sm:$0xff]
        %v2493 = vld [vmem:[%s1448 + $0x20] sm:$0xff]
        %v2494 = vld [vmem:[%s1448 + $0x30] sm:$0xff]
        %v2495 = vld [vmem:[%s1448 + $0x38] sm:$0xff]
        %v2496 = vld [vmem:[%s1448 + $0x48] sm:$0xff]
        %v2497 = vld [vmem:[%s1448 + $0x50] sm:$0xff]
        %v2498 = vld [vmem:[%s1448 + $0x60] sm:$0xff]
        %v2499 = vld [vmem:[%s1448 + $0x68] sm:$0xff]
        %v2500 = vld [vmem:[%s1448 + $0x78] sm:$0xff]
        %v2501 = vld [vmem:[%s1448 + $0x80] sm:$0xff]
        %v2502 = vld [vmem:[%s1448 + $0x90] sm:$0xff]
        %v2503 = vld [vmem:[%s1448 + $0x98] sm:$0xff]
        %v2504 = vld [vmem:[%s1448 + $0xa8] sm:$0xff]
        %v2505 = vld [vmem:[%s1448 + $0xb0] sm:$0xff]
        %2522 = vrot.lane.b32.xlu0 %v2458, 64
        %v2523 = vpop.permute.xlu0 %2522
        %2524 = vrot.lane.b32.xlu0 %v2459, 64
        %v2525 = vpop.permute.xlu0 %2524
        %2526 = vrot.lane.b32.xlu0 %v2460, 64
        %v2527 = vpop.permute.xlu0 %2526
        %2528 = vrot.lane.b32.xlu0 %v2461, 64
        %v2529 = vpop.permute.xlu0 %2528
        %2530 = vrot.lane.b32.xlu0 %v2462, 64
        %v2531 = vpop.permute.xlu0 %2530
        %2532 = vrot.lane.b32.xlu0 %v2463, 64
        %v2533 = vpop.permute.xlu0 %2532
        %2534 = vrot.lane.b32.xlu0 %v2464, 64
        %v2535 = vpop.permute.xlu0 %2534
        %2536 = vrot.lane.b32.xlu0 %v2465, 64
        %v2537 = vpop.permute.xlu0 %2536
        %2538 = vrot.lane.b32.xlu0 %v2466, 64
        %v2539 = vpop.permute.xlu0 %2538
        %2540 = vrot.lane.b32.xlu0 %v2467, 64
        %v2541 = vpop.permute.xlu0 %2540
        %2542 = vrot.lane.b32.xlu0 %v2468, 64
        %v2543 = vpop.permute.xlu0 %2542
        %2544 = vrot.lane.b32.xlu0 %v2469, 64
        %v2545 = vpop.permute.xlu0 %2544
        %2546 = vrot.lane.b32.xlu0 %v2470, 64
        %v2547 = vpop.permute.xlu0 %2546
        %2548 = vrot.lane.b32.xlu0 %v2471, 64
        %v2549 = vpop.permute.xlu0 %2548
        %2550 = vrot.lane.b32.xlu0 %v2472, 64
        %v2551 = vpop.permute.xlu0 %2550
        %2552 = vrot.lane.b32.xlu0 %v2473, 64
        %v2553 = vpop.permute.xlu0 %2552
        %2586 = vrot.lane.b32.xlu0 %v2490, 64
        %v2587 = vpop.permute.xlu0 %2586
        %2588 = vrot.lane.b32.xlu0 %v2491, 64
        %v2589 = vpop.permute.xlu0 %2588
        %2590 = vrot.lane.b32.xlu0 %v2492, 64
        %v2591 = vpop.permute.xlu0 %2590
        %2592 = vrot.lane.b32.xlu0 %v2493, 64
        %v2593 = vpop.permute.xlu0 %2592
        %2594 = vrot.lane.b32.xlu0 %v2494, 64
        %v2595 = vpop.permute.xlu0 %2594
        %2596 = vrot.lane.b32.xlu0 %v2495, 64
        %v2597 = vpop.permute.xlu0 %2596
        %2598 = vrot.lane.b32.xlu0 %v2496, 64
        %v2599 = vpop.permute.xlu0 %2598
        %2600 = vrot.lane.b32.xlu0 %v2497, 64
        %v2601 = vpop.permute.xlu0 %2600
        %2602 = vrot.lane.b32.xlu0 %v2498, 64
        %v2603 = vpop.permute.xlu0 %2602
        %2604 = vrot.lane.b32.xlu0 %v2499, 64
        %v2605 = vpop.permute.xlu0 %2604
        %2606 = vrot.lane.b32.xlu0 %v2500, 64
        %v2607 = vpop.permute.xlu0 %2606
        %2608 = vrot.lane.b32.xlu0 %v2501, 64
        %v2609 = vpop.permute.xlu0 %2608
        %2610 = vrot.lane.b32.xlu0 %v2502, 64
        %v2611 = vpop.permute.xlu0 %2610
        %2612 = vrot.lane.b32.xlu0 %v2503, 64
        %v2613 = vpop.permute.xlu0 %2612
        %2614 = vrot.lane.b32.xlu0 %v2504, 64
        %v2615 = vpop.permute.xlu0 %2614
        %2616 = vrot.lane.b32.xlu0 %v2505, 64
        %v2617 = vpop.permute.xlu0 %2616
        %v2634 = vsel %vm331, %v2442, %v2523
        %v2635 = vsel %vm331, %v2443, %v2525
        %v2636 = vsel %vm331, %v2444, %v2527
        %v2637 = vsel %vm331, %v2445, %v2529
        %v2638 = vsel %vm331, %v2446, %v2531
        %v2639 = vsel %vm331, %v2447, %v2533
        %v2640 = vsel %vm331, %v2448, %v2535
        %v2641 = vsel %vm331, %v2449, %v2537
        %v2642 = vsel %vm331, %v2450, %v2539
        %v2643 = vsel %vm331, %v2451, %v2541
        %v2644 = vsel %vm331, %v2452, %v2543
        %v2645 = vsel %vm331, %v2453, %v2545
        %v2646 = vsel %vm331, %v2454, %v2547
        %v2647 = vsel %vm331, %v2455, %v2549
        %v2648 = vsel %vm331, %v2456, %v2551
        %v2649 = vsel %vm331, %v2457, %v2553
        %v2650 = vsel %vm331, %v2474, %v2587
        %v2651 = vsel %vm331, %v2475, %v2589
        %v2652 = vsel %vm331, %v2476, %v2591
        %v2653 = vsel %vm331, %v2477, %v2593
        %v2654 = vsel %vm331, %v2478, %v2595
        %v2655 = vsel %vm331, %v2479, %v2597
        %v2656 = vsel %vm331, %v2480, %v2599
        %v2657 = vsel %vm331, %v2481, %v2601
        %v2658 = vsel %vm331, %v2482, %v2603
        %v2659 = vsel %vm331, %v2483, %v2605
        %v2660 = vsel %vm331, %v2484, %v2607
        %v2661 = vsel %vm331, %v2485, %v2609
        %v2662 = vsel %vm331, %v2486, %v2611
        %v2663 = vsel %vm331, %v2487, %v2613
        %v2664 = vsel %vm331, %v2488, %v2615
        %v2665 = vsel %vm331, %v2489, %v2617
        %v2666 = vld [vmem:[%s3] sm:$0xff]
        %v2667 = vld [vmem:[%s3 + $0x8] sm:$0xff]
        %v2668 = vld [vmem:[%s3 + $0x10] sm:$0xff]
        %v2669 = vld [vmem:[%s3 + $0x18] sm:$0xff]
        %v2670 = vld [vmem:[%s3 + $0x20] sm:$0xff]
        %v2671 = vld [vmem:[%s3 + $0x28] sm:$0xff]
        %v2672 = vld [vmem:[%s3 + $0x30] sm:$0xff]
        %v2673 = vld [vmem:[%s3 + $0x38] sm:$0xff]
        %v2674 = vld [vmem:[%s3 + $0x40] sm:$0xff]
        %v2675 = vld [vmem:[%s3 + $0x48] sm:$0xff]
        %v2676 = vld [vmem:[%s3 + $0x50] sm:$0xff]
        %v2677 = vld [vmem:[%s3 + $0x58] sm:$0xff]
        %v2678 = vld [vmem:[%s3 + $0x60] sm:$0xff]
        %v2679 = vld [vmem:[%s3 + $0x68] sm:$0xff]
        %v2680 = vld [vmem:[%s3 + $0x70] sm:$0xff]
        %v2681 = vld [vmem:[%s3 + $0x78] sm:$0xff]
        %v2682 = vld [vmem:[%s3 + $0x80] sm:$0xff]
        %v2683 = vld [vmem:[%s3 + $0x88] sm:$0xff]
        %v2684 = vld [vmem:[%s3 + $0x90] sm:$0xff]
        %v2685 = vld [vmem:[%s3 + $0x98] sm:$0xff]
        %v2686 = vld [vmem:[%s3 + $0xa0] sm:$0xff]
        %v2687 = vld [vmem:[%s3 + $0xa8] sm:$0xff]
        %v2688 = vld [vmem:[%s3 + $0xb0] sm:$0xff]
        %v2689 = vld [vmem:[%s3 + $0xb8] sm:$0xff]
        %v2690 = vld [vmem:[%s3 + $0xc0] sm:$0xff]
        %v2691 = vld [vmem:[%s3 + $0xc8] sm:$0xff]
        %v2692 = vld [vmem:[%s3 + $0xd0] sm:$0xff]
        %v2693 = vld [vmem:[%s3 + $0xd8] sm:$0xff]
        %v2694 = vld [vmem:[%s3 + $0xe0] sm:$0xff]
        %v2695 = vld [vmem:[%s3 + $0xe8] sm:$0xff]
        %v2696 = vld [vmem:[%s3 + $0xf0] sm:$0xff]
        %v2697 = vld [vmem:[%s3 + $0xf8] sm:$0xff]
        %v2698 = vld [vmem:[%s1448 + $0x1] sm:$0xff]
        %v2699 = vld [vmem:[%s1448 + $0x9] sm:$0xff]
        %v2700 = vld [vmem:[%s1448 + $0x19] sm:$0xff]
        %v2701 = vld [vmem:[%s1448 + $0x21] sm:$0xff]
        %v2702 = vld [vmem:[%s1448 + $0x31] sm:$0xff]
        %v2703 = vld [vmem:[%s1448 + $0x39] sm:$0xff]
        %v2704 = vld [vmem:[%s1448 + $0x49] sm:$0xff]
        %v2705 = vld [vmem:[%s1448 + $0x51] sm:$0xff]
        %v2706 = vld [vmem:[%s1448 + $0x61] sm:$0xff]
        %v2707 = vld [vmem:[%s1448 + $0x69] sm:$0xff]
        %v2708 = vld [vmem:[%s1448 + $0x79] sm:$0xff]
        %v2709 = vld [vmem:[%s1448 + $0x81] sm:$0xff]
        %v2710 = vld [vmem:[%s1448 + $0x91] sm:$0xff]
        %v2711 = vld [vmem:[%s1448 + $0x99] sm:$0xff]
        %v2712 = vld [vmem:[%s1448 + $0xa9] sm:$0xff]
        %v2713 = vld [vmem:[%s1448 + $0xb1] sm:$0xff]
        %v2714 = vld [vmem:[%s1448 + $0x2] sm:$0xff]
        %v2715 = vld [vmem:[%s1448 + $0xa] sm:$0xff]
        %v2716 = vld [vmem:[%s1448 + $0x1a] sm:$0xff]
        %v2717 = vld [vmem:[%s1448 + $0x22] sm:$0xff]
        %v2718 = vld [vmem:[%s1448 + $0x32] sm:$0xff]
        %v2719 = vld [vmem:[%s1448 + $0x3a] sm:$0xff]
        %v2720 = vld [vmem:[%s1448 + $0x4a] sm:$0xff]
        %v2721 = vld [vmem:[%s1448 + $0x52] sm:$0xff]
        %v2722 = vld [vmem:[%s1448 + $0x62] sm:$0xff]
        %v2723 = vld [vmem:[%s1448 + $0x6a] sm:$0xff]
        %v2724 = vld [vmem:[%s1448 + $0x7a] sm:$0xff]
        %v2725 = vld [vmem:[%s1448 + $0x82] sm:$0xff]
        %v2726 = vld [vmem:[%s1448 + $0x92] sm:$0xff]
        %v2727 = vld [vmem:[%s1448 + $0x9a] sm:$0xff]
        %v2728 = vld [vmem:[%s1448 + $0xaa] sm:$0xff]
        %v2729 = vld [vmem:[%s1448 + $0xb2] sm:$0xff]
        %s2730 = scalar_lea.vmem [#allocation3], 48
        %v2731 = vld [vmem:[%s2730] sm:$0xff]
        %v2732 = vld [vmem:[%s2730 + $0x8] sm:$0xff]
        %v2733 = vld [vmem:[%s2730 + $0x18] sm:$0xff]
        %v2734 = vld [vmem:[%s2730 + $0x20] sm:$0xff]
        %v2735 = vld [vmem:[%s2730 + $0x30] sm:$0xff]
        %v2736 = vld [vmem:[%s2730 + $0x38] sm:$0xff]
        %v2737 = vld [vmem:[%s2730 + $0x48] sm:$0xff]
        %v2738 = vld [vmem:[%s2730 + $0x50] sm:$0xff]
        %v2739 = vld [vmem:[%s2730 + $0x60] sm:$0xff]
        %v2740 = vld [vmem:[%s2730 + $0x68] sm:$0xff]
        %v2741 = vld [vmem:[%s2730 + $0x78] sm:$0xff]
        %v2742 = vld [vmem:[%s2730 + $0x80] sm:$0xff]
        %v2743 = vld [vmem:[%s2730 + $0x90] sm:$0xff]
        %v2744 = vld [vmem:[%s2730 + $0x98] sm:$0xff]
        %v2745 = vld [vmem:[%s2730 + $0xa8] sm:$0xff]
        %v2746 = vld [vmem:[%s2730 + $0xb0] sm:$0xff]
        %v2747 = vld [vmem:[%s2730 + $0x1] sm:$0xff]
        %v2748 = vld [vmem:[%s2730 + $0x9] sm:$0xff]
        %v2749 = vld [vmem:[%s2730 + $0x19] sm:$0xff]
        %v2750 = vld [vmem:[%s2730 + $0x21] sm:$0xff]
        %v2751 = vld [vmem:[%s2730 + $0x31] sm:$0xff]
        %v2752 = vld [vmem:[%s2730 + $0x39] sm:$0xff]
        %v2753 = vld [vmem:[%s2730 + $0x49] sm:$0xff]
        %v2754 = vld [vmem:[%s2730 + $0x51] sm:$0xff]
        %v2755 = vld [vmem:[%s2730 + $0x61] sm:$0xff]
        %v2756 = vld [vmem:[%s2730 + $0x69] sm:$0xff]
        %v2757 = vld [vmem:[%s2730 + $0x79] sm:$0xff]
        %v2758 = vld [vmem:[%s2730 + $0x81] sm:$0xff]
        %v2759 = vld [vmem:[%s2730 + $0x91] sm:$0xff]
        %v2760 = vld [vmem:[%s2730 + $0x99] sm:$0xff]
        %v2761 = vld [vmem:[%s2730 + $0xa9] sm:$0xff]
        %v2762 = vld [vmem:[%s2730 + $0xb1] sm:$0xff]
        %2779 = vrot.lane.b32.xlu0 %v2714, 64
        %v2780 = vpop.permute.xlu0 %2779
        %2781 = vrot.lane.b32.xlu0 %v2715, 64
        %v2782 = vpop.permute.xlu0 %2781
        %2783 = vrot.lane.b32.xlu0 %v2716, 64
        %v2784 = vpop.permute.xlu0 %2783
        %2785 = vrot.lane.b32.xlu0 %v2717, 64
        %v2786 = vpop.permute.xlu0 %2785
        %2787 = vrot.lane.b32.xlu0 %v2718, 64
        %v2788 = vpop.permute.xlu0 %2787
        %2789 = vrot.lane.b32.xlu0 %v2719, 64
        %v2790 = vpop.permute.xlu0 %2789
        %2791 = vrot.lane.b32.xlu0 %v2720, 64
        %v2792 = vpop.permute.xlu0 %2791
        %2793 = vrot.lane.b32.xlu0 %v2721, 64
        %v2794 = vpop.permute.xlu0 %2793
        %2795 = vrot.lane.b32.xlu0 %v2722, 64
        %v2796 = vpop.permute.xlu0 %2795
        %2797 = vrot.lane.b32.xlu0 %v2723, 64
        %v2798 = vpop.permute.xlu0 %2797
        %2799 = vrot.lane.b32.xlu0 %v2724, 64
        %v2800 = vpop.permute.xlu0 %2799
        %2801 = vrot.lane.b32.xlu0 %v2725, 64
        %v2802 = vpop.permute.xlu0 %2801
        %2803 = vrot.lane.b32.xlu0 %v2726, 64
        %v2804 = vpop.permute.xlu0 %2803
        %2805 = vrot.lane.b32.xlu0 %v2727, 64
        %v2806 = vpop.permute.xlu0 %2805
        %2807 = vrot.lane.b32.xlu0 %v2728, 64
        %v2808 = vpop.permute.xlu0 %2807
        %2809 = vrot.lane.b32.xlu0 %v2729, 64
        %v2810 = vpop.permute.xlu0 %2809
        %2843 = vrot.lane.b32.xlu0 %v2747, 64
        %v2844 = vpop.permute.xlu0 %2843
        %2845 = vrot.lane.b32.xlu0 %v2748, 64
        %v2846 = vpop.permute.xlu0 %2845
        %2847 = vrot.lane.b32.xlu0 %v2749, 64
        %v2848 = vpop.permute.xlu0 %2847
        %2849 = vrot.lane.b32.xlu0 %v2750, 64
        %v2850 = vpop.permute.xlu0 %2849
        %2851 = vrot.lane.b32.xlu0 %v2751, 64
        %v2852 = vpop.permute.xlu0 %2851
        %2853 = vrot.lane.b32.xlu0 %v2752, 64
        %v2854 = vpop.permute.xlu0 %2853
        %2855 = vrot.lane.b32.xlu0 %v2753, 64
        %v2856 = vpop.permute.xlu0 %2855
        %2857 = vrot.lane.b32.xlu0 %v2754, 64
        %v2858 = vpop.permute.xlu0 %2857
        %2859 = vrot.lane.b32.xlu0 %v2755, 64
        %v2860 = vpop.permute.xlu0 %2859
        %2861 = vrot.lane.b32.xlu0 %v2756, 64
        %v2862 = vpop.permute.xlu0 %2861
        %2863 = vrot.lane.b32.xlu0 %v2757, 64
        %v2864 = vpop.permute.xlu0 %2863
        %2865 = vrot.lane.b32.xlu0 %v2758, 64
        %v2866 = vpop.permute.xlu0 %2865
        %2867 = vrot.lane.b32.xlu0 %v2759, 64
        %v2868 = vpop.permute.xlu0 %2867
        %2869 = vrot.lane.b32.xlu0 %v2760, 64
        %v2870 = vpop.permute.xlu0 %2869
        %2871 = vrot.lane.b32.xlu0 %v2761, 64
        %v2872 = vpop.permute.xlu0 %2871
        %2873 = vrot.lane.b32.xlu0 %v2762, 64
        %v2874 = vpop.permute.xlu0 %2873
        %v2891 = vsel %vm331, %v2698, %v2780
        %v2892 = vsel %vm331, %v2699, %v2782
        %v2893 = vsel %vm331, %v2700, %v2784
        %v2894 = vsel %vm331, %v2701, %v2786
        %v2895 = vsel %vm331, %v2702, %v2788
        %v2896 = vsel %vm331, %v2703, %v2790
        %v2897 = vsel %vm331, %v2704, %v2792
        %v2898 = vsel %vm331, %v2705, %v2794
        %v2899 = vsel %vm331, %v2706, %v2796
        %v2900 = vsel %vm331, %v2707, %v2798
        %v2901 = vsel %vm331, %v2708, %v2800
        %v2902 = vsel %vm331, %v2709, %v2802
        %v2903 = vsel %vm331, %v2710, %v2804
        %v2904 = vsel %vm331, %v2711, %v2806
        %v2905 = vsel %vm331, %v2712, %v2808
        %v2906 = vsel %vm331, %v2713, %v2810
        %v2907 = vsel %vm331, %v2731, %v2844
        %v2908 = vsel %vm331, %v2732, %v2846
        %v2909 = vsel %vm331, %v2733, %v2848
        %v2910 = vsel %vm331, %v2734, %v2850
        %v2911 = vsel %vm331, %v2735, %v2852
        %v2912 = vsel %vm331, %v2736, %v2854
        %v2913 = vsel %vm331, %v2737, %v2856
        %v2914 = vsel %vm331, %v2738, %v2858
        %v2915 = vsel %vm331, %v2739, %v2860
        %v2916 = vsel %vm331, %v2740, %v2862
        %v2917 = vsel %vm331, %v2741, %v2864
        %v2918 = vsel %vm331, %v2742, %v2866
        %v2919 = vsel %vm331, %v2743, %v2868
        %v2920 = vsel %vm331, %v2744, %v2870
        %v2921 = vsel %vm331, %v2745, %v2872
        %v2922 = vsel %vm331, %v2746, %v2874
        %v2923 = vld [vmem:[%s3 + $0x100] sm:$0xff]
        %v2924 = vld [vmem:[%s3 + $0x108] sm:$0xff]
        %v2925 = vld [vmem:[%s3 + $0x110] sm:$0xff]
        %v2926 = vld [vmem:[%s3 + $0x118] sm:$0xff]
        %v2927 = vld [vmem:[%s3 + $0x120] sm:$0xff]
        %v2928 = vld [vmem:[%s3 + $0x128] sm:$0xff]
        %v2929 = vld [vmem:[%s3 + $0x130] sm:$0xff]
        %v2930 = vld [vmem:[%s3 + $0x138] sm:$0xff]
        %v2931 = vld [vmem:[%s3 + $0x140] sm:$0xff]
        %v2932 = vld [vmem:[%s3 + $0x148] sm:$0xff]
        %v2933 = vld [vmem:[%s3 + $0x150] sm:$0xff]
        %v2934 = vld [vmem:[%s3 + $0x158] sm:$0xff]
        %v2935 = vld [vmem:[%s3 + $0x160] sm:$0xff]
        %v2936 = vld [vmem:[%s3 + $0x168] sm:$0xff]
        %v2937 = vld [vmem:[%s3 + $0x170] sm:$0xff]
        %v2938 = vld [vmem:[%s3 + $0x178] sm:$0xff]
        %v2939 = vld [vmem:[%s3 + $0x180] sm:$0xff]
        %v2940 = vld [vmem:[%s3 + $0x188] sm:$0xff]
        %v2941 = vld [vmem:[%s3 + $0x190] sm:$0xff]
        %v2942 = vld [vmem:[%s3 + $0x198] sm:$0xff]
        %v2943 = vld [vmem:[%s3 + $0x1a0] sm:$0xff]
        %v2944 = vld [vmem:[%s3 + $0x1a8] sm:$0xff]
        %v2945 = vld [vmem:[%s3 + $0x1b0] sm:$0xff]
        %v2946 = vld [vmem:[%s3 + $0x1b8] sm:$0xff]
        %v2947 = vld [vmem:[%s3 + $0x1c0] sm:$0xff]
        %v2948 = vld [vmem:[%s3 + $0x1c8] sm:$0xff]
        %v2949 = vld [vmem:[%s3 + $0x1d0] sm:$0xff]
        %v2950 = vld [vmem:[%s3 + $0x1d8] sm:$0xff]
        %v2951 = vld [vmem:[%s3 + $0x1e0] sm:$0xff]
        %v2952 = vld [vmem:[%s3 + $0x1e8] sm:$0xff]
        %v2953 = vld [vmem:[%s3 + $0x1f0] sm:$0xff]
        %v2954 = vld [vmem:[%s3 + $0x1f8] sm:$0xff]
        %2955 = vmatpush.msra.mxu0 %v2938
        %2956 = vmatpush.msra.mxu0 %v2937
        %2957 = vmatpush.msra.mxu0 %v2936
        %2958 = vmatpush.msra.mxu0 %v2935
        %2959 = vmatpush.msra.mxu0 %v2934
        %2960 = vmatpush.msra.mxu0 %v2933
        %2961 = vmatpush.msra.mxu0 %v2932
        %2962 = vmatpush.msra.mxu0 %v2931
        %2963 = vmatpush.msra.mxu0 %v2930
        %2964 = vmatpush.msra.mxu0 %v2929
        %2965 = vmatpush.msra.mxu0 %v2928
        %2966 = vmatpush.msra.mxu0 %v2927
        %2967 = vmatpush.msra.mxu0 %v2926
        %2968 = vmatpush.msra.mxu0 %v2925
        %2969 = vmatpush.msra.mxu0 %v2924
        %2970 = vmatpush.msra.mxu0 %v2923
        %2971 = vmatmul.f32.gmra.mxu0 %v2891
        %v2972 = vpop.f32.mrf.mxu0
        %v2973 = vadd.f32 0.0, %v2972
        %2974 = vmatmul.f32.gmra.mxu0 %v2892
        %v2975 = vpop.f32.mrf.mxu0
        %v2976 = vadd.f32 0.0, %v2975
        %2977 = vmatmul.f32.gmra.mxu0 %v2893
        %v2978 = vpop.f32.mrf.mxu0
        %v2979 = vadd.f32 0.0, %v2978
        %2980 = vmatmul.f32.gmra.mxu0 %v2894
        %v2981 = vpop.f32.mrf.mxu0
        %v2982 = vadd.f32 0.0, %v2981
        %2983 = vmatmul.f32.gmra.mxu0 %v2895
        %v2984 = vpop.f32.mrf.mxu0
        %v2985 = vadd.f32 0.0, %v2984
        %2986 = vmatmul.f32.gmra.mxu0 %v2896
        %v2987 = vpop.f32.mrf.mxu0
        %v2988 = vadd.f32 0.0, %v2987
        %2989 = vmatmul.f32.gmra.mxu0 %v2897
        %v2990 = vpop.f32.mrf.mxu0
        %v2991 = vadd.f32 0.0, %v2990
        %2992 = vmatmul.f32.gmra.mxu0 %v2898
        %v2993 = vpop.f32.mrf.mxu0
        %v2994 = vadd.f32 0.0, %v2993
        %2995 = vmatmul.f32.gmra.mxu0 %v2899
        %v2996 = vpop.f32.mrf.mxu0
        %v2997 = vadd.f32 0.0, %v2996
        %2998 = vmatmul.f32.gmra.mxu0 %v2900
        %v2999 = vpop.f32.mrf.mxu0
        %v3000 = vadd.f32 0.0, %v2999
        %3001 = vmatmul.f32.gmra.mxu0 %v2901
        %v3002 = vpop.f32.mrf.mxu0
        %v3003 = vadd.f32 0.0, %v3002
        %3004 = vmatmul.f32.gmra.mxu0 %v2902
        %v3005 = vpop.f32.mrf.mxu0
        %v3006 = vadd.f32 0.0, %v3005
        %3007 = vmatmul.f32.gmra.mxu0 %v2903
        %v3008 = vpop.f32.mrf.mxu0
        %v3009 = vadd.f32 0.0, %v3008
        %3010 = vmatmul.f32.gmra.mxu0 %v2904
        %v3011 = vpop.f32.mrf.mxu0
        %v3012 = vadd.f32 0.0, %v3011
        %3013 = vmatmul.f32.gmra.mxu0 %v2905
        %v3014 = vpop.f32.mrf.mxu0
        %v3015 = vadd.f32 0.0, %v3014
        %3016 = vmatmul.f32.gmra.mxu0 %v2906
        %v3017 = vpop.f32.mrf.mxu0
        %v3018 = vadd.f32 0.0, %v3017
        %3019 = vdwg.mxu0
        %3020 = vmatpush.msra.mxu0 %v2954
        %3021 = vmatpush.msra.mxu0 %v2953
        %3022 = vmatpush.msra.mxu0 %v2952
        %3023 = vmatpush.msra.mxu0 %v2951
        %3024 = vmatpush.msra.mxu0 %v2950
        %3025 = vmatpush.msra.mxu0 %v2949
        %3026 = vmatpush.msra.mxu0 %v2948
        %3027 = vmatpush.msra.mxu0 %v2947
        %3028 = vmatpush.msra.mxu0 %v2946
        %3029 = vmatpush.msra.mxu0 %v2945
        %3030 = vmatpush.msra.mxu0 %v2944
        %3031 = vmatpush.msra.mxu0 %v2943
        %3032 = vmatpush.msra.mxu0 %v2942
        %3033 = vmatpush.msra.mxu0 %v2941
        %3034 = vmatpush.msra.mxu0 %v2940
        %3035 = vmatpush.msra.mxu0 %v2939
        %3036 = vmatmul.f32.gmra.mxu0 %v2907
        %v3037 = vpop.f32.mrf.mxu0
        %v3038 = vadd.f32 %v2973, %v3037
        %3039 = vmatmul.f32.gmra.mxu0 %v2908
        %v3040 = vpop.f32.mrf.mxu0
        %v3041 = vadd.f32 %v2976, %v3040
        %3042 = vmatmul.f32.gmra.mxu0 %v2909
        %v3043 = vpop.f32.mrf.mxu0
        %v3044 = vadd.f32 %v2979, %v3043
        %3045 = vmatmul.f32.gmra.mxu0 %v2910
        %v3046 = vpop.f32.mrf.mxu0
        %v3047 = vadd.f32 %v2982, %v3046
        %3048 = vmatmul.f32.gmra.mxu0 %v2911
        %v3049 = vpop.f32.mrf.mxu0
        %v3050 = vadd.f32 %v2985, %v3049
        %3051 = vmatmul.f32.gmra.mxu0 %v2912
        %v3052 = vpop.f32.mrf.mxu0
        %v3053 = vadd.f32 %v2988, %v3052
        %3054 = vmatmul.f32.gmra.mxu0 %v2913
        %v3055 = vpop.f32.mrf.mxu0
        %v3056 = vadd.f32 %v2991, %v3055
        %3057 = vmatmul.f32.gmra.mxu0 %v2914
        %v3058 = vpop.f32.mrf.mxu0
        %v3059 = vadd.f32 %v2994, %v3058
        %3060 = vmatmul.f32.gmra.mxu0 %v2915
        %v3061 = vpop.f32.mrf.mxu0
        %v3062 = vadd.f32 %v2997, %v3061
        %3063 = vmatmul.f32.gmra.mxu0 %v2916
        %v3064 = vpop.f32.mrf.mxu0
        %v3065 = vadd.f32 %v3000, %v3064
        %3066 = vmatmul.f32.gmra.mxu0 %v2917
        %v3067 = vpop.f32.mrf.mxu0
        %v3068 = vadd.f32 %v3003, %v3067
        %3069 = vmatmul.f32.gmra.mxu0 %v2918
        %v3070 = vpop.f32.mrf.mxu0
        %v3071 = vadd.f32 %v3006, %v3070
        %3072 = vmatmul.f32.gmra.mxu0 %v2919
        %v3073 = vpop.f32.mrf.mxu0
        %v3074 = vadd.f32 %v3009, %v3073
        %3075 = vmatmul.f32.gmra.mxu0 %v2920
        %v3076 = vpop.f32.mrf.mxu0
        %v3077 = vadd.f32 %v3012, %v3076
        %3078 = vmatmul.f32.gmra.mxu0 %v2921
        %v3079 = vpop.f32.mrf.mxu0
        %v3080 = vadd.f32 %v3015, %v3079
        %3081 = vmatmul.f32.gmra.mxu0 %v2922
        %v3082 = vpop.f32.mrf.mxu0
        %v3083 = vadd.f32 %v3018, %v3082
        %3084 = vdwg.mxu0
        %3085 = vmatpush.msra.mxu0 %v2681
        %3086 = vmatpush.msra.mxu0 %v2680
        %3087 = vmatpush.msra.mxu0 %v2679
        %3088 = vmatpush.msra.mxu0 %v2678
        %3089 = vmatpush.msra.mxu0 %v2677
        %3090 = vmatpush.msra.mxu0 %v2676
        %3091 = vmatpush.msra.mxu0 %v2675
        %3092 = vmatpush.msra.mxu0 %v2674
        %3093 = vmatpush.msra.mxu0 %v2673
        %3094 = vmatpush.msra.mxu0 %v2672
        %3095 = vmatpush.msra.mxu0 %v2671
        %3096 = vmatpush.msra.mxu0 %v2670
        %3097 = vmatpush.msra.mxu0 %v2669
        %3098 = vmatpush.msra.mxu0 %v2668
        %3099 = vmatpush.msra.mxu0 %v2667
        %3100 = vmatpush.msra.mxu0 %v2666
        %3101 = vmatmul.f32.gmra.mxu0 %v2634
        %v3102 = vpop.f32.mrf.mxu0
        %v3103 = vadd.f32 %v3038, %v3102
        %3104 = vmatmul.f32.gmra.mxu0 %v2635
        %v3105 = vpop.f32.mrf.mxu0
        %v3106 = vadd.f32 %v3041, %v3105
        %3107 = vmatmul.f32.gmra.mxu0 %v2636
        %v3108 = vpop.f32.mrf.mxu0
        %v3109 = vadd.f32 %v3044, %v3108
        %3110 = vmatmul.f32.gmra.mxu0 %v2637
        %v3111 = vpop.f32.mrf.mxu0
        %v3112 = vadd.f32 %v3047, %v3111
        %3113 = vmatmul.f32.gmra.mxu0 %v2638
        %v3114 = vpop.f32.mrf.mxu0
        %v3115 = vadd.f32 %v3050, %v3114
        %3116 = vmatmul.f32.gmra.mxu0 %v2639
        %v3117 = vpop.f32.mrf.mxu0
        %v3118 = vadd.f32 %v3053, %v3117
        %3119 = vmatmul.f32.gmra.mxu0 %v2640
        %v3120 = vpop.f32.mrf.mxu0
        %v3121 = vadd.f32 %v3056, %v3120
        %3122 = vmatmul.f32.gmra.mxu0 %v2641
        %v3123 = vpop.f32.mrf.mxu0
        %v3124 = vadd.f32 %v3059, %v3123
        %3125 = vmatmul.f32.gmra.mxu0 %v2642
        %v3126 = vpop.f32.mrf.mxu0
        %v3127 = vadd.f32 %v3062, %v3126
        %3128 = vmatmul.f32.gmra.mxu0 %v2643
        %v3129 = vpop.f32.mrf.mxu0
        %v3130 = vadd.f32 %v3065, %v3129
        %3131 = vmatmul.f32.gmra.mxu0 %v2644
        %v3132 = vpop.f32.mrf.mxu0
        %v3133 = vadd.f32 %v3068, %v3132
        %3134 = vmatmul.f32.gmra.mxu0 %v2645
        %v3135 = vpop.f32.mrf.mxu0
        %v3136 = vadd.f32 %v3071, %v3135
        %3137 = vmatmul.f32.gmra.mxu0 %v2646
        %v3138 = vpop.f32.mrf.mxu0
        %v3139 = vadd.f32 %v3074, %v3138
        %3140 = vmatmul.f32.gmra.mxu0 %v2647
        %v3141 = vpop.f32.mrf.mxu0
        %v3142 = vadd.f32 %v3077, %v3141
        %3143 = vmatmul.f32.gmra.mxu0 %v2648
        %v3144 = vpop.f32.mrf.mxu0
        %v3145 = vadd.f32 %v3080, %v3144
        %3146 = vmatmul.f32.gmra.mxu0 %v2649
        %v3147 = vpop.f32.mrf.mxu0
        %v3148 = vadd.f32 %v3083, %v3147
        %3149 = vdwg.mxu0
        %3150 = vmatpush.msra.mxu0 %v2697
        %3151 = vmatpush.msra.mxu0 %v2696
        %3152 = vmatpush.msra.mxu0 %v2695
        %3153 = vmatpush.msra.mxu0 %v2694
        %3154 = vmatpush.msra.mxu0 %v2693
        %3155 = vmatpush.msra.mxu0 %v2692
        %3156 = vmatpush.msra.mxu0 %v2691
        %3157 = vmatpush.msra.mxu0 %v2690
        %3158 = vmatpush.msra.mxu0 %v2689
        %3159 = vmatpush.msra.mxu0 %v2688
        %3160 = vmatpush.msra.mxu0 %v2687
        %3161 = vmatpush.msra.mxu0 %v2686
        %3162 = vmatpush.msra.mxu0 %v2685
        %3163 = vmatpush.msra.mxu0 %v2684
        %3164 = vmatpush.msra.mxu0 %v2683
        %3165 = vmatpush.msra.mxu0 %v2682
        %3166 = vmatmul.f32.gmra.mxu0 %v2650
        %v3167 = vpop.f32.mrf.mxu0
        %v3168 = vadd.f32 %v3103, %v3167
        %3169 = vmatmul.f32.gmra.mxu0 %v2651
        %v3170 = vpop.f32.mrf.mxu0
        %v3171 = vadd.f32 %v3106, %v3170
        %3172 = vmatmul.f32.gmra.mxu0 %v2652
        %v3173 = vpop.f32.mrf.mxu0
        %v3174 = vadd.f32 %v3109, %v3173
        %3175 = vmatmul.f32.gmra.mxu0 %v2653
        %v3176 = vpop.f32.mrf.mxu0
        %v3177 = vadd.f32 %v3112, %v3176
        %3178 = vmatmul.f32.gmra.mxu0 %v2654
        %v3179 = vpop.f32.mrf.mxu0
        %v3180 = vadd.f32 %v3115, %v3179
        %3181 = vmatmul.f32.gmra.mxu0 %v2655
        %v3182 = vpop.f32.mrf.mxu0
        %v3183 = vadd.f32 %v3118, %v3182
        %3184 = vmatmul.f32.gmra.mxu0 %v2656
        %v3185 = vpop.f32.mrf.mxu0
        %v3186 = vadd.f32 %v3121, %v3185
        %3187 = vmatmul.f32.gmra.mxu0 %v2657
        %v3188 = vpop.f32.mrf.mxu0
        %v3189 = vadd.f32 %v3124, %v3188
        %3190 = vmatmul.f32.gmra.mxu0 %v2658
        %v3191 = vpop.f32.mrf.mxu0
        %v3192 = vadd.f32 %v3127, %v3191
        %3193 = vmatmul.f32.gmra.mxu0 %v2659
        %v3194 = vpop.f32.mrf.mxu0
        %v3195 = vadd.f32 %v3130, %v3194
        %3196 = vmatmul.f32.gmra.mxu0 %v2660
        %v3197 = vpop.f32.mrf.mxu0
        %v3198 = vadd.f32 %v3133, %v3197
        %3199 = vmatmul.f32.gmra.mxu0 %v2661
        %v3200 = vpop.f32.mrf.mxu0
        %v3201 = vadd.f32 %v3136, %v3200
        %3202 = vmatmul.f32.gmra.mxu0 %v2662
        %v3203 = vpop.f32.mrf.mxu0
        %v3204 = vadd.f32 %v3139, %v3203
        %3205 = vmatmul.f32.gmra.mxu0 %v2663
        %v3206 = vpop.f32.mrf.mxu0
        %v3207 = vadd.f32 %v3142, %v3206
        %3208 = vmatmul.f32.gmra.mxu0 %v2664
        %v3209 = vpop.f32.mrf.mxu0
        %v3210 = vadd.f32 %v3145, %v3209
        %3211 = vmatmul.f32.gmra.mxu0 %v2665
        %v3212 = vpop.f32.mrf.mxu0
        %v3213 = vadd.f32 %v3148, %v3212
        %3214 = vdwg.mxu0
        %v3215 = vld [vmem:[%s2730 + $0x2] sm:$0xff]
        %v3216 = vld [vmem:[%s2730 + $0xa] sm:$0xff]
        %v3217 = vld [vmem:[%s2730 + $0x1a] sm:$0xff]
        %v3218 = vld [vmem:[%s2730 + $0x22] sm:$0xff]
        %v3219 = vld [vmem:[%s2730 + $0x32] sm:$0xff]
        %v3220 = vld [vmem:[%s2730 + $0x3a] sm:$0xff]
        %v3221 = vld [vmem:[%s2730 + $0x4a] sm:$0xff]
        %v3222 = vld [vmem:[%s2730 + $0x52] sm:$0xff]
        %v3223 = vld [vmem:[%s2730 + $0x62] sm:$0xff]
        %v3224 = vld [vmem:[%s2730 + $0x6a] sm:$0xff]
        %v3225 = vld [vmem:[%s2730 + $0x7a] sm:$0xff]
        %v3226 = vld [vmem:[%s2730 + $0x82] sm:$0xff]
        %v3227 = vld [vmem:[%s2730 + $0x92] sm:$0xff]
        %v3228 = vld [vmem:[%s2730 + $0x9a] sm:$0xff]
        %v3229 = vld [vmem:[%s2730 + $0xaa] sm:$0xff]
        %v3230 = vld [vmem:[%s2730 + $0xb2] sm:$0xff]
        %v3231 = vld [vmem:[%s3 + $0x200] sm:$0xff]
        %v3232 = vld [vmem:[%s3 + $0x208] sm:$0xff]
        %v3233 = vld [vmem:[%s3 + $0x210] sm:$0xff]
        %v3234 = vld [vmem:[%s3 + $0x218] sm:$0xff]
        %v3235 = vld [vmem:[%s3 + $0x220] sm:$0xff]
        %v3236 = vld [vmem:[%s3 + $0x228] sm:$0xff]
        %v3237 = vld [vmem:[%s3 + $0x230] sm:$0xff]
        %v3238 = vld [vmem:[%s3 + $0x238] sm:$0xff]
        %v3240 = vsel %vm331, %v3215, 0
        %v3243 = vsel %vm331, %v3216, 0
        %v3246 = vsel %vm331, %v3217, 0
        %v3249 = vsel %vm331, %v3218, 0
        %v3252 = vsel %vm331, %v3219, 0
        %v3255 = vsel %vm331, %v3220, 0
        %v3258 = vsel %vm331, %v3221, 0
        %v3261 = vsel %vm331, %v3222, 0
        %v3264 = vsel %vm331, %v3223, 0
        %v3267 = vsel %vm331, %v3224, 0
        %v3270 = vsel %vm331, %v3225, 0
        %v3273 = vsel %vm331, %v3226, 0
        %v3276 = vsel %vm331, %v3227, 0
        %v3279 = vsel %vm331, %v3228, 0
        %v3282 = vsel %vm331, %v3229, 0
        %v3285 = vsel %vm331, %v3230, 0
        %3287 = vmatpush.msra.mxu0 0.0
        %3288 = vmatpush.msra.mxu0 0.0
        %3289 = vmatpush.msra.mxu0 0.0
        %3290 = vmatpush.msra.mxu0 0.0
        %3291 = vmatpush.msra.mxu0 0.0
        %3292 = vmatpush.msra.mxu0 0.0
        %3293 = vmatpush.msra.mxu0 0.0
        %3294 = vmatpush.msra.mxu0 0.0
        %3295 = vmatpush.msra.mxu0 %v3238
        %3296 = vmatpush.msra.mxu0 %v3237
        %3297 = vmatpush.msra.mxu0 %v3236
        %3298 = vmatpush.msra.mxu0 %v3235
        %3299 = vmatpush.msra.mxu0 %v3234
        %3300 = vmatpush.msra.mxu0 %v3233
        %3301 = vmatpush.msra.mxu0 %v3232
        %3302 = vmatpush.msra.mxu0 %v3231
        %3303 = vmatmul.f32.gmra.mxu0 %v3240
        %v3304 = vpop.f32.mrf.mxu0
        %v3305 = vadd.f32 0.0, %v3304
        %3306 = vmatmul.f32.gmra.mxu0 %v3243
        %v3307 = vpop.f32.mrf.mxu0
        %v3308 = vadd.f32 0.0, %v3307
        %3309 = vmatmul.f32.gmra.mxu0 %v3246
        %v3310 = vpop.f32.mrf.mxu0
        %v3311 = vadd.f32 0.0, %v3310
        %3312 = vmatmul.f32.gmra.mxu0 %v3249
        %v3313 = vpop.f32.mrf.mxu0
        %v3314 = vadd.f32 0.0, %v3313
        %3315 = vmatmul.f32.gmra.mxu0 %v3252
        %v3316 = vpop.f32.mrf.mxu0
        %v3317 = vadd.f32 0.0, %v3316
        %3318 = vmatmul.f32.gmra.mxu0 %v3255
        %v3319 = vpop.f32.mrf.mxu0
        %v3320 = vadd.f32 0.0, %v3319
        %3321 = vmatmul.f32.gmra.mxu0 %v3258
        %v3322 = vpop.f32.mrf.mxu0
        %v3323 = vadd.f32 0.0, %v3322
        %3324 = vmatmul.f32.gmra.mxu0 %v3261
        %v3325 = vpop.f32.mrf.mxu0
        %v3326 = vadd.f32 0.0, %v3325
        %3327 = vmatmul.f32.gmra.mxu0 %v3264
        %v3328 = vpop.f32.mrf.mxu0
        %v3329 = vadd.f32 0.0, %v3328
        %3330 = vmatmul.f32.gmra.mxu0 %v3267
        %v3331 = vpop.f32.mrf.mxu0
        %v3332 = vadd.f32 0.0, %v3331
        %3333 = vmatmul.f32.gmra.mxu0 %v3270
        %v3334 = vpop.f32.mrf.mxu0
        %v3335 = vadd.f32 0.0, %v3334
        %3336 = vmatmul.f32.gmra.mxu0 %v3273
        %v3337 = vpop.f32.mrf.mxu0
        %v3338 = vadd.f32 0.0, %v3337
        %3339 = vmatmul.f32.gmra.mxu0 %v3276
        %v3340 = vpop.f32.mrf.mxu0
        %v3341 = vadd.f32 0.0, %v3340
        %3342 = vmatmul.f32.gmra.mxu0 %v3279
        %v3343 = vpop.f32.mrf.mxu0
        %v3344 = vadd.f32 0.0, %v3343
        %3345 = vmatmul.f32.gmra.mxu0 %v3282
        %v3346 = vpop.f32.mrf.mxu0
        %v3347 = vadd.f32 0.0, %v3346
        %3348 = vmatmul.f32.gmra.mxu0 %v3285
        %v3349 = vpop.f32.mrf.mxu0
        %v3350 = vadd.f32 0.0, %v3349
        %3351 = vdwg.mxu0
        %v3352 = vadd.f32 %v3168, %v3305
        %v3353 = vadd.f32 %v3171, %v3308
        %v3354 = vadd.f32 %v3174, %v3311
        %v3355 = vadd.f32 %v3177, %v3314
        %v3356 = vadd.f32 %v3180, %v3317
        %v3357 = vadd.f32 %v3183, %v3320
        %v3358 = vadd.f32 %v3186, %v3323
        %v3359 = vadd.f32 %v3189, %v3326
        %v3360 = vadd.f32 %v3192, %v3329
        %v3361 = vadd.f32 %v3195, %v3332
        %v3362 = vadd.f32 %v3198, %v3335
        %v3363 = vadd.f32 %v3201, %v3338
        %v3364 = vadd.f32 %v3204, %v3341
        %v3365 = vadd.f32 %v3207, %v3344
        %v3366 = vadd.f32 %v3210, %v3347
        %v3367 = vadd.f32 %v3213, %v3350
        %v3369 = vperm.slane %v421, 0
        %v3371 = vadd.f32 %v3352, %v3369
        %v3372 = vadd.f32 %v3353, %v3369
        %v3373 = vadd.f32 %v3354, %v3369
        %v3374 = vadd.f32 %v3355, %v3369
        %v3375 = vadd.f32 %v3356, %v3369
        %v3376 = vadd.f32 %v3357, %v3369
        %v3377 = vadd.f32 %v3358, %v3369
        %v3378 = vadd.f32 %v3359, %v3369
        %v3379 = vadd.f32 %v3360, %v3369
        %v3380 = vadd.f32 %v3361, %v3369
        %v3381 = vadd.f32 %v3362, %v3369
        %v3382 = vadd.f32 %v3363, %v3369
        %v3383 = vadd.f32 %v3364, %v3369
        %v3384 = vadd.f32 %v3365, %v3369
        %v3385 = vadd.f32 %v3366, %v3369
        %v3386 = vadd.f32 %v3367, %v3369
        %3387 = vst.msk [vmem:[%s454 + $0x1] sm:$0xff] %vm331, %v3371
        %3388 = vst.msk [vmem:[%s454 + $0x9] sm:$0xff] %vm331, %v3372
        %3389 = vst.msk [vmem:[%s454 + $0x19] sm:$0xff] %vm331, %v3373
        %3390 = vst.msk [vmem:[%s454 + $0x21] sm:$0xff] %vm331, %v3374
        %3391 = vst.msk [vmem:[%s454 + $0x31] sm:$0xff] %vm331, %v3375
        %3392 = vst.msk [vmem:[%s454 + $0x39] sm:$0xff] %vm331, %v3376
        %3393 = vst.msk [vmem:[%s454 + $0x49] sm:$0xff] %vm331, %v3377
        %3394 = vst.msk [vmem:[%s454 + $0x51] sm:$0xff] %vm331, %v3378
        %3395 = vst.msk [vmem:[%s454 + $0x61] sm:$0xff] %vm331, %v3379
        %3396 = vst.msk [vmem:[%s454 + $0x69] sm:$0xff] %vm331, %v3380
        %3397 = vst.msk [vmem:[%s454 + $0x79] sm:$0xff] %vm331, %v3381
        %3398 = vst.msk [vmem:[%s454 + $0x81] sm:$0xff] %vm331, %v3382
        %3399 = vst.msk [vmem:[%s454 + $0x91] sm:$0xff] %vm331, %v3383
        %3400 = vst.msk [vmem:[%s454 + $0x99] sm:$0xff] %vm331, %v3384
        %3401 = vst.msk [vmem:[%s454 + $0xa9] sm:$0xff] %vm331, %v3385
        %3402 = vst.msk [vmem:[%s454 + $0xb1] sm:$0xff] %vm331, %v3386
        %v3403 = vsel %vm331, %v3371, 0.0
        %v3404 = vsel %vm331, %v3372, 0.0
        %v3405 = vadd.f32 %v3403, %v3404
        %v3406 = vsel %vm331, %v3373, 0.0
        %v3407 = vadd.f32 %v3405, %v3406
        %v3408 = vsel %vm331, %v3374, 0.0
        %v3409 = vadd.f32 %v3407, %v3408
        %v3410 = vsel %vm331, %v3375, 0.0
        %v3411 = vadd.f32 %v3409, %v3410
        %v3412 = vsel %vm331, %v3376, 0.0
        %v3413 = vadd.f32 %v3411, %v3412
        %v3414 = vsel %vm331, %v3377, 0.0
        %v3415 = vadd.f32 %v3413, %v3414
        %v3416 = vsel %vm331, %v3378, 0.0
        %v3417 = vadd.f32 %v3415, %v3416
        %v3418 = vsel %vm331, %v3379, 0.0
        %v3419 = vadd.f32 %v3417, %v3418
        %v3420 = vsel %vm331, %v3380, 0.0
        %v3421 = vadd.f32 %v3419, %v3420
        %v3422 = vsel %vm331, %v3381, 0.0
        %v3423 = vadd.f32 %v3421, %v3422
        %v3424 = vsel %vm331, %v3382, 0.0
        %v3425 = vadd.f32 %v3423, %v3424
        %v3426 = vsel %vm331, %v3383, 0.0
        %v3427 = vadd.f32 %v3425, %v3426
        %v3428 = vsel %vm331, %v3384, 0.0
        %v3429 = vadd.f32 %v3427, %v3428
        %v3430 = vsel %vm331, %v3385, 0.0
        %v3431 = vadd.f32 %v3429, %v3430
        %v3432 = vsel %vm331, %v3386, 0.0
        %v3433 = vadd.f32 %v3431, %v3432
        %v3434 = vrot.slane %v3433, 4
        %v3435 = vadd.f32 %v3433, %v3434
        %v3436 = vrot.slane %v3435, 2
        %v3437 = vadd.f32 %v3435, %v3436
        %v3438 = vrot.slane %v3437, 1
        %v3439 = vadd.f32 %v3437, %v3438
        %v3440 = vadd.f32 %v3439, 0.0
        %s3441 = scalar_lea.vmem [#allocation3], 192
        %v3442 = vld [vmem:[%s3441] sm:$0xff]
        %v3443 = vld [vmem:[%s3441 + $0x8] sm:$0xff]
        %v3444 = vld [vmem:[%s3441 + $0x18] sm:$0xff]
        %v3445 = vld [vmem:[%s3441 + $0x20] sm:$0xff]
        %v3446 = vld [vmem:[%s3441 + $0x30] sm:$0xff]
        %v3447 = vld [vmem:[%s3441 + $0x38] sm:$0xff]
        %v3448 = vld [vmem:[%s3441 + $0x48] sm:$0xff]
        %v3449 = vld [vmem:[%s3441 + $0x50] sm:$0xff]
        %v3450 = vld [vmem:[%s3441 + $0x60] sm:$0xff]
        %v3451 = vld [vmem:[%s3441 + $0x68] sm:$0xff]
        %v3452 = vld [vmem:[%s3441 + $0x78] sm:$0xff]
        %v3453 = vld [vmem:[%s3441 + $0x80] sm:$0xff]
        %v3454 = vld [vmem:[%s3441 + $0x90] sm:$0xff]
        %v3455 = vld [vmem:[%s3441 + $0x98] sm:$0xff]
        %v3456 = vld [vmem:[%s3441 + $0xa8] sm:$0xff]
        %v3457 = vld [vmem:[%s3441 + $0xb0] sm:$0xff]
        %v3458 = vld [vmem:[%s3441 + $0x1] sm:$0xff]
        %v3459 = vld [vmem:[%s3441 + $0x9] sm:$0xff]
        %v3460 = vld [vmem:[%s3441 + $0x19] sm:$0xff]
        %v3461 = vld [vmem:[%s3441 + $0x21] sm:$0xff]
        %v3462 = vld [vmem:[%s3441 + $0x31] sm:$0xff]
        %v3463 = vld [vmem:[%s3441 + $0x39] sm:$0xff]
        %v3464 = vld [vmem:[%s3441 + $0x49] sm:$0xff]
        %v3465 = vld [vmem:[%s3441 + $0x51] sm:$0xff]
        %v3466 = vld [vmem:[%s3441 + $0x61] sm:$0xff]
        %v3467 = vld [vmem:[%s3441 + $0x69] sm:$0xff]
        %v3468 = vld [vmem:[%s3441 + $0x79] sm:$0xff]
        %v3469 = vld [vmem:[%s3441 + $0x81] sm:$0xff]
        %v3470 = vld [vmem:[%s3441 + $0x91] sm:$0xff]
        %v3471 = vld [vmem:[%s3441 + $0x99] sm:$0xff]
        %v3472 = vld [vmem:[%s3441 + $0xa9] sm:$0xff]
        %v3473 = vld [vmem:[%s3441 + $0xb1] sm:$0xff]
        %v3474 = vld [vmem:[%s3441 + $0x2] sm:$0xff]
        %v3475 = vld [vmem:[%s3441 + $0xa] sm:$0xff]
        %v3476 = vld [vmem:[%s3441 + $0x1a] sm:$0xff]
        %v3477 = vld [vmem:[%s3441 + $0x22] sm:$0xff]
        %v3478 = vld [vmem:[%s3441 + $0x32] sm:$0xff]
        %v3479 = vld [vmem:[%s3441 + $0x3a] sm:$0xff]
        %v3480 = vld [vmem:[%s3441 + $0x4a] sm:$0xff]
        %v3481 = vld [vmem:[%s3441 + $0x52] sm:$0xff]
        %v3482 = vld [vmem:[%s3441 + $0x62] sm:$0xff]
        %v3483 = vld [vmem:[%s3441 + $0x6a] sm:$0xff]
        %v3484 = vld [vmem:[%s3441 + $0x7a] sm:$0xff]
        %v3485 = vld [vmem:[%s3441 + $0x82] sm:$0xff]
        %v3486 = vld [vmem:[%s3441 + $0x92] sm:$0xff]
        %v3487 = vld [vmem:[%s3441 + $0x9a] sm:$0xff]
        %v3488 = vld [vmem:[%s3441 + $0xaa] sm:$0xff]
        %v3489 = vld [vmem:[%s3441 + $0xb2] sm:$0xff]
        %v3490 = vld [vmem:[%s2425] sm:$0xff]
        %v3491 = vld [vmem:[%s2425 + $0x8] sm:$0xff]
        %v3492 = vld [vmem:[%s2425 + $0x18] sm:$0xff]
        %v3493 = vld [vmem:[%s2425 + $0x20] sm:$0xff]
        %v3494 = vld [vmem:[%s2425 + $0x30] sm:$0xff]
        %v3495 = vld [vmem:[%s2425 + $0x38] sm:$0xff]
        %v3496 = vld [vmem:[%s2425 + $0x48] sm:$0xff]
        %v3497 = vld [vmem:[%s2425 + $0x50] sm:$0xff]
        %v3498 = vld [vmem:[%s2425 + $0x60] sm:$0xff]
        %v3499 = vld [vmem:[%s2425 + $0x68] sm:$0xff]
        %v3500 = vld [vmem:[%s2425 + $0x78] sm:$0xff]
        %v3501 = vld [vmem:[%s2425 + $0x80] sm:$0xff]
        %v3502 = vld [vmem:[%s2425 + $0x90] sm:$0xff]
        %v3503 = vld [vmem:[%s2425 + $0x98] sm:$0xff]
        %v3504 = vld [vmem:[%s2425 + $0xa8] sm:$0xff]
        %v3505 = vld [vmem:[%s2425 + $0xb0] sm:$0xff]
        %3522 = vrot.lane.b32.xlu0 %v3458, 64
        %v3523 = vpop.permute.xlu0 %3522
        %3524 = vrot.lane.b32.xlu0 %v3459, 64
        %v3525 = vpop.permute.xlu0 %3524
        %3526 = vrot.lane.b32.xlu0 %v3460, 64
        %v3527 = vpop.permute.xlu0 %3526
        %3528 = vrot.lane.b32.xlu0 %v3461, 64
        %v3529 = vpop.permute.xlu0 %3528
        %3530 = vrot.lane.b32.xlu0 %v3462, 64
        %v3531 = vpop.permute.xlu0 %3530
        %3532 = vrot.lane.b32.xlu0 %v3463, 64
        %v3533 = vpop.permute.xlu0 %3532
        %3534 = vrot.lane.b32.xlu0 %v3464, 64
        %v3535 = vpop.permute.xlu0 %3534
        %3536 = vrot.lane.b32.xlu0 %v3465, 64
        %v3537 = vpop.permute.xlu0 %3536
        %3538 = vrot.lane.b32.xlu0 %v3466, 64
        %v3539 = vpop.permute.xlu0 %3538
        %3540 = vrot.lane.b32.xlu0 %v3467, 64
        %v3541 = vpop.permute.xlu0 %3540
        %3542 = vrot.lane.b32.xlu0 %v3468, 64
        %v3543 = vpop.permute.xlu0 %3542
        %3544 = vrot.lane.b32.xlu0 %v3469, 64
        %v3545 = vpop.permute.xlu0 %3544
        %3546 = vrot.lane.b32.xlu0 %v3470, 64
        %v3547 = vpop.permute.xlu0 %3546
        %3548 = vrot.lane.b32.xlu0 %v3471, 64
        %v3549 = vpop.permute.xlu0 %3548
        %3550 = vrot.lane.b32.xlu0 %v3472, 64
        %v3551 = vpop.permute.xlu0 %3550
        %3552 = vrot.lane.b32.xlu0 %v3473, 64
        %v3553 = vpop.permute.xlu0 %3552
        %3586 = vrot.lane.b32.xlu0 %v3490, 64
        %v3587 = vpop.permute.xlu0 %3586
        %3588 = vrot.lane.b32.xlu0 %v3491, 64
        %v3589 = vpop.permute.xlu0 %3588
        %3590 = vrot.lane.b32.xlu0 %v3492, 64
        %v3591 = vpop.permute.xlu0 %3590
        %3592 = vrot.lane.b32.xlu0 %v3493, 64
        %v3593 = vpop.permute.xlu0 %3592
        %3594 = vrot.lane.b32.xlu0 %v3494, 64
        %v3595 = vpop.permute.xlu0 %3594
        %3596 = vrot.lane.b32.xlu0 %v3495, 64
        %v3597 = vpop.permute.xlu0 %3596
        %3598 = vrot.lane.b32.xlu0 %v3496, 64
        %v3599 = vpop.permute.xlu0 %3598
        %3600 = vrot.lane.b32.xlu0 %v3497, 64
        %v3601 = vpop.permute.xlu0 %3600
        %3602 = vrot.lane.b32.xlu0 %v3498, 64
        %v3603 = vpop.permute.xlu0 %3602
        %3604 = vrot.lane.b32.xlu0 %v3499, 64
        %v3605 = vpop.permute.xlu0 %3604
        %3606 = vrot.lane.b32.xlu0 %v3500, 64
        %v3607 = vpop.permute.xlu0 %3606
        %3608 = vrot.lane.b32.xlu0 %v3501, 64
        %v3609 = vpop.permute.xlu0 %3608
        %3610 = vrot.lane.b32.xlu0 %v3502, 64
        %v3611 = vpop.permute.xlu0 %3610
        %3612 = vrot.lane.b32.xlu0 %v3503, 64
        %v3613 = vpop.permute.xlu0 %3612
        %3614 = vrot.lane.b32.xlu0 %v3504, 64
        %v3615 = vpop.permute.xlu0 %3614
        %3616 = vrot.lane.b32.xlu0 %v3505, 64
        %v3617 = vpop.permute.xlu0 %3616
        %v3634 = vsel %vm331, %v3442, %v3523
        %v3635 = vsel %vm331, %v3443, %v3525
        %v3636 = vsel %vm331, %v3444, %v3527
        %v3637 = vsel %vm331, %v3445, %v3529
        %v3638 = vsel %vm331, %v3446, %v3531
        %v3639 = vsel %vm331, %v3447, %v3533
        %v3640 = vsel %vm331, %v3448, %v3535
        %v3641 = vsel %vm331, %v3449, %v3537
        %v3642 = vsel %vm331, %v3450, %v3539
        %v3643 = vsel %vm331, %v3451, %v3541
        %v3644 = vsel %vm331, %v3452, %v3543
        %v3645 = vsel %vm331, %v3453, %v3545
        %v3646 = vsel %vm331, %v3454, %v3547
        %v3647 = vsel %vm331, %v3455, %v3549
        %v3648 = vsel %vm331, %v3456, %v3551
        %v3649 = vsel %vm331, %v3457, %v3553
        %v3650 = vsel %vm331, %v3474, %v3587
        %v3651 = vsel %vm331, %v3475, %v3589
        %v3652 = vsel %vm331, %v3476, %v3591
        %v3653 = vsel %vm331, %v3477, %v3593
        %v3654 = vsel %vm331, %v3478, %v3595
        %v3655 = vsel %vm331, %v3479, %v3597
        %v3656 = vsel %vm331, %v3480, %v3599
        %v3657 = vsel %vm331, %v3481, %v3601
        %v3658 = vsel %vm331, %v3482, %v3603
        %v3659 = vsel %vm331, %v3483, %v3605
        %v3660 = vsel %vm331, %v3484, %v3607
        %v3661 = vsel %vm331, %v3485, %v3609
        %v3662 = vsel %vm331, %v3486, %v3611
        %v3663 = vsel %vm331, %v3487, %v3613
        %v3664 = vsel %vm331, %v3488, %v3615
        %v3665 = vsel %vm331, %v3489, %v3617
        %v3666 = vld [vmem:[%s3] sm:$0xff]
        %v3667 = vld [vmem:[%s3 + $0x8] sm:$0xff]
        %v3668 = vld [vmem:[%s3 + $0x10] sm:$0xff]
        %v3669 = vld [vmem:[%s3 + $0x18] sm:$0xff]
        %v3670 = vld [vmem:[%s3 + $0x20] sm:$0xff]
        %v3671 = vld [vmem:[%s3 + $0x28] sm:$0xff]
        %v3672 = vld [vmem:[%s3 + $0x30] sm:$0xff]
        %v3673 = vld [vmem:[%s3 + $0x38] sm:$0xff]
        %v3674 = vld [vmem:[%s3 + $0x40] sm:$0xff]
        %v3675 = vld [vmem:[%s3 + $0x48] sm:$0xff]
        %v3676 = vld [vmem:[%s3 + $0x50] sm:$0xff]
        %v3677 = vld [vmem:[%s3 + $0x58] sm:$0xff]
        %v3678 = vld [vmem:[%s3 + $0x60] sm:$0xff]
        %v3679 = vld [vmem:[%s3 + $0x68] sm:$0xff]
        %v3680 = vld [vmem:[%s3 + $0x70] sm:$0xff]
        %v3681 = vld [vmem:[%s3 + $0x78] sm:$0xff]
        %v3682 = vld [vmem:[%s3 + $0x80] sm:$0xff]
        %v3683 = vld [vmem:[%s3 + $0x88] sm:$0xff]
        %v3684 = vld [vmem:[%s3 + $0x90] sm:$0xff]
        %v3685 = vld [vmem:[%s3 + $0x98] sm:$0xff]
        %v3686 = vld [vmem:[%s3 + $0xa0] sm:$0xff]
        %v3687 = vld [vmem:[%s3 + $0xa8] sm:$0xff]
        %v3688 = vld [vmem:[%s3 + $0xb0] sm:$0xff]
        %v3689 = vld [vmem:[%s3 + $0xb8] sm:$0xff]
        %v3690 = vld [vmem:[%s3 + $0xc0] sm:$0xff]
        %v3691 = vld [vmem:[%s3 + $0xc8] sm:$0xff]
        %v3692 = vld [vmem:[%s3 + $0xd0] sm:$0xff]
        %v3693 = vld [vmem:[%s3 + $0xd8] sm:$0xff]
        %v3694 = vld [vmem:[%s3 + $0xe0] sm:$0xff]
        %v3695 = vld [vmem:[%s3 + $0xe8] sm:$0xff]
        %v3696 = vld [vmem:[%s3 + $0xf0] sm:$0xff]
        %v3697 = vld [vmem:[%s3 + $0xf8] sm:$0xff]
        %v3698 = vld [vmem:[%s2425 + $0x1] sm:$0xff]
        %v3699 = vld [vmem:[%s2425 + $0x9] sm:$0xff]
        %v3700 = vld [vmem:[%s2425 + $0x19] sm:$0xff]
        %v3701 = vld [vmem:[%s2425 + $0x21] sm:$0xff]
        %v3702 = vld [vmem:[%s2425 + $0x31] sm:$0xff]
        %v3703 = vld [vmem:[%s2425 + $0x39] sm:$0xff]
        %v3704 = vld [vmem:[%s2425 + $0x49] sm:$0xff]
        %v3705 = vld [vmem:[%s2425 + $0x51] sm:$0xff]
        %v3706 = vld [vmem:[%s2425 + $0x61] sm:$0xff]
        %v3707 = vld [vmem:[%s2425 + $0x69] sm:$0xff]
        %v3708 = vld [vmem:[%s2425 + $0x79] sm:$0xff]
        %v3709 = vld [vmem:[%s2425 + $0x81] sm:$0xff]
        %v3710 = vld [vmem:[%s2425 + $0x91] sm:$0xff]
        %v3711 = vld [vmem:[%s2425 + $0x99] sm:$0xff]
        %v3712 = vld [vmem:[%s2425 + $0xa9] sm:$0xff]
        %v3713 = vld [vmem:[%s2425 + $0xb1] sm:$0xff]
        %v3714 = vld [vmem:[%s2425 + $0x2] sm:$0xff]
        %v3715 = vld [vmem:[%s2425 + $0xa] sm:$0xff]
        %v3716 = vld [vmem:[%s2425 + $0x1a] sm:$0xff]
        %v3717 = vld [vmem:[%s2425 + $0x22] sm:$0xff]
        %v3718 = vld [vmem:[%s2425 + $0x32] sm:$0xff]
        %v3719 = vld [vmem:[%s2425 + $0x3a] sm:$0xff]
        %v3720 = vld [vmem:[%s2425 + $0x4a] sm:$0xff]
        %v3721 = vld [vmem:[%s2425 + $0x52] sm:$0xff]
        %v3722 = vld [vmem:[%s2425 + $0x62] sm:$0xff]
        %v3723 = vld [vmem:[%s2425 + $0x6a] sm:$0xff]
        %v3724 = vld [vmem:[%s2425 + $0x7a] sm:$0xff]
        %v3725 = vld [vmem:[%s2425 + $0x82] sm:$0xff]
        %v3726 = vld [vmem:[%s2425 + $0x92] sm:$0xff]
        %v3727 = vld [vmem:[%s2425 + $0x9a] sm:$0xff]
        %v3728 = vld [vmem:[%s2425 + $0xaa] sm:$0xff]
        %v3729 = vld [vmem:[%s2425 + $0xb2] sm:$0xff]
        %s3730 = scalar_lea.vmem [#allocation3], 240
        %v3731 = vld [vmem:[%s3730] sm:$0xff]
        %v3732 = vld [vmem:[%s3730 + $0x8] sm:$0xff]
        %v3733 = vld [vmem:[%s3730 + $0x18] sm:$0xff]
        %v3734 = vld [vmem:[%s3730 + $0x20] sm:$0xff]
        %v3735 = vld [vmem:[%s3730 + $0x30] sm:$0xff]
        %v3736 = vld [vmem:[%s3730 + $0x38] sm:$0xff]
        %v3737 = vld [vmem:[%s3730 + $0x48] sm:$0xff]
        %v3738 = vld [vmem:[%s3730 + $0x50] sm:$0xff]
        %v3739 = vld [vmem:[%s3730 + $0x60] sm:$0xff]
        %v3740 = vld [vmem:[%s3730 + $0x68] sm:$0xff]
        %v3741 = vld [vmem:[%s3730 + $0x78] sm:$0xff]
        %v3742 = vld [vmem:[%s3730 + $0x80] sm:$0xff]
        %v3743 = vld [vmem:[%s3730 + $0x90] sm:$0xff]
        %v3744 = vld [vmem:[%s3730 + $0x98] sm:$0xff]
        %v3745 = vld [vmem:[%s3730 + $0xa8] sm:$0xff]
        %v3746 = vld [vmem:[%s3730 + $0xb0] sm:$0xff]
        %v3747 = vld [vmem:[%s3730 + $0x1] sm:$0xff]
        %v3748 = vld [vmem:[%s3730 + $0x9] sm:$0xff]
        %v3749 = vld [vmem:[%s3730 + $0x19] sm:$0xff]
        %v3750 = vld [vmem:[%s3730 + $0x21] sm:$0xff]
        %v3751 = vld [vmem:[%s3730 + $0x31] sm:$0xff]
        %v3752 = vld [vmem:[%s3730 + $0x39] sm:$0xff]
        %v3753 = vld [vmem:[%s3730 + $0x49] sm:$0xff]
        %v3754 = vld [vmem:[%s3730 + $0x51] sm:$0xff]
        %v3755 = vld [vmem:[%s3730 + $0x61] sm:$0xff]
        %v3756 = vld [vmem:[%s3730 + $0x69] sm:$0xff]
        %v3757 = vld [vmem:[%s3730 + $0x79] sm:$0xff]
        %v3758 = vld [vmem:[%s3730 + $0x81] sm:$0xff]
        %v3759 = vld [vmem:[%s3730 + $0x91] sm:$0xff]
        %v3760 = vld [vmem:[%s3730 + $0x99] sm:$0xff]
        %v3761 = vld [vmem:[%s3730 + $0xa9] sm:$0xff]
        %v3762 = vld [vmem:[%s3730 + $0xb1] sm:$0xff]
        %3779 = vrot.lane.b32.xlu0 %v3714, 64
        %v3780 = vpop.permute.xlu0 %3779
        %3781 = vrot.lane.b32.xlu0 %v3715, 64
        %v3782 = vpop.permute.xlu0 %3781
        %3783 = vrot.lane.b32.xlu0 %v3716, 64
        %v3784 = vpop.permute.xlu0 %3783
        %3785 = vrot.lane.b32.xlu0 %v3717, 64
        %v3786 = vpop.permute.xlu0 %3785
        %3787 = vrot.lane.b32.xlu0 %v3718, 64
        %v3788 = vpop.permute.xlu0 %3787
        %3789 = vrot.lane.b32.xlu0 %v3719, 64
        %v3790 = vpop.permute.xlu0 %3789
        %3791 = vrot.lane.b32.xlu0 %v3720, 64
        %v3792 = vpop.permute.xlu0 %3791
        %3793 = vrot.lane.b32.xlu0 %v3721, 64
        %v3794 = vpop.permute.xlu0 %3793
        %3795 = vrot.lane.b32.xlu0 %v3722, 64
        %v3796 = vpop.permute.xlu0 %3795
        %3797 = vrot.lane.b32.xlu0 %v3723, 64
        %v3798 = vpop.permute.xlu0 %3797
        %3799 = vrot.lane.b32.xlu0 %v3724, 64
        %v3800 = vpop.permute.xlu0 %3799
        %3801 = vrot.lane.b32.xlu0 %v3725, 64
        %v3802 = vpop.permute.xlu0 %3801
        %3803 = vrot.lane.b32.xlu0 %v3726, 64
        %v3804 = vpop.permute.xlu0 %3803
        %3805 = vrot.lane.b32.xlu0 %v3727, 64
        %v3806 = vpop.permute.xlu0 %3805
        %3807 = vrot.lane.b32.xlu0 %v3728, 64
        %v3808 = vpop.permute.xlu0 %3807
        %3809 = vrot.lane.b32.xlu0 %v3729, 64
        %v3810 = vpop.permute.xlu0 %3809
        %3843 = vrot.lane.b32.xlu0 %v3747, 64
        %v3844 = vpop.permute.xlu0 %3843
        %3845 = vrot.lane.b32.xlu0 %v3748, 64
        %v3846 = vpop.permute.xlu0 %3845
        %3847 = vrot.lane.b32.xlu0 %v3749, 64
        %v3848 = vpop.permute.xlu0 %3847
        %3849 = vrot.lane.b32.xlu0 %v3750, 64
        %v3850 = vpop.permute.xlu0 %3849
        %3851 = vrot.lane.b32.xlu0 %v3751, 64
        %v3852 = vpop.permute.xlu0 %3851
        %3853 = vrot.lane.b32.xlu0 %v3752, 64
        %v3854 = vpop.permute.xlu0 %3853
        %3855 = vrot.lane.b32.xlu0 %v3753, 64
        %v3856 = vpop.permute.xlu0 %3855
        %3857 = vrot.lane.b32.xlu0 %v3754, 64
        %v3858 = vpop.permute.xlu0 %3857
        %3859 = vrot.lane.b32.xlu0 %v3755, 64
        %v3860 = vpop.permute.xlu0 %3859
        %3861 = vrot.lane.b32.xlu0 %v3756, 64
        %v3862 = vpop.permute.xlu0 %3861
        %3863 = vrot.lane.b32.xlu0 %v3757, 64
        %v3864 = vpop.permute.xlu0 %3863
        %3865 = vrot.lane.b32.xlu0 %v3758, 64
        %v3866 = vpop.permute.xlu0 %3865
        %3867 = vrot.lane.b32.xlu0 %v3759, 64
        %v3868 = vpop.permute.xlu0 %3867
        %3869 = vrot.lane.b32.xlu0 %v3760, 64
        %v3870 = vpop.permute.xlu0 %3869
        %3871 = vrot.lane.b32.xlu0 %v3761, 64
        %v3872 = vpop.permute.xlu0 %3871
        %3873 = vrot.lane.b32.xlu0 %v3762, 64
        %v3874 = vpop.permute.xlu0 %3873
        %v3891 = vsel %vm331, %v3698, %v3780
        %v3892 = vsel %vm331, %v3699, %v3782
        %v3893 = vsel %vm331, %v3700, %v3784
        %v3894 = vsel %vm331, %v3701, %v3786
        %v3895 = vsel %vm331, %v3702, %v3788
        %v3896 = vsel %vm331, %v3703, %v3790
        %v3897 = vsel %vm331, %v3704, %v3792
        %v3898 = vsel %vm331, %v3705, %v3794
        %v3899 = vsel %vm331, %v3706, %v3796
        %v3900 = vsel %vm331, %v3707, %v3798
        %v3901 = vsel %vm331, %v3708, %v3800
        %v3902 = vsel %vm331, %v3709, %v3802
        %v3903 = vsel %vm331, %v3710, %v3804
        %v3904 = vsel %vm331, %v3711, %v3806
        %v3905 = vsel %vm331, %v3712, %v3808
        %v3906 = vsel %vm331, %v3713, %v3810
        %v3907 = vsel %vm331, %v3731, %v3844
        %v3908 = vsel %vm331, %v3732, %v3846
        %v3909 = vsel %vm331, %v3733, %v3848
        %v3910 = vsel %vm331, %v3734, %v3850
        %v3911 = vsel %vm331, %v3735, %v3852
        %v3912 = vsel %vm331, %v3736, %v3854
        %v3913 = vsel %vm331, %v3737, %v3856
        %v3914 = vsel %vm331, %v3738, %v3858
        %v3915 = vsel %vm331, %v3739, %v3860
        %v3916 = vsel %vm331, %v3740, %v3862
        %v3917 = vsel %vm331, %v3741, %v3864
        %v3918 = vsel %vm331, %v3742, %v3866
        %v3919 = vsel %vm331, %v3743, %v3868
        %v3920 = vsel %vm331, %v3744, %v3870
        %v3921 = vsel %vm331, %v3745, %v3872
        %v3922 = vsel %vm331, %v3746, %v3874
        %v3923 = vld [vmem:[%s3 + $0x100] sm:$0xff]
        %v3924 = vld [vmem:[%s3 + $0x108] sm:$0xff]
        %v3925 = vld [vmem:[%s3 + $0x110] sm:$0xff]
        %v3926 = vld [vmem:[%s3 + $0x118] sm:$0xff]
        %v3927 = vld [vmem:[%s3 + $0x120] sm:$0xff]
        %v3928 = vld [vmem:[%s3 + $0x128] sm:$0xff]
        %v3929 = vld [vmem:[%s3 + $0x130] sm:$0xff]
        %v3930 = vld [vmem:[%s3 + $0x138] sm:$0xff]
        %v3931 = vld [vmem:[%s3 + $0x140] sm:$0xff]
        %v3932 = vld [vmem:[%s3 + $0x148] sm:$0xff]
        %v3933 = vld [vmem:[%s3 + $0x150] sm:$0xff]
        %v3934 = vld [vmem:[%s3 + $0x158] sm:$0xff]
        %v3935 = vld [vmem:[%s3 + $0x160] sm:$0xff]
        %v3936 = vld [vmem:[%s3 + $0x168] sm:$0xff]
        %v3937 = vld [vmem:[%s3 + $0x170] sm:$0xff]
        %v3938 = vld [vmem:[%s3 + $0x178] sm:$0xff]
        %v3939 = vld [vmem:[%s3 + $0x180] sm:$0xff]
        %v3940 = vld [vmem:[%s3 + $0x188] sm:$0xff]
        %v3941 = vld [vmem:[%s3 + $0x190] sm:$0xff]
        %v3942 = vld [vmem:[%s3 + $0x198] sm:$0xff]
        %v3943 = vld [vmem:[%s3 + $0x1a0] sm:$0xff]
        %v3944 = vld [vmem:[%s3 + $0x1a8] sm:$0xff]
        %v3945 = vld [vmem:[%s3 + $0x1b0] sm:$0xff]
        %v3946 = vld [vmem:[%s3 + $0x1b8] sm:$0xff]
        %v3947 = vld [vmem:[%s3 + $0x1c0] sm:$0xff]
        %v3948 = vld [vmem:[%s3 + $0x1c8] sm:$0xff]
        %v3949 = vld [vmem:[%s3 + $0x1d0] sm:$0xff]
        %v3950 = vld [vmem:[%s3 + $0x1d8] sm:$0xff]
        %v3951 = vld [vmem:[%s3 + $0x1e0] sm:$0xff]
        %v3952 = vld [vmem:[%s3 + $0x1e8] sm:$0xff]
        %v3953 = vld [vmem:[%s3 + $0x1f0] sm:$0xff]
        %v3954 = vld [vmem:[%s3 + $0x1f8] sm:$0xff]
        %3955 = vmatpush.msra.mxu0 %v3938
        %3956 = vmatpush.msra.mxu0 %v3937
        %3957 = vmatpush.msra.mxu0 %v3936
        %3958 = vmatpush.msra.mxu0 %v3935
        %3959 = vmatpush.msra.mxu0 %v3934
        %3960 = vmatpush.msra.mxu0 %v3933
        %3961 = vmatpush.msra.mxu0 %v3932
        %3962 = vmatpush.msra.mxu0 %v3931
        %3963 = vmatpush.msra.mxu0 %v3930
        %3964 = vmatpush.msra.mxu0 %v3929
        %3965 = vmatpush.msra.mxu0 %v3928
        %3966 = vmatpush.msra.mxu0 %v3927
        %3967 = vmatpush.msra.mxu0 %v3926
        %3968 = vmatpush.msra.mxu0 %v3925
        %3969 = vmatpush.msra.mxu0 %v3924
        %3970 = vmatpush.msra.mxu0 %v3923
        %3971 = vmatmul.f32.gmra.mxu0 %v3891
        %v3972 = vpop.f32.mrf.mxu0
        %v3973 = vadd.f32 0.0, %v3972
        %3974 = vmatmul.f32.gmra.mxu0 %v3892
        %v3975 = vpop.f32.mrf.mxu0
        %v3976 = vadd.f32 0.0, %v3975
        %3977 = vmatmul.f32.gmra.mxu0 %v3893
        %v3978 = vpop.f32.mrf.mxu0
        %v3979 = vadd.f32 0.0, %v3978
        %3980 = vmatmul.f32.gmra.mxu0 %v3894
        %v3981 = vpop.f32.mrf.mxu0
        %v3982 = vadd.f32 0.0, %v3981
        %3983 = vmatmul.f32.gmra.mxu0 %v3895
        %v3984 = vpop.f32.mrf.mxu0
        %v3985 = vadd.f32 0.0, %v3984
        %3986 = vmatmul.f32.gmra.mxu0 %v3896
        %v3987 = vpop.f32.mrf.mxu0
        %v3988 = vadd.f32 0.0, %v3987
        %3989 = vmatmul.f32.gmra.mxu0 %v3897
        %v3990 = vpop.f32.mrf.mxu0
        %v3991 = vadd.f32 0.0, %v3990
        %3992 = vmatmul.f32.gmra.mxu0 %v3898
        %v3993 = vpop.f32.mrf.mxu0
        %v3994 = vadd.f32 0.0, %v3993
        %3995 = vmatmul.f32.gmra.mxu0 %v3899
        %v3996 = vpop.f32.mrf.mxu0
        %v3997 = vadd.f32 0.0, %v3996
        %3998 = vmatmul.f32.gmra.mxu0 %v3900
        %v3999 = vpop.f32.mrf.mxu0
        %v4000 = vadd.f32 0.0, %v3999
        %4001 = vmatmul.f32.gmra.mxu0 %v3901
        %v4002 = vpop.f32.mrf.mxu0
        %v4003 = vadd.f32 0.0, %v4002
        %4004 = vmatmul.f32.gmra.mxu0 %v3902
        %v4005 = vpop.f32.mrf.mxu0
        %v4006 = vadd.f32 0.0, %v4005
        %4007 = vmatmul.f32.gmra.mxu0 %v3903
        %v4008 = vpop.f32.mrf.mxu0
        %v4009 = vadd.f32 0.0, %v4008
        %4010 = vmatmul.f32.gmra.mxu0 %v3904
        %v4011 = vpop.f32.mrf.mxu0
        %v4012 = vadd.f32 0.0, %v4011
        %4013 = vmatmul.f32.gmra.mxu0 %v3905
        %v4014 = vpop.f32.mrf.mxu0
        %v4015 = vadd.f32 0.0, %v4014
        %4016 = vmatmul.f32.gmra.mxu0 %v3906
        %v4017 = vpop.f32.mrf.mxu0
        %v4018 = vadd.f32 0.0, %v4017
        %4019 = vdwg.mxu0
        %4020 = vmatpush.msra.mxu0 %v3954
        %4021 = vmatpush.msra.mxu0 %v3953
        %4022 = vmatpush.msra.mxu0 %v3952
        %4023 = vmatpush.msra.mxu0 %v3951
        %4024 = vmatpush.msra.mxu0 %v3950
        %4025 = vmatpush.msra.mxu0 %v3949
        %4026 = vmatpush.msra.mxu0 %v3948
        %4027 = vmatpush.msra.mxu0 %v3947
        %4028 = vmatpush.msra.mxu0 %v3946
        %4029 = vmatpush.msra.mxu0 %v3945
        %4030 = vmatpush.msra.mxu0 %v3944
        %4031 = vmatpush.msra.mxu0 %v3943
        %4032 = vmatpush.msra.mxu0 %v3942
        %4033 = vmatpush.msra.mxu0 %v3941
        %4034 = vmatpush.msra.mxu0 %v3940
        %4035 = vmatpush.msra.mxu0 %v3939
        %4036 = vmatmul.f32.gmra.mxu0 %v3907
        %v4037 = vpop.f32.mrf.mxu0
        %v4038 = vadd.f32 %v3973, %v4037
        %4039 = vmatmul.f32.gmra.mxu0 %v3908
        %v4040 = vpop.f32.mrf.mxu0
        %v4041 = vadd.f32 %v3976, %v4040
        %4042 = vmatmul.f32.gmra.mxu0 %v3909
        %v4043 = vpop.f32.mrf.mxu0
        %v4044 = vadd.f32 %v3979, %v4043
        %4045 = vmatmul.f32.gmra.mxu0 %v3910
        %v4046 = vpop.f32.mrf.mxu0
        %v4047 = vadd.f32 %v3982, %v4046
        %4048 = vmatmul.f32.gmra.mxu0 %v3911
        %v4049 = vpop.f32.mrf.mxu0
        %v4050 = vadd.f32 %v3985, %v4049
        %4051 = vmatmul.f32.gmra.mxu0 %v3912
        %v4052 = vpop.f32.mrf.mxu0
        %v4053 = vadd.f32 %v3988, %v4052
        %4054 = vmatmul.f32.gmra.mxu0 %v3913
        %v4055 = vpop.f32.mrf.mxu0
        %v4056 = vadd.f32 %v3991, %v4055
        %4057 = vmatmul.f32.gmra.mxu0 %v3914
        %v4058 = vpop.f32.mrf.mxu0
        %v4059 = vadd.f32 %v3994, %v4058
        %4060 = vmatmul.f32.gmra.mxu0 %v3915
        %v4061 = vpop.f32.mrf.mxu0
        %v4062 = vadd.f32 %v3997, %v4061
        %4063 = vmatmul.f32.gmra.mxu0 %v3916
        %v4064 = vpop.f32.mrf.mxu0
        %v4065 = vadd.f32 %v4000, %v4064
        %4066 = vmatmul.f32.gmra.mxu0 %v3917
        %v4067 = vpop.f32.mrf.mxu0
        %v4068 = vadd.f32 %v4003, %v4067
        %4069 = vmatmul.f32.gmra.mxu0 %v3918
        %v4070 = vpop.f32.mrf.mxu0
        %v4071 = vadd.f32 %v4006, %v4070
        %4072 = vmatmul.f32.gmra.mxu0 %v3919
        %v4073 = vpop.f32.mrf.mxu0
        %v4074 = vadd.f32 %v4009, %v4073
        %4075 = vmatmul.f32.gmra.mxu0 %v3920
        %v4076 = vpop.f32.mrf.mxu0
        %v4077 = vadd.f32 %v4012, %v4076
        %4078 = vmatmul.f32.gmra.mxu0 %v3921
        %v4079 = vpop.f32.mrf.mxu0
        %v4080 = vadd.f32 %v4015, %v4079
        %4081 = vmatmul.f32.gmra.mxu0 %v3922
        %v4082 = vpop.f32.mrf.mxu0
        %v4083 = vadd.f32 %v4018, %v4082
        %4084 = vdwg.mxu0
        %4085 = vmatpush.msra.mxu0 %v3681
        %4086 = vmatpush.msra.mxu0 %v3680
        %4087 = vmatpush.msra.mxu0 %v3679
        %4088 = vmatpush.msra.mxu0 %v3678
        %4089 = vmatpush.msra.mxu0 %v3677
        %4090 = vmatpush.msra.mxu0 %v3676
        %4091 = vmatpush.msra.mxu0 %v3675
        %4092 = vmatpush.msra.mxu0 %v3674
        %4093 = vmatpush.msra.mxu0 %v3673
        %4094 = vmatpush.msra.mxu0 %v3672
        %4095 = vmatpush.msra.mxu0 %v3671
        %4096 = vmatpush.msra.mxu0 %v3670
        %4097 = vmatpush.msra.mxu0 %v3669
        %4098 = vmatpush.msra.mxu0 %v3668
        %4099 = vmatpush.msra.mxu0 %v3667
        %4100 = vmatpush.msra.mxu0 %v3666
        %4101 = vmatmul.f32.gmra.mxu0 %v3634
        %v4102 = vpop.f32.mrf.mxu0
        %v4103 = vadd.f32 %v4038, %v4102
        %4104 = vmatmul.f32.gmra.mxu0 %v3635
        %v4105 = vpop.f32.mrf.mxu0
        %v4106 = vadd.f32 %v4041, %v4105
        %4107 = vmatmul.f32.gmra.mxu0 %v3636
        %v4108 = vpop.f32.mrf.mxu0
        %v4109 = vadd.f32 %v4044, %v4108
        %4110 = vmatmul.f32.gmra.mxu0 %v3637
        %v4111 = vpop.f32.mrf.mxu0
        %v4112 = vadd.f32 %v4047, %v4111
        %4113 = vmatmul.f32.gmra.mxu0 %v3638
        %v4114 = vpop.f32.mrf.mxu0
        %v4115 = vadd.f32 %v4050, %v4114
        %4116 = vmatmul.f32.gmra.mxu0 %v3639
        %v4117 = vpop.f32.mrf.mxu0
        %v4118 = vadd.f32 %v4053, %v4117
        %4119 = vmatmul.f32.gmra.mxu0 %v3640
        %v4120 = vpop.f32.mrf.mxu0
        %v4121 = vadd.f32 %v4056, %v4120
        %4122 = vmatmul.f32.gmra.mxu0 %v3641
        %v4123 = vpop.f32.mrf.mxu0
        %v4124 = vadd.f32 %v4059, %v4123
        %4125 = vmatmul.f32.gmra.mxu0 %v3642
        %v4126 = vpop.f32.mrf.mxu0
        %v4127 = vadd.f32 %v4062, %v4126
        %4128 = vmatmul.f32.gmra.mxu0 %v3643
        %v4129 = vpop.f32.mrf.mxu0
        %v4130 = vadd.f32 %v4065, %v4129
        %4131 = vmatmul.f32.gmra.mxu0 %v3644
        %v4132 = vpop.f32.mrf.mxu0
        %v4133 = vadd.f32 %v4068, %v4132
        %4134 = vmatmul.f32.gmra.mxu0 %v3645
        %v4135 = vpop.f32.mrf.mxu0
        %v4136 = vadd.f32 %v4071, %v4135
        %4137 = vmatmul.f32.gmra.mxu0 %v3646
        %v4138 = vpop.f32.mrf.mxu0
        %v4139 = vadd.f32 %v4074, %v4138
        %4140 = vmatmul.f32.gmra.mxu0 %v3647
        %v4141 = vpop.f32.mrf.mxu0
        %v4142 = vadd.f32 %v4077, %v4141
        %4143 = vmatmul.f32.gmra.mxu0 %v3648
        %v4144 = vpop.f32.mrf.mxu0
        %v4145 = vadd.f32 %v4080, %v4144
        %4146 = vmatmul.f32.gmra.mxu0 %v3649
        %v4147 = vpop.f32.mrf.mxu0
        %v4148 = vadd.f32 %v4083, %v4147
        %4149 = vdwg.mxu0
        %4150 = vmatpush.msra.mxu0 %v3697
        %4151 = vmatpush.msra.mxu0 %v3696
        %4152 = vmatpush.msra.mxu0 %v3695
        %4153 = vmatpush.msra.mxu0 %v3694
        %4154 = vmatpush.msra.mxu0 %v3693
        %4155 = vmatpush.msra.mxu0 %v3692
        %4156 = vmatpush.msra.mxu0 %v3691
        %4157 = vmatpush.msra.mxu0 %v3690
        %4158 = vmatpush.msra.mxu0 %v3689
        %4159 = vmatpush.msra.mxu0 %v3688
        %4160 = vmatpush.msra.mxu0 %v3687
        %4161 = vmatpush.msra.mxu0 %v3686
        %4162 = vmatpush.msra.mxu0 %v3685
        %4163 = vmatpush.msra.mxu0 %v3684
        %4164 = vmatpush.msra.mxu0 %v3683
        %4165 = vmatpush.msra.mxu0 %v3682
        %4166 = vmatmul.f32.gmra.mxu0 %v3650
        %v4167 = vpop.f32.mrf.mxu0
        %v4168 = vadd.f32 %v4103, %v4167
        %4169 = vmatmul.f32.gmra.mxu0 %v3651
        %v4170 = vpop.f32.mrf.mxu0
        %v4171 = vadd.f32 %v4106, %v4170
        %4172 = vmatmul.f32.gmra.mxu0 %v3652
        %v4173 = vpop.f32.mrf.mxu0
        %v4174 = vadd.f32 %v4109, %v4173
        %4175 = vmatmul.f32.gmra.mxu0 %v3653
        %v4176 = vpop.f32.mrf.mxu0
        %v4177 = vadd.f32 %v4112, %v4176
        %4178 = vmatmul.f32.gmra.mxu0 %v3654
        %v4179 = vpop.f32.mrf.mxu0
        %v4180 = vadd.f32 %v4115, %v4179
        %4181 = vmatmul.f32.gmra.mxu0 %v3655
        %v4182 = vpop.f32.mrf.mxu0
        %v4183 = vadd.f32 %v4118, %v4182
        %4184 = vmatmul.f32.gmra.mxu0 %v3656
        %v4185 = vpop.f32.mrf.mxu0
        %v4186 = vadd.f32 %v4121, %v4185
        %4187 = vmatmul.f32.gmra.mxu0 %v3657
        %v4188 = vpop.f32.mrf.mxu0
        %v4189 = vadd.f32 %v4124, %v4188
        %4190 = vmatmul.f32.gmra.mxu0 %v3658
        %v4191 = vpop.f32.mrf.mxu0
        %v4192 = vadd.f32 %v4127, %v4191
        %4193 = vmatmul.f32.gmra.mxu0 %v3659
        %v4194 = vpop.f32.mrf.mxu0
        %v4195 = vadd.f32 %v4130, %v4194
        %4196 = vmatmul.f32.gmra.mxu0 %v3660
        %v4197 = vpop.f32.mrf.mxu0
        %v4198 = vadd.f32 %v4133, %v4197
        %4199 = vmatmul.f32.gmra.mxu0 %v3661
        %v4200 = vpop.f32.mrf.mxu0
        %v4201 = vadd.f32 %v4136, %v4200
        %4202 = vmatmul.f32.gmra.mxu0 %v3662
        %v4203 = vpop.f32.mrf.mxu0
        %v4204 = vadd.f32 %v4139, %v4203
        %4205 = vmatmul.f32.gmra.mxu0 %v3663
        %v4206 = vpop.f32.mrf.mxu0
        %v4207 = vadd.f32 %v4142, %v4206
        %4208 = vmatmul.f32.gmra.mxu0 %v3664
        %v4209 = vpop.f32.mrf.mxu0
        %v4210 = vadd.f32 %v4145, %v4209
        %4211 = vmatmul.f32.gmra.mxu0 %v3665
        %v4212 = vpop.f32.mrf.mxu0
        %v4213 = vadd.f32 %v4148, %v4212
        %4214 = vdwg.mxu0
        %v4215 = vld [vmem:[%s3730 + $0x2] sm:$0xff]
        %v4216 = vld [vmem:[%s3730 + $0xa] sm:$0xff]
        %v4217 = vld [vmem:[%s3730 + $0x1a] sm:$0xff]
        %v4218 = vld [vmem:[%s3730 + $0x22] sm:$0xff]
        %v4219 = vld [vmem:[%s3730 + $0x32] sm:$0xff]
        %v4220 = vld [vmem:[%s3730 + $0x3a] sm:$0xff]
        %v4221 = vld [vmem:[%s3730 + $0x4a] sm:$0xff]
        %v4222 = vld [vmem:[%s3730 + $0x52] sm:$0xff]
        %v4223 = vld [vmem:[%s3730 + $0x62] sm:$0xff]
        %v4224 = vld [vmem:[%s3730 + $0x6a] sm:$0xff]
        %v4225 = vld [vmem:[%s3730 + $0x7a] sm:$0xff]
        %v4226 = vld [vmem:[%s3730 + $0x82] sm:$0xff]
        %v4227 = vld [vmem:[%s3730 + $0x92] sm:$0xff]
        %v4228 = vld [vmem:[%s3730 + $0x9a] sm:$0xff]
        %v4229 = vld [vmem:[%s3730 + $0xaa] sm:$0xff]
        %v4230 = vld [vmem:[%s3730 + $0xb2] sm:$0xff]
        %v4231 = vld [vmem:[%s3 + $0x200] sm:$0xff]
        %v4232 = vld [vmem:[%s3 + $0x208] sm:$0xff]
        %v4233 = vld [vmem:[%s3 + $0x210] sm:$0xff]
        %v4234 = vld [vmem:[%s3 + $0x218] sm:$0xff]
        %v4235 = vld [vmem:[%s3 + $0x220] sm:$0xff]
        %v4236 = vld [vmem:[%s3 + $0x228] sm:$0xff]
        %v4237 = vld [vmem:[%s3 + $0x230] sm:$0xff]
        %v4238 = vld [vmem:[%s3 + $0x238] sm:$0xff]
        %v4240 = vsel %vm331, %v4215, 0
        %v4243 = vsel %vm331, %v4216, 0
        %v4246 = vsel %vm331, %v4217, 0
        %v4249 = vsel %vm331, %v4218, 0
        %v4252 = vsel %vm331, %v4219, 0
        %v4255 = vsel %vm331, %v4220, 0
        %v4258 = vsel %vm331, %v4221, 0
        %v4261 = vsel %vm331, %v4222, 0
        %v4264 = vsel %vm331, %v4223, 0
        %v4267 = vsel %vm331, %v4224, 0
        %v4270 = vsel %vm331, %v4225, 0
        %v4273 = vsel %vm331, %v4226, 0
        %v4276 = vsel %vm331, %v4227, 0
        %v4279 = vsel %vm331, %v4228, 0
        %v4282 = vsel %vm331, %v4229, 0
        %v4285 = vsel %vm331, %v4230, 0
        %4287 = vmatpush.msra.mxu0 0.0
        %4288 = vmatpush.msra.mxu0 0.0
        %4289 = vmatpush.msra.mxu0 0.0
        %4290 = vmatpush.msra.mxu0 0.0
        %4291 = vmatpush.msra.mxu0 0.0
        %4292 = vmatpush.msra.mxu0 0.0
        %4293 = vmatpush.msra.mxu0 0.0
        %4294 = vmatpush.msra.mxu0 0.0
        %4295 = vmatpush.msra.mxu0 %v4238
        %4296 = vmatpush.msra.mxu0 %v4237
        %4297 = vmatpush.msra.mxu0 %v4236
        %4298 = vmatpush.msra.mxu0 %v4235
        %4299 = vmatpush.msra.mxu0 %v4234
        %4300 = vmatpush.msra.mxu0 %v4233
        %4301 = vmatpush.msra.mxu0 %v4232
        %4302 = vmatpush.msra.mxu0 %v4231
        %4303 = vmatmul.f32.gmra.mxu0 %v4240
        %v4304 = vpop.f32.mrf.mxu0
        %v4305 = vadd.f32 0.0, %v4304
        %4306 = vmatmul.f32.gmra.mxu0 %v4243
        %v4307 = vpop.f32.mrf.mxu0
        %v4308 = vadd.f32 0.0, %v4307
        %4309 = vmatmul.f32.gmra.mxu0 %v4246
        %v4310 = vpop.f32.mrf.mxu0
        %v4311 = vadd.f32 0.0, %v4310
        %4312 = vmatmul.f32.gmra.mxu0 %v4249
        %v4313 = vpop.f32.mrf.mxu0
        %v4314 = vadd.f32 0.0, %v4313
        %4315 = vmatmul.f32.gmra.mxu0 %v4252
        %v4316 = vpop.f32.mrf.mxu0
        %v4317 = vadd.f32 0.0, %v4316
        %4318 = vmatmul.f32.gmra.mxu0 %v4255
        %v4319 = vpop.f32.mrf.mxu0
        %v4320 = vadd.f32 0.0, %v4319
        %4321 = vmatmul.f32.gmra.mxu0 %v4258
        %v4322 = vpop.f32.mrf.mxu0
        %v4323 = vadd.f32 0.0, %v4322
        %4324 = vmatmul.f32.gmra.mxu0 %v4261
        %v4325 = vpop.f32.mrf.mxu0
        %v4326 = vadd.f32 0.0, %v4325
        %4327 = vmatmul.f32.gmra.mxu0 %v4264
        %v4328 = vpop.f32.mrf.mxu0
        %v4329 = vadd.f32 0.0, %v4328
        %4330 = vmatmul.f32.gmra.mxu0 %v4267
        %v4331 = vpop.f32.mrf.mxu0
        %v4332 = vadd.f32 0.0, %v4331
        %4333 = vmatmul.f32.gmra.mxu0 %v4270
        %v4334 = vpop.f32.mrf.mxu0
        %v4335 = vadd.f32 0.0, %v4334
        %4336 = vmatmul.f32.gmra.mxu0 %v4273
        %v4337 = vpop.f32.mrf.mxu0
        %v4338 = vadd.f32 0.0, %v4337
        %4339 = vmatmul.f32.gmra.mxu0 %v4276
        %v4340 = vpop.f32.mrf.mxu0
        %v4341 = vadd.f32 0.0, %v4340
        %4342 = vmatmul.f32.gmra.mxu0 %v4279
        %v4343 = vpop.f32.mrf.mxu0
        %v4344 = vadd.f32 0.0, %v4343
        %4345 = vmatmul.f32.gmra.mxu0 %v4282
        %v4346 = vpop.f32.mrf.mxu0
        %v4347 = vadd.f32 0.0, %v4346
        %4348 = vmatmul.f32.gmra.mxu0 %v4285
        %v4349 = vpop.f32.mrf.mxu0
        %v4350 = vadd.f32 0.0, %v4349
        %4351 = vdwg.mxu0
        %v4352 = vadd.f32 %v4168, %v4305
        %v4353 = vadd.f32 %v4171, %v4308
        %v4354 = vadd.f32 %v4174, %v4311
        %v4355 = vadd.f32 %v4177, %v4314
        %v4356 = vadd.f32 %v4180, %v4317
        %v4357 = vadd.f32 %v4183, %v4320
        %v4358 = vadd.f32 %v4186, %v4323
        %v4359 = vadd.f32 %v4189, %v4326
        %v4360 = vadd.f32 %v4192, %v4329
        %v4361 = vadd.f32 %v4195, %v4332
        %v4362 = vadd.f32 %v4198, %v4335
        %v4363 = vadd.f32 %v4201, %v4338
        %v4364 = vadd.f32 %v4204, %v4341
        %v4365 = vadd.f32 %v4207, %v4344
        %v4366 = vadd.f32 %v4210, %v4347
        %v4367 = vadd.f32 %v4213, %v4350
        %v4368 = vadd.f32 %v4352, %v3369
        %v4369 = vadd.f32 %v4353, %v3369
        %v4370 = vadd.f32 %v4354, %v3369
        %v4371 = vadd.f32 %v4355, %v3369
        %v4372 = vadd.f32 %v4356, %v3369
        %v4373 = vadd.f32 %v4357, %v3369
        %v4374 = vadd.f32 %v4358, %v3369
        %v4375 = vadd.f32 %v4359, %v3369
        %v4376 = vadd.f32 %v4360, %v3369
        %v4377 = vadd.f32 %v4361, %v3369
        %v4378 = vadd.f32 %v4362, %v3369
        %v4379 = vadd.f32 %v4363, %v3369
        %v4380 = vadd.f32 %v4364, %v3369
        %v4381 = vadd.f32 %v4365, %v3369
        %v4382 = vadd.f32 %v4366, %v3369
        %v4383 = vadd.f32 %v4367, %v3369
        %4384 = vst.msk [vmem:[%s1514 + $0x1] sm:$0xff] %vm331, %v4368
        %4385 = vst.msk [vmem:[%s1514 + $0x9] sm:$0xff] %vm331, %v4369
        %4386 = vst.msk [vmem:[%s1514 + $0x19] sm:$0xff] %vm331, %v4370
        %4387 = vst.msk [vmem:[%s1514 + $0x21] sm:$0xff] %vm331, %v4371
        %4388 = vst.msk [vmem:[%s1514 + $0x31] sm:$0xff] %vm331, %v4372
        %4389 = vst.msk [vmem:[%s1514 + $0x39] sm:$0xff] %vm331, %v4373
        %4390 = vst.msk [vmem:[%s1514 + $0x49] sm:$0xff] %vm331, %v4374
        %4391 = vst.msk [vmem:[%s1514 + $0x51] sm:$0xff] %vm331, %v4375
        %4392 = vst.msk [vmem:[%s1514 + $0x61] sm:$0xff] %vm331, %v4376
        %4393 = vst.msk [vmem:[%s1514 + $0x69] sm:$0xff] %vm331, %v4377
        %4394 = vst.msk [vmem:[%s1514 + $0x79] sm:$0xff] %vm331, %v4378
        %4395 = vst.msk [vmem:[%s1514 + $0x81] sm:$0xff] %vm331, %v4379
        %4396 = vst.msk [vmem:[%s1514 + $0x91] sm:$0xff] %vm331, %v4380
        %4397 = vst.msk [vmem:[%s1514 + $0x99] sm:$0xff] %vm331, %v4381
        %4398 = vst.msk [vmem:[%s1514 + $0xa9] sm:$0xff] %vm331, %v4382
        %4399 = vst.msk [vmem:[%s1514 + $0xb1] sm:$0xff] %vm331, %v4383
        %v4400 = vsel %vm331, %v4368, 0.0
        %v4401 = vsel %vm331, %v4369, 0.0
        %v4402 = vadd.f32 %v4400, %v4401
        %v4403 = vsel %vm331, %v4370, 0.0
        %v4404 = vadd.f32 %v4402, %v4403
        %v4405 = vsel %vm331, %v4371, 0.0
        %v4406 = vadd.f32 %v4404, %v4405
        %v4407 = vsel %vm331, %v4372, 0.0
        %v4408 = vadd.f32 %v4406, %v4407
        %v4409 = vsel %vm331, %v4373, 0.0
        %v4410 = vadd.f32 %v4408, %v4409
        %v4411 = vsel %vm331, %v4374, 0.0
        %v4412 = vadd.f32 %v4410, %v4411
        %v4413 = vsel %vm331, %v4375, 0.0
        %v4414 = vadd.f32 %v4412, %v4413
        %v4415 = vsel %vm331, %v4376, 0.0
        %v4416 = vadd.f32 %v4414, %v4415
        %v4417 = vsel %vm331, %v4377, 0.0
        %v4418 = vadd.f32 %v4416, %v4417
        %v4419 = vsel %vm331, %v4378, 0.0
        %v4420 = vadd.f32 %v4418, %v4419
        %v4421 = vsel %vm331, %v4379, 0.0
        %v4422 = vadd.f32 %v4420, %v4421
        %v4423 = vsel %vm331, %v4380, 0.0
        %v4424 = vadd.f32 %v4422, %v4423
        %v4425 = vsel %vm331, %v4381, 0.0
        %v4426 = vadd.f32 %v4424, %v4425
        %v4427 = vsel %vm331, %v4382, 0.0
        %v4428 = vadd.f32 %v4426, %v4427
        %v4429 = vsel %vm331, %v4383, 0.0
        %v4430 = vadd.f32 %v4428, %v4429
        %v4431 = vrot.slane %v4430, 4
        %v4432 = vadd.f32 %v4430, %v4431
        %v4433 = vrot.slane %v4432, 2
        %v4434 = vadd.f32 %v4432, %v4433
        %v4435 = vrot.slane %v4434, 1
        %v4436 = vadd.f32 %v4434, %v4435
        %v4437 = vadd.f32 %v3440, %v4436
        %v4438 = vmul.f32 %v4437, 0.00390625
        %v4439 = vld [vmem:[%s5] sm:$0xff]
        %v4440 = vld [vmem:[%s5 + $0x8] sm:$0xff]
        %v4441 = vld [vmem:[%s5 + $0x10] sm:$0xff]
        %v4442 = vld [vmem:[%s5 + $0x18] sm:$0xff]
        %v4443 = vld [vmem:[%s5 + $0x20] sm:$0xff]
        %v4444 = vld [vmem:[%s5 + $0x28] sm:$0xff]
        %v4445 = vld [vmem:[%s5 + $0x30] sm:$0xff]
        %v4446 = vld [vmem:[%s5 + $0x38] sm:$0xff]
        %v4447 = vld [vmem:[%s6] sm:$0x1]
        %v4449 = vsel %vm331, %v4438, 0
        %4451 = vmatpush.msra.mxu0 0.0
        %4452 = vmatpush.msra.mxu0 0.0
        %4453 = vmatpush.msra.mxu0 0.0
        %4454 = vmatpush.msra.mxu0 0.0
        %4455 = vmatpush.msra.mxu0 0.0
        %4456 = vmatpush.msra.mxu0 0.0
        %4457 = vmatpush.msra.mxu0 0.0
        %4458 = vmatpush.msra.mxu0 0.0
        %4459 = vmatpush.msra.mxu0 %v4446
        %4460 = vmatpush.msra.mxu0 %v4445
        %4461 = vmatpush.msra.mxu0 %v4444
        %4462 = vmatpush.msra.mxu0 %v4443
        %4463 = vmatpush.msra.mxu0 %v4442
        %4464 = vmatpush.msra.mxu0 %v4441
        %4465 = vmatpush.msra.mxu0 %v4440
        %4466 = vmatpush.msra.mxu0 %v4439
        %4467 = vmatmul.f32.gmra.mxu0 %v4449
        %v4468 = vpop.f32.mrf.mxu0
        %v4469 = vadd.f32 %v4447, %v4468
        %4470 = vdwg.mxu0
        %v4471 = vmax.f32 %v4469, 0.0
        %v4472 = vld [vmem:[%s7] sm:$0xff]
        %v4473 = vld [vmem:[%s8] sm:$0x1]
        %vm4474 = vcmask 64512
        %v4476 = vsel %vm4474, %v4471, 0
        %4478 = vmatpush.msra.mxu0 0.0
        %4479 = vmatpush.msra.mxu0 0.0
        %4480 = vmatpush.msra.mxu0 0.0
        %4481 = vmatpush.msra.mxu0 0.0
        %4482 = vmatpush.msra.mxu0 0.0
        %4483 = vmatpush.msra.mxu0 0.0
        %4484 = vmatpush.msra.mxu0 0.0
        %4485 = vmatpush.msra.mxu0 0.0
        %4486 = vmatpush.msra.mxu0 0.0
        %4487 = vmatpush.msra.mxu0 0.0
        %4488 = vmatpush.msra.mxu0 0.0
        %4489 = vmatpush.msra.mxu0 0.0
        %4490 = vmatpush.msra.mxu0 0.0
        %4491 = vmatpush.msra.mxu0 0.0
        %4492 = vmatpush.msra.mxu0 0.0
        %4493 = vmatpush.msra.mxu0 %v4472
        %4494 = vmatmul.f32.gmra.mxu0 %v4476
        %v4495 = vpop.f32.mrf.mxu0
        %v4496 = vadd.f32 %v4473, %v4495
        %4497 = vdwg.mxu0
        %v4498 = vxor.u32 %v4496, 2147483648
        %v4499 = vmul.f32 %v4498, 1.442695
        %v4500 = vpow.pop %v4499
        %v4501 = vadd.f32 %v4500, 1.0
        %v4502 = vrcp.pop %v4501
        %v4503 = vmul.f32 %v4501, %v4502
        %v4504 = vsub.f32 1.0, %v4503
        %v4505 = vmul.f32 %v4502, %v4504
        %v4506 = vadd.f32 %v4502, %v4505
        %vm4507 = vweird.f32 %v4501
        %vm4508 = vweird.f32 %v4502
        %vm4509 = vmor %vm4507, %vm4508
        %v4510 = vsel %vm4509, %v4502, %v4506
        %v4511 = vand.u32 2147483647, %v4501
        %vm4512 = vcmp.eq.f32.partialorder %v4511, 8.507059e+37
        %v4513 = vand.u32 %v4501, 2147483648
        %v4514 = vor.u32 1.1754944e-38, %v4513
        %v4515 = vsel %vm4512, %v4514, %v4510
        %v4516 = vmul.f32 1.0, %v4515
        %v4517 = vld [vmem:[%s454 + $0x1] sm:$0xff]
        %v4518 = vld [vmem:[%s454 + $0x9] sm:$0xff]
        %v4519 = vld [vmem:[%s454 + $0x19] sm:$0xff]
        %v4520 = vld [vmem:[%s454 + $0x21] sm:$0xff]
        %v4521 = vld [vmem:[%s454 + $0x31] sm:$0xff]
        %v4522 = vld [vmem:[%s454 + $0x39] sm:$0xff]
        %v4523 = vld [vmem:[%s454 + $0x49] sm:$0xff]
        %v4524 = vld [vmem:[%s454 + $0x51] sm:$0xff]
        %v4525 = vld [vmem:[%s454 + $0x61] sm:$0xff]
        %v4526 = vld [vmem:[%s454 + $0x69] sm:$0xff]
        %v4527 = vld [vmem:[%s454 + $0x79] sm:$0xff]
        %v4528 = vld [vmem:[%s454 + $0x81] sm:$0xff]
        %v4529 = vld [vmem:[%s454 + $0x91] sm:$0xff]
        %v4530 = vld [vmem:[%s454 + $0x99] sm:$0xff]
        %v4531 = vld [vmem:[%s454 + $0xa9] sm:$0xff]
        %v4532 = vld [vmem:[%s454 + $0xb1] sm:$0xff]
        %v4533 = vperm.slane %v4516, 0
        %v4534 = vmul.f32 %v4517, %v4533
        %v4535 = vmul.f32 %v4518, %v4533
        %v4536 = vmul.f32 %v4519, %v4533
        %v4537 = vmul.f32 %v4520, %v4533
        %v4538 = vmul.f32 %v4521, %v4533
        %v4539 = vmul.f32 %v4522, %v4533
        %v4540 = vmul.f32 %v4523, %v4533
        %v4541 = vmul.f32 %v4524, %v4533
        %v4542 = vmul.f32 %v4525, %v4533
        %v4543 = vmul.f32 %v4526, %v4533
        %v4544 = vmul.f32 %v4527, %v4533
        %v4545 = vmul.f32 %v4528, %v4533
        %v4546 = vmul.f32 %v4529, %v4533
        %v4547 = vmul.f32 %v4530, %v4533
        %v4548 = vmul.f32 %v4531, %v4533
        %v4549 = vmul.f32 %v4532, %v4533
        %v4550 = vld [vmem:[%s330] sm:$0xff]
        %v4551 = vld [vmem:[%s330 + $0x8] sm:$0xff]
        %v4552 = vld [vmem:[%s330 + $0x10] sm:$0xff]
        %v4553 = vld [vmem:[%s330 + $0x18] sm:$0xff]
        %v4554 = vld [vmem:[%s330 + $0x20] sm:$0xff]
        %v4555 = vld [vmem:[%s330 + $0x28] sm:$0xff]
        %v4556 = vld [vmem:[%s330 + $0x30] sm:$0xff]
        %v4557 = vld [vmem:[%s330 + $0x38] sm:$0xff]
        %v4558 = vld [vmem:[%s330 + $0x40] sm:$0xff]
        %v4559 = vld [vmem:[%s330 + $0x48] sm:$0xff]
        %v4560 = vld [vmem:[%s330 + $0x50] sm:$0xff]
        %v4561 = vld [vmem:[%s330 + $0x58] sm:$0xff]
        %v4562 = vld [vmem:[%s330 + $0x60] sm:$0xff]
        %v4563 = vld [vmem:[%s330 + $0x68] sm:$0xff]
        %v4564 = vld [vmem:[%s330 + $0x70] sm:$0xff]
        %v4565 = vld [vmem:[%s330 + $0x78] sm:$0xff]
        %v4566 = vadd.f32 %v4534, %v4550
        %v4567 = vadd.f32 %v4535, %v4551
        %v4568 = vadd.f32 %v4536, %v4552
        %v4569 = vadd.f32 %v4537, %v4553
        %v4570 = vadd.f32 %v4538, %v4554
        %v4571 = vadd.f32 %v4539, %v4555
        %v4572 = vadd.f32 %v4540, %v4556
        %v4573 = vadd.f32 %v4541, %v4557
        %v4574 = vadd.f32 %v4542, %v4558
        %v4575 = vadd.f32 %v4543, %v4559
        %v4576 = vadd.f32 %v4544, %v4560
        %v4577 = vadd.f32 %v4545, %v4561
        %v4578 = vadd.f32 %v4546, %v4562
        %v4579 = vadd.f32 %v4547, %v4563
        %v4580 = vadd.f32 %v4548, %v4564
        %v4581 = vadd.f32 %v4549, %v4565
        %4582 = vst.msk [vmem:[%s325] sm:$0xff] %vm331, %v4566
        %4583 = vst.msk [vmem:[%s325 + $0x8] sm:$0xff] %vm331, %v4567
        %4584 = vst.msk [vmem:[%s325 + $0x10] sm:$0xff] %vm331, %v4568
        %4585 = vst.msk [vmem:[%s325 + $0x18] sm:$0xff] %vm331, %v4569
        %4586 = vst.msk [vmem:[%s325 + $0x20] sm:$0xff] %vm331, %v4570
        %4587 = vst.msk [vmem:[%s325 + $0x28] sm:$0xff] %vm331, %v4571
        %4588 = vst.msk [vmem:[%s325 + $0x30] sm:$0xff] %vm331, %v4572
        %4589 = vst.msk [vmem:[%s325 + $0x38] sm:$0xff] %vm331, %v4573
        %4590 = vst.msk [vmem:[%s325 + $0x40] sm:$0xff] %vm331, %v4574
        %4591 = vst.msk [vmem:[%s325 + $0x48] sm:$0xff] %vm331, %v4575
        %4592 = vst.msk [vmem:[%s325 + $0x50] sm:$0xff] %vm331, %v4576
        %4593 = vst.msk [vmem:[%s325 + $0x58] sm:$0xff] %vm331, %v4577
        %4594 = vst.msk [vmem:[%s325 + $0x60] sm:$0xff] %vm331, %v4578
        %4595 = vst.msk [vmem:[%s325 + $0x68] sm:$0xff] %vm331, %v4579
        %4596 = vst.msk [vmem:[%s325 + $0x70] sm:$0xff] %vm331, %v4580
        %4597 = vst.msk [vmem:[%s325 + $0x78] sm:$0xff] %vm331, %v4581
        %v4598 = vld [vmem:[%s1514 + $0x1] sm:$0xff]
        %v4599 = vld [vmem:[%s1514 + $0x9] sm:$0xff]
        %v4600 = vld [vmem:[%s1514 + $0x19] sm:$0xff]
        %v4601 = vld [vmem:[%s1514 + $0x21] sm:$0xff]
        %v4602 = vld [vmem:[%s1514 + $0x31] sm:$0xff]
        %v4603 = vld [vmem:[%s1514 + $0x39] sm:$0xff]
        %v4604 = vld [vmem:[%s1514 + $0x49] sm:$0xff]
        %v4605 = vld [vmem:[%s1514 + $0x51] sm:$0xff]
        %v4606 = vld [vmem:[%s1514 + $0x61] sm:$0xff]
        %v4607 = vld [vmem:[%s1514 + $0x69] sm:$0xff]
        %v4608 = vld [vmem:[%s1514 + $0x79] sm:$0xff]
        %v4609 = vld [vmem:[%s1514 + $0x81] sm:$0xff]
        %v4610 = vld [vmem:[%s1514 + $0x91] sm:$0xff]
        %v4611 = vld [vmem:[%s1514 + $0x99] sm:$0xff]
        %v4612 = vld [vmem:[%s1514 + $0xa9] sm:$0xff]
        %v4613 = vld [vmem:[%s1514 + $0xb1] sm:$0xff]
        %v4614 = vmul.f32 %v4598, %v4533
        %v4615 = vmul.f32 %v4599, %v4533
        %v4616 = vmul.f32 %v4600, %v4533
        %v4617 = vmul.f32 %v4601, %v4533
        %v4618 = vmul.f32 %v4602, %v4533
        %v4619 = vmul.f32 %v4603, %v4533
        %v4620 = vmul.f32 %v4604, %v4533
        %v4621 = vmul.f32 %v4605, %v4533
        %v4622 = vmul.f32 %v4606, %v4533
        %v4623 = vmul.f32 %v4607, %v4533
        %v4624 = vmul.f32 %v4608, %v4533
        %v4625 = vmul.f32 %v4609, %v4533
        %v4626 = vmul.f32 %v4610, %v4533
        %v4627 = vmul.f32 %v4611, %v4533
        %v4628 = vmul.f32 %v4612, %v4533
        %v4629 = vmul.f32 %v4613, %v4533
        %s4630 = scalar_lea.vmem %s330, 128
        %v4631 = vld [vmem:[%s4630] sm:$0xff]
        %v4632 = vld [vmem:[%s4630 + $0x8] sm:$0xff]
        %v4633 = vld [vmem:[%s4630 + $0x10] sm:$0xff]
        %v4634 = vld [vmem:[%s4630 + $0x18] sm:$0xff]
        %v4635 = vld [vmem:[%s4630 + $0x20] sm:$0xff]
        %v4636 = vld [vmem:[%s4630 + $0x28] sm:$0xff]
        %v4637 = vld [vmem:[%s4630 + $0x30] sm:$0xff]
        %v4638 = vld [vmem:[%s4630 + $0x38] sm:$0xff]
        %v4639 = vld [vmem:[%s4630 + $0x40] sm:$0xff]
        %v4640 = vld [vmem:[%s4630 + $0x48] sm:$0xff]
        %v4641 = vld [vmem:[%s4630 + $0x50] sm:$0xff]
        %v4642 = vld [vmem:[%s4630 + $0x58] sm:$0xff]
        %v4643 = vld [vmem:[%s4630 + $0x60] sm:$0xff]
        %v4644 = vld [vmem:[%s4630 + $0x68] sm:$0xff]
        %v4645 = vld [vmem:[%s4630 + $0x70] sm:$0xff]
        %v4646 = vld [vmem:[%s4630 + $0x78] sm:$0xff]
        %v4647 = vadd.f32 %v4614, %v4631
        %v4648 = vadd.f32 %v4615, %v4632
        %v4649 = vadd.f32 %v4616, %v4633
        %v4650 = vadd.f32 %v4617, %v4634
        %v4651 = vadd.f32 %v4618, %v4635
        %v4652 = vadd.f32 %v4619, %v4636
        %v4653 = vadd.f32 %v4620, %v4637
        %v4654 = vadd.f32 %v4621, %v4638
        %v4655 = vadd.f32 %v4622, %v4639
        %v4656 = vadd.f32 %v4623, %v4640
        %v4657 = vadd.f32 %v4624, %v4641
        %v4658 = vadd.f32 %v4625, %v4642
        %v4659 = vadd.f32 %v4626, %v4643
        %v4660 = vadd.f32 %v4627, %v4644
        %v4661 = vadd.f32 %v4628, %v4645
        %v4662 = vadd.f32 %v4629, %v4646
        %s4663 = scalar_lea.vmem %s325, 128 [#allocation4]
        %4664 = vst.msk [vmem:[%s4663] sm:$0xff] %vm331, %v4647
        %4665 = vst.msk [vmem:[%s4663 + $0x8] sm:$0xff] %vm331, %v4648
        %4666 = vst.msk [vmem:[%s4663 + $0x10] sm:$0xff] %vm331, %v4649
        %4667 = vst.msk [vmem:[%s4663 + $0x18] sm:$0xff] %vm331, %v4650
        %4668 = vst.msk [vmem:[%s4663 + $0x20] sm:$0xff] %vm331, %v4651
        %4669 = vst.msk [vmem:[%s4663 + $0x28] sm:$0xff] %vm331, %v4652
        %4670 = vst.msk [vmem:[%s4663 + $0x30] sm:$0xff] %vm331, %v4653
        %4671 = vst.msk [vmem:[%s4663 + $0x38] sm:$0xff] %vm331, %v4654
        %4672 = vst.msk [vmem:[%s4663 + $0x40] sm:$0xff] %vm331, %v4655
        %4673 = vst.msk [vmem:[%s4663 + $0x48] sm:$0xff] %vm331, %v4656
        %4674 = vst.msk [vmem:[%s4663 + $0x50] sm:$0xff] %vm331, %v4657
        %4675 = vst.msk [vmem:[%s4663 + $0x58] sm:$0xff] %vm331, %v4658
        %4676 = vst.msk [vmem:[%s4663 + $0x60] sm:$0xff] %vm331, %v4659
        %4677 = vst.msk [vmem:[%s4663 + $0x68] sm:$0xff] %vm331, %v4660
        %4678 = vst.msk [vmem:[%s4663 + $0x70] sm:$0xff] %vm331, %v4661
        %4679 = vst.msk [vmem:[%s4663 + $0x78] sm:$0xff] %vm331, %v4662
        %s4680 = sand.u32 %s225, 1
        %s4681 = scalar_lea.sflag [#allocation5], %s4680
        %s4682 = sand.u32 %s225, 1
        %s4683 = smul.addr %s4682, 256
        %s4684 = scalar_lea.vmem [#allocation4], %s4683
        // Predicated region
        $region57: #{rcab_forward.1} parent=55 // pred_check
          %p4685 = pneg %p235
        $region58: #{rcab_forward.1} parent=55 // pred_check_branch
          %4687 = sbr.rel (%p4685) target = $region60
        $region59: #{rcab_forward.1} parent=55 // pred_region
          %4689 = vsyncadd %s4681, 0
          %s4690 = smul.addr %s23, 32
          %s4691 = smul.addr %s4690, 8
          %s4692 = scalar_lea.hbm %s9, %s4691
          %s4693 = sshll.u32 %s4684, 4
          %s4694 = int_to_ptr.vmem [resolvable:$true] %s4693
          %s4695 = sshll.u32 %s4692, 4
          %s4696 = int_to_ptr.hbm [resolvable:$true] %s4695
          %4701 = dma.vmem_to_hbm [thread:$0]  %s4694, 4096, %s4696, %s4681, 128, 128, 8
        $region60: #{rcab_forward.1} parent=55 // pred_fallthru
          _
      $region56: #{rcab_forward.1} parent=5 // pred_fallthru
        _
      %p4702 = scmp.le.s32.totalorder 2, %s18
      // Predicated region
      $region61: #{rcab_forward.1} parent=5 // pred_check
        %p4703 = pneg %p4702
      $region62: #{rcab_forward.1} parent=5 // pred_check_branch
        %4705 = sbr.rel (%p4703) target = $region64
      $region63: #{rcab_forward.1} parent=5 // pred_region
        %s4706 = ssub.s32 %s18, 2
        // Predicated region
        $region65: #{rcab_forward.1} parent=63 // pred_check
          %p4707 = pneg %p241
        $region66: #{rcab_forward.1} parent=63 // pred_check_branch
          %4709 = sbr.rel (%p4707) target = $region68
        $region67: #{rcab_forward.1} parent=63 // pred_region
          %s4710 = sand.u32 %s226, 1
          %s4711 = scalar_lea.sflag [#allocation5], %s4710
          %s4712 = sand.u32 %s226, 1
          %s4713 = smul.addr %s4712, 256
          %s4714 = scalar_lea.vmem [#allocation4], %s4713
          %4716 = dma.done %s4711, 4096
        $region68: #{rcab_forward.1} parent=63 // pred_fallthru
          _
      $region64: #{rcab_forward.1} parent=5 // pred_fallthru
        _
    $region6: #{rcab_forward.1} parent=1 // loop_footer
      %s22 = sadd.s32 1, %s18
    $region7: #{rcab_forward.1} parent=1 // loop_footer_branch
      %17 = sbr.rel target = $region3
    $region8: #{rcab_forward.1} parent=1 // loop_exit
      _
    %4717 = vsyncpa [#allocation5], 1
    %s4718 = scalar_lea.sflag [#allocation5], 1
    %4719 = vsyncpa %s4718, 1

</llo_original>
